<compile_context>
chip_gen: v5e
topology: v5e:2x2
jax: 0.10.0
libtpu: 0.0.40
codegen_flags: <defaults>
</compile_context>

<pallas_src>
import numpy as np
import jax
import jax.numpy as jnp
from jax.experimental import pallas as pl
from jax.experimental.pallas import tpu as pltpu

# --- model hyper-parameters (small, synthetic) ---------------------------------
HIDDEN = 32              # hidden width of each NLunit_Multibody
N_DIST_SPLINES = 210     # 6-input splines
N_ANG_SPLINES = 7        # 2-input splines (cos/sin pair)
N_SPLINES = N_DIST_SPLINES + N_ANG_SPLINES
NI_PAD = 6               # angle-spline inputs zero-padded 2 -> 6
N_GRID_STEPS = 4         # grid over the group axis: pipelines weight DMA

# INDEX tables from the reference code (all zeros).
INDEX3_4BD = np.zeros((N_DIST_SPLINES, 6), dtype=np.int32)
INDEX5 = np.zeros((N_ANG_SPLINES,), dtype=np.int32)

# Power / repelconst / BondConst / bondPotential / repelPotential are defined in
# the PyTorch module but never used inside Model4BD.forward -> omitted.


# --- Pallas kernel --------------------------------------------------------------
def _grouped_spline_kernel(zd_ref, zc_ref, zs_ref, fd_ref, fc_ref, fs_ref,
                           seld_ref, selc_ref, sels_ref, aux_ref, w1_ref,
                           w2_ref, out_ref, acc_ref):
    # zd/zc/zs : (2, F*)              z-score (mu, sigma) rows        [resident]
    # fd/fc/fs : (B, F*)              raw input features              [resident]
    # seld/... : (NGB, F*, G*NI)      0/1 feature-selection matrices  [per step]
    # aux      : (NGB, 4, G*H)        rows = b1 | b2 | W3-row | b3    [per step]
    # w1       : (NGB, G*NI, G*H)     block-diagonal layer-1 weights  [per step]
    # w2       : (NGB, G*H, G*H)      block-diagonal layer-2 weights  [per step]
    # out      : (1,) f32 in SMEM     scalar potential U
    # acc      : (B, G*H) f32 VMEM    resident accumulator across the grid
    t = pl.program_id(0)
    ngb = w2_ref.shape[0]

    @pl.when(t == 0)
    def _init():
        acc_ref[...] = jnp.zeros_like(acc_ref)

    # z-score normalisation: exact element-wise f32, same formula as the torch code.
    fnd = (fd_ref[...] - zd_ref[0:1, :]) / zd_ref[1:2, :]
    fnc = (fc_ref[...] - zc_ref[0:1, :]) / zc_ref[1:2, :]
    fns = (fs_ref[...] - zs_ref[0:1, :]) / zs_ref[1:2, :]

    contrib = jnp.zeros(acc_ref.shape, jnp.float32)
    for j in range(ngb):                       # unrolled: 7 (G=8) or 14 (G=4) groups
        auxj = aux_ref[j]                      # (4, G*H)
        # constant-index gather as an exact 0/1 selection matmul -> (B, G*NI)
        x = (jnp.dot(fnd, seld_ref[j], preferred_element_type=jnp.float32)
             + jnp.dot(fnc, selc_ref[j], preferred_element_type=jnp.float32)
             + jnp.dot(fns, sels_ref[j], preferred_element_type=jnp.float32))
        h = jnp.tanh(jnp.dot(x, w1_ref[j], preferred_element_type=jnp.float32)
                     + auxj[0:1, :])
        h = jnp.tanh(jnp.dot(h, w2_ref[j], preferred_element_type=jnp.float32)
                     + auxj[1:2, :])
        # layer 3 + b3 on the VPU: no lane-sparse MXU pass, no masked store.
        # (b3 row has one entry per spline; summing acc over B later counts it
        #  B times, exactly matching  B * sum_s b3_s.)
        contrib = contrib + h * auxj[2:3, :] + auxj[3:4, :]
    acc_ref[...] += contrib

    @pl.when(t == pl.num_programs(0) - 1)
    def _finish():
        out_ref[0] = jnp.sum(acc_ref[...])     # single scalar SMEM store


# --- host-side, one-time packing -------------------------------------------------
def _pick_group_size():
    """8 splines/group (256-wide tiles) on v6e/v7x, 4 (128-wide) otherwise.

    Explicitly fails safe to G=4 for v5e ('TPU v5 lite' / 'TPU v5e'), v5p, v4, v3
    and unknown chips: on 128x128-MXU parts G=4 halves the block-diagonal weight
    bytes while total MXU weight-push work is G-invariant.
    """
    try:
        kind = jax.devices()[0].device_kind.lower()
    except Exception:
        return 4
    if any(tag in kind for tag in ("v6", "v7")):
        return 8
    return 4


def pack_params(params, G, n_steps):
    """Pack per-spline MLPs + z-score gathers into per-group block matrices."""
    W1, b1, W2, b2, W3, b3 = [np.asarray(a, np.float32) for a in params["mlp"]]
    Zd, Zc, Zs = [np.asarray(a, np.float32) for a in params["zscores"]]
    S, NI, H = W1.shape
    FD, FC, FS = Zd.shape[1], Zc.shape[1], Zs.shape[1]
    GH, GNI = G * H, G * NI

    NG = -(-S // G)
    NGP = n_steps * (-(-NG // n_steps))        # pad #groups to a grid multiple

    seld = np.zeros((NGP, FD, GNI), np.float32)
    selc = np.zeros((NGP, FC, GNI), np.float32)
    sels = np.zeros((NGP, FS, GNI), np.float32)
    w1g = np.zeros((NGP, GNI, GH), np.float32)
    w2g = np.zeros((NGP, GH, GH), np.float32)
    aux = np.zeros((NGP, 4, GH), np.float32)   # b1 | b2 | W3-row | b3

    for s in range(S):
        g, j = divmod(s, G)
        ccol = slice(j * H, (j + 1) * H)       # this slot's hidden columns
        icol = j * NI                          # this slot's input-column base
        if s < N_DIST_SPLINES:
            for i in range(NI):
                f = int(INDEX3_4BD[s, i])      # column of (selected) F_dist
                seld[g, f, icol + i] = 1.0
        else:
            a = int(INDEX5[s - N_DIST_SPLINES])
            selc[g, a, icol + 0] = 1.0         # cos feature -> input 0
            sels[g, a, icol + 1] = 1.0         # sin feature -> input 1
            # inputs 2..5 stay zero (matching the zero-padded angle W1 rows)
        w1g[g, icol:icol + NI, ccol] = W1[s]
        w2g[g, ccol, ccol] = W2[s]
        aux[g, 0, ccol] = b1[s, 0]
        aux[g, 1, ccol] = b2[s, 0]
        aux[g, 2, ccol] = W3[s, :, 0]
        aux[g, 3, j * H] = b3[s, 0, 0]
    # padded slots/groups are all-zero -> tanh(0)=0 chains -> contribute exactly 0.

    arrays = dict(zd=Zd, zc=Zc, zs=Zs, seld=seld, selc=selc, sels=sels,
                  aux=aux, w1=w1g, w2=w2g)
    return {k: jnp.asarray(v) for k, v in arrays.items()}


# --- forward: ZERO wrapper prep ops, one pallas_call ------------------------------
def _padded_f32_bytes(shape):
    s = list(shape)
    s[-1] = -(-s[-1] // 128) * 128
    if len(s) > 1:
        s[-2] = -(-s[-2] // 8) * 8
    n = 4
    for d in s:
        n *= d
    return n


def model4bd_forward(F_dist, F_cos, F_sin, F_angle, packed):
    # F_angle is accepted for signature parity with the torch module but unused.
    del F_angle
    zd, zc, zs = packed["zd"], packed["zc"], packed["zs"]
    seld, selc, sels = packed["seld"], packed["selc"], packed["sels"]
    aux, w1, w2 = packed["aux"], packed["w1"], packed["w2"]

    B = F_dist.shape[0]
    NGP, GH = w2.shape[0], w2.shape[1]
    GNI = w1.shape[1]
    FD, FC, FS = zd.shape[1], zc.shape[1], zs.shape[1]
    n_steps = N_GRID_STEPS
    assert NGP % n_steps == 0
    ngb = NGP // n_steps

    # VMEM budget from the actual padded block sizes (double-buffered) + headroom.
    step_bytes = (_padded_f32_bytes((ngb, GH, GH)) +
                  _padded_f32_bytes((ngb, GNI, GH)) +
                  _padded_f32_bytes((ngb, 4, GH)) +
                  _padded_f32_bytes((ngb, FD, GNI)) +
                  _padded_f32_bytes((ngb, FC, GNI)) +
                  _padded_f32_bytes((ngb, FS, GNI)))
    resident = (sum(_padded_f32_bytes(a.shape) for a in (zd, zc, zs)) +
                _padded_f32_bytes((B, FD)) + _padded_f32_bytes((B, FC)) +
                _padded_f32_bytes((B, FS)) + _padded_f32_bytes((B, GH)))
    vmem_limit = int(2 * step_bytes + 2 * resident + (8 << 20))

    grid_spec = pltpu.PrefetchScalarGridSpec(
        num_scalar_prefetch=0,
        grid=(n_steps,),
        in_specs=[
            pl.BlockSpec((2, FD), lambda t: (0, 0)),           # zd  (resident)
            pl.BlockSpec((2, FC), lambda t: (0, 0)),           # zc
            pl.BlockSpec((2, FS), lambda t: (0, 0)),           # zs
            pl.BlockSpec((B, FD), lambda t: (0, 0)),           # F_dist
            pl.BlockSpec((B, FC), lambda t: (0, 0)),           # F_cos
            pl.BlockSpec((B, FS), lambda t: (0, 0)),           # F_sin
            pl.BlockSpec((ngb, FD, GNI), lambda t: (t, 0, 0)),  # seld (pipelined)
            pl.BlockSpec((ngb, FC, GNI), lambda t: (t, 0, 0)),  # selc
            pl.BlockSpec((ngb, FS, GNI), lambda t: (t, 0, 0)),  # sels
            pl.BlockSpec((ngb, 4, GH), lambda t: (t, 0, 0)),    # aux
            pl.BlockSpec((ngb, GNI, GH), lambda t: (t, 0, 0)),  # w1
            pl.BlockSpec((ngb, GH, GH), lambda t: (t, 0, 0)),   # w2
        ],
        out_specs=pl.BlockSpec(memory_space=pltpu.MemorySpace.SMEM),
        scratch_shapes=[pltpu.VMEM((B, GH), jnp.float32)],
    )
    return pl.pallas_call(
        _grouped_spline_kernel,
        out_shape=jax.ShapeDtypeStruct((1,), jnp.float32),
        grid_spec=grid_spec,
        compiler_params=pltpu.CompilerParams(
            dimension_semantics=("arbitrary",),
            vmem_limit_bytes=vmem_limit),
    )(zd, zc, zs, F_dist, F_cos, F_sin, seld, selc, sels, aux, w1, w2)


# --- pure-JAX reference (unfused, per-spline) ------------------------------------
def model4bd_reference(F_dist, F_cos, F_sin, F_angle, params):
    del F_angle
    Zd, Zc, Zs = params["zscores"]
    sel = np.arange(0, 45)
    FNd = (F_dist[:, sel] - Zd[0, sel]) / Zd[1, sel]
    FNc = (F_cos - Zc[0, :]) / Zc[1, :]
    FNs = (F_sin - Zs[0, :]) / Zs[1, :]

    W1, b1, W2, b2, W3, b3 = params["mlp"]
    Xd = jnp.transpose(FNd[:, INDEX3_4BD], (1, 0, 2))                       # (210,B,6)
    Xa = jnp.transpose(jnp.stack([FNc[:, INDEX5], FNs[:, INDEX5]], -1),
                       (1, 0, 2))                                           # (7,B,2)
    Xa = jnp.pad(Xa, ((0, 0), (0, 0), (0, NI_PAD - 2)))
    X = jnp.concatenate([Xd, Xa], axis=0)                                   # (217,B,6)

    h = jnp.tanh(jnp.einsum("sbi,sih->sbh", X, W1) + b1)
    h = jnp.tanh(jnp.einsum("sbh,shk->sbk", h, W2) + b2)
    o = jnp.sum(h * jnp.transpose(W3, (0, 2, 1)), axis=-1, keepdims=True) + b3
    out = jnp.sum(o, axis=0)                                                # (B,1)
    return jnp.sum(out, axis=0)                                             # (1,)


# --- deterministic parameter construction ----------------------------------------
def _init_mlp_stack(key, S, ni, H):
    ks = jax.random.split(key, 6)
    b_in, b_h = 1.0 / np.sqrt(ni), 1.0 / np.sqrt(H)
    W1 = jax.random.uniform(ks[0], (S, ni, H), jnp.float32, -b_in, b_in)
    b1 = jax.random.uniform(ks[1], (S, 1, H), jnp.float32, -b_in, b_in)
    W2 = jax.random.uniform(ks[2], (S, H, H), jnp.float32, -b_h, b_h)
    b2 = jax.random.uniform(ks[3], (S, 1, H), jnp.float32, -b_h, b_h)
    W3 = jax.random.uniform(ks[4], (S, H, 1), jnp.float32, -b_h, b_h)
    b3 = jax.random.uniform(ks[5], (S, 1, 1), jnp.float32, -b_h, b_h)
    return W1, b1, W2, b2, W3, b3


def init_params(key, n_dist_feat, n_ang_feat, H=HIDDEN):
    kd, ka, kz = jax.random.split(key, 3)

    Wd1, bd1, Wd2, bd2, Wd3, bd3 = _init_mlp_stack(kd, N_DIST_SPLINES, 6, H)
    Wa1, ba1, Wa2, ba2, Wa3, ba3 = _init_mlp_stack(ka, N_ANG_SPLINES, 2, H)
    Wa1 = jnp.pad(Wa1, ((0, 0), (0, NI_PAD - 2), (0, 0)))   # zero-pad inputs 2->6

    mlp = (jnp.concatenate([Wd1, Wa1], 0), jnp.concatenate([bd1, ba1], 0),
           jnp.concatenate([Wd2, Wa2], 0), jnp.concatenate([bd2, ba2], 0),
           jnp.concatenate([Wd3, Wa3], 0), jnp.concatenate([bd3, ba3], 0))

    kz1, kz2, kz3, kz4, kz5, kz6 = jax.random.split(kz, 6)
    Zscore_dist = jnp.stack([
        jax.random.uniform(kz1, (n_dist_feat,), jnp.float32, 0.0, 1.0),
        jax.random.uniform(kz2, (n_dist_feat,), jnp.float32, 0.5, 1.5)])
    Zscore_cos = jnp.stack([
        jax.random.uniform(kz3, (n_ang_feat,), jnp.float32, -0.5, 0.5),
        jax.random.uniform(kz4, (n_ang_feat,), jnp.float32, 0.5, 1.5)])
    Zscore_sin = jnp.stack([
        jax.random.uniform(kz5, (n_ang_feat,), jnp.float32, -0.5, 0.5),
        jax.random.uniform(kz6, (n_ang_feat,), jnp.float32, 0.5, 1.5)])

    return {"mlp": mlp, "zscores": (Zscore_dist, Zscore_cos, Zscore_sin)}


if __name__ == "__main__":
    B = 8                # batch (sublane-friendly)
    N_DIST_FEAT = 55     # F_dist columns (forward selects the first 45)
    N_ANG_FEAT = 7       # F_cos / F_sin columns

    key = jax.random.PRNGKey(0)
    kp, k1, k2, k3, k4 = jax.random.split(key, 5)

    params = init_params(kp, N_DIST_FEAT, N_ANG_FEAT)

    # One-time host-side repack of the constant weights / z-scores / index gathers.
    G = _pick_group_size()
    packed = pack_params(params, G, N_GRID_STEPS)

    F_dist = jax.random.uniform(k1, (B, N_DIST_FEAT), jnp.float32, 1.0, 3.0)
    F_cos = jax.random.uniform(k2, (B, N_ANG_FEAT), jnp.float32, -1.0, 1.0)
    F_sin = jax.random.uniform(k3, (B, N_ANG_FEAT), jnp.float32, -1.0, 1.0)
    F_angle = jax.random.uniform(k4, (B, N_ANG_FEAT), jnp.float32, -3.14, 3.14)

    U = jax.jit(model4bd_forward)(F_dist, F_cos, F_sin, F_angle, packed)
    U = jax.block_until_ready(U)

    U_ref = model4bd_reference(F_dist, F_cos, F_sin, F_angle, params)
    assert U.shape == (1,)
    # Tolerance covers MXU default-precision (bf16-input) matmuls plus the
    # different f32 accumulation order between the fused kernel (~50k product
    # terms reduced group-major) and the unfused per-spline reference.
    assert jnp.allclose(U, U_ref, rtol=1e-3, atol=1e-3), (U, U_ref)

    print("KERNEL_OK")
</pallas_src>

<mosaic_0001>
module attributes {stable_mosaic.version = 11 : i64} {
  func.func @_grouped_spline_kernel(%arg0: i32, %arg1: memref<2x55xf32, #tpu.memory_space<vmem>>, %arg2: memref<2x7xf32, #tpu.memory_space<vmem>>, %arg3: memref<2x7xf32, #tpu.memory_space<vmem>>, %arg4: memref<8x55xf32, #tpu.memory_space<vmem>>, %arg5: memref<8x7xf32, #tpu.memory_space<vmem>>, %arg6: memref<8x7xf32, #tpu.memory_space<vmem>>, %arg7: memref<14x55x24xf32, #tpu.memory_space<vmem>>, %arg8: memref<14x7x24xf32, #tpu.memory_space<vmem>>, %arg9: memref<14x7x24xf32, #tpu.memory_space<vmem>>, %arg10: memref<14x4x128xf32, #tpu.memory_space<vmem>>, %arg11: memref<14x24x128xf32, #tpu.memory_space<vmem>>, %arg12: memref<14x128x128xf32, #tpu.memory_space<vmem>>, %arg13: memref<1xf32, #tpu.memory_space<smem>>, %arg14: memref<8x128xf32, #tpu.memory_space<vmem>>) attributes {dimension_semantics = [#tpu.dimension_semantics<arbitrary>], iteration_bounds = array<i64: 4>, scalar_prefetch = 0 : i64, scratch_operands = 1 : i64, tpu.core_type = #tpu.core_type<tc>, window_params = [{pipeline_mode = #tpu.pipeline_mode<synchronous>, transform_indices = @transform_0, window_bounds = array<i64: 2, 55>}, {pipeline_mode = #tpu.pipeline_mode<synchronous>, transform_indices = @transform_1, window_bounds = array<i64: 2, 7>}, {pipeline_mode = #tpu.pipeline_mode<synchronous>, transform_indices = @transform_2, window_bounds = array<i64: 2, 7>}, {pipeline_mode = #tpu.pipeline_mode<synchronous>, transform_indices = @transform_3, window_bounds = array<i64: 8, 55>}, {pipeline_mode = #tpu.pipeline_mode<synchronous>, transform_indices = @transform_4, window_bounds = array<i64: 8, 7>}, {pipeline_mode = #tpu.pipeline_mode<synchronous>, transform_indices = @transform_5, window_bounds = array<i64: 8, 7>}, {transform_indices = @transform_6, window_bounds = array<i64: 14, 55, 24>}, {transform_indices = @transform_7, window_bounds = array<i64: 14, 7, 24>}, {transform_indices = @transform_8, window_bounds = array<i64: 14, 7, 24>}, {transform_indices = @transform_9, window_bounds = array<i64: 14, 4, 128>}, {transform_indices = @transform_10, window_bounds = array<i64: 14, 24, 128>}, {transform_indices = @transform_11, window_bounds = array<i64: 14, 128, 128>}, {transform_indices = @transform_12, window_bounds = array<i64: 1>}]} {
    %c0_i32 = arith.constant 0 : i32
    %0 = arith.cmpi eq, %arg0, %c0_i32 : i32
    %1 = arith.extui %0 : i1 to i32
    %c0_i32_0 = arith.constant 0 : i32
    %2 = arith.cmpi ne, %1, %c0_i32_0 : i32
    scf.if %2 {
      %cst_332 = arith.constant 0.000000e+00 : f32
      %507 = vector.broadcast %cst_332 : f32 to vector<8x128xf32>
      %c0_333 = arith.constant 0 : index
      %c0_334 = arith.constant 0 : index
      %508 = vector.load %arg14[%c0_333, %c0_334] : memref<8x128xf32, #tpu.memory_space<vmem>>, vector<8x128xf32>
      tpu.vector_store %arg14[%c0_333, %c0_334], %507 {strides = array<i32>} : memref<8x128xf32, #tpu.memory_space<vmem>>, vector<8x128xf32>,
    } else {
    }
    %c0 = arith.constant 0 : index
    %c0_1 = arith.constant 0 : index
    %3 = vector.load %arg4[%c0, %c0_1] : memref<8x55xf32, #tpu.memory_space<vmem>>, vector<8x55xf32>
    %c0_2 = arith.constant 0 : index
    %c0_3 = arith.constant 0 : index
    %4 = vector.load %arg1[%c0_2, %c0_3] : memref<2x55xf32, #tpu.memory_space<vmem>>, vector<1x55xf32>
    %5 = vector.broadcast %4 : vector<1x55xf32> to vector<8x55xf32>
    %6 = arith.subf %3, %5 : vector<8x55xf32>
    %c1 = arith.constant 1 : index
    %c0_4 = arith.constant 0 : index
    %7 = vector.load %arg1[%c1, %c0_4] : memref<2x55xf32, #tpu.memory_space<vmem>>, vector<1x55xf32>
    %8 = vector.broadcast %7 : vector<1x55xf32> to vector<8x55xf32>
    %9 = arith.divf %6, %8 : vector<8x55xf32>
    %c0_5 = arith.constant 0 : index
    %c0_6 = arith.constant 0 : index
    %10 = vector.load %arg5[%c0_5, %c0_6] : memref<8x7xf32, #tpu.memory_space<vmem>>, vector<8x7xf32>
    %c0_7 = arith.constant 0 : index
    %c0_8 = arith.constant 0 : index
    %11 = vector.load %arg2[%c0_7, %c0_8] : memref<2x7xf32, #tpu.memory_space<vmem>>, vector<1x7xf32>
    %12 = vector.broadcast %11 : vector<1x7xf32> to vector<8x7xf32>
    %13 = arith.subf %10, %12 : vector<8x7xf32>
    %c1_9 = arith.constant 1 : index
    %c0_10 = arith.constant 0 : index
    %14 = vector.load %arg2[%c1_9, %c0_10] : memref<2x7xf32, #tpu.memory_space<vmem>>, vector<1x7xf32>
    %15 = vector.broadcast %14 : vector<1x7xf32> to vector<8x7xf32>
    %16 = arith.divf %13, %15 : vector<8x7xf32>
    %c0_11 = arith.constant 0 : index
    %c0_12 = arith.constant 0 : index
    %17 = vector.load %arg6[%c0_11, %c0_12] : memref<8x7xf32, #tpu.memory_space<vmem>>, vector<8x7xf32>
    %c0_13 = arith.constant 0 : index
    %c0_14 = arith.constant 0 : index
    %18 = vector.load %arg3[%c0_13, %c0_14] : memref<2x7xf32, #tpu.memory_space<vmem>>, vector<1x7xf32>
    %19 = vector.broadcast %18 : vector<1x7xf32> to vector<8x7xf32>
    %20 = arith.subf %17, %19 : vector<8x7xf32>
    %c1_15 = arith.constant 1 : index
    %c0_16 = arith.constant 0 : index
    %21 = vector.load %arg3[%c1_15, %c0_16] : memref<2x7xf32, #tpu.memory_space<vmem>>, vector<1x7xf32>
    %22 = vector.broadcast %21 : vector<1x7xf32> to vector<8x7xf32>
    %23 = arith.divf %20, %22 : vector<8x7xf32>
    %cst = arith.constant 0.000000e+00 : f32
    %24 = vector.broadcast %cst : f32 to vector<8x128xf32>
    %c0_17 = arith.constant 0 : index
    %c0_18 = arith.constant 0 : index
    %c0_19 = arith.constant 0 : index
    %25 = vector.load %arg10[%c0_17, %c0_18, %c0_19] : memref<14x4x128xf32, #tpu.memory_space<vmem>>, vector<1x4x128xf32>
    %26 = vector.shape_cast %25 : vector<1x4x128xf32> to vector<4x128xf32>
    %c0_20 = arith.constant 0 : index
    %c0_21 = arith.constant 0 : index
    %c0_22 = arith.constant 0 : index
    %27 = vector.load %arg7[%c0_20, %c0_21, %c0_22] : memref<14x55x24xf32, #tpu.memory_space<vmem>>, vector<1x55x24xf32>
    %28 = vector.shape_cast %27 : vector<1x55x24xf32> to vector<55x24xf32>
    %cst_23 = arith.constant dense<0.000000e+00> : vector<8x24xf32>
    %29 = tpu.matmul %9, %28, %cst_23 {dimension_numbers = #tpu.dot_dimension_numbers<[1], [0], [0], [1], [0, 0, 1, 1], [], []>} : vector<8x55xf32>, vector<55x24xf32>, vector<8x24xf32> -> vector<8x24xf32>
    %c0_24 = arith.constant 0 : index
    %c0_25 = arith.constant 0 : index
    %c0_26 = arith.constant 0 : index
    %30 = vector.load %arg8[%c0_24, %c0_25, %c0_26] : memref<14x7x24xf32, #tpu.memory_space<vmem>>, vector<1x7x24xf32>
    %31 = vector.shape_cast %30 : vector<1x7x24xf32> to vector<7x24xf32>
    %cst_27 = arith.constant dense<0.000000e+00> : vector<8x24xf32>
    %32 = tpu.matmul %16, %31, %cst_27 {dimension_numbers = #tpu.dot_dimension_numbers<[1], [0], [0], [1], [0, 0, 1, 1], [], []>} : vector<8x7xf32>, vector<7x24xf32>, vector<8x24xf32> -> vector<8x24xf32>
    %33 = arith.addf %29, %32 : vector<8x24xf32>
    %c0_28 = arith.constant 0 : index
    %c0_29 = arith.constant 0 : index
    %c0_30 = arith.constant 0 : index
    %34 = vector.load %arg9[%c0_28, %c0_29, %c0_30] : memref<14x7x24xf32, #tpu.memory_space<vmem>>, vector<1x7x24xf32>
    %35 = vector.shape_cast %34 : vector<1x7x24xf32> to vector<7x24xf32>
    %cst_31 = arith.constant dense<0.000000e+00> : vector<8x24xf32>
    %36 = tpu.matmul %23, %35, %cst_31 {dimension_numbers = #tpu.dot_dimension_numbers<[1], [0], [0], [1], [0, 0, 1, 1], [], []>} : vector<8x7xf32>, vector<7x24xf32>, vector<8x24xf32> -> vector<8x24xf32>
    %37 = arith.addf %33, %36 : vector<8x24xf32>
    %c0_32 = arith.constant 0 : index
    %c0_33 = arith.constant 0 : index
    %c0_34 = arith.constant 0 : index
    %38 = vector.load %arg11[%c0_32, %c0_33, %c0_34] : memref<14x24x128xf32, #tpu.memory_space<vmem>>, vector<1x24x128xf32>
    %39 = vector.shape_cast %38 : vector<1x24x128xf32> to vector<24x128xf32>
    %cst_35 = arith.constant dense<0.000000e+00> : vector<8x128xf32>
    %40 = tpu.matmul %37, %39, %cst_35 {dimension_numbers = #tpu.dot_dimension_numbers<[1], [0], [0], [1], [0, 0, 1, 1], [], []>} : vector<8x24xf32>, vector<24x128xf32>, vector<8x128xf32> -> vector<8x128xf32>
    %41 = vector.extract_strided_slice %26 {offsets = [0, 0], sizes = [1, 128], strides = [1, 1]} : vector<4x128xf32> to vector<1x128xf32>
    %42 = vector.broadcast %41 : vector<1x128xf32> to vector<8x128xf32>
    %43 = arith.addf %40, %42 : vector<8x128xf32>
    %44 = math.tanh %43 : vector<8x128xf32>
    %c0_36 = arith.constant 0 : index
    %c0_37 = arith.constant 0 : index
    %c0_38 = arith.constant 0 : index
    %45 = vector.load %arg12[%c0_36, %c0_37, %c0_38] : memref<14x128x128xf32, #tpu.memory_space<vmem>>, vector<1x128x128xf32>
    %46 = vector.shape_cast %45 : vector<1x128x128xf32> to vector<128x128xf32>
    %cst_39 = arith.constant dense<0.000000e+00> : vector<8x128xf32>
    %47 = tpu.matmul %44, %46, %cst_39 {dimension_numbers = #tpu.dot_dimension_numbers<[1], [0], [0], [1], [0, 0, 1, 1], [], []>} : vector<8x128xf32>, vector<128x128xf32>, vector<8x128xf32> -> vector<8x128xf32>
    %48 = vector.extract_strided_slice %26 {offsets = [1, 0], sizes = [1, 128], strides = [1, 1]} : vector<4x128xf32> to vector<1x128xf32>
    %49 = vector.broadcast %48 : vector<1x128xf32> to vector<8x128xf32>
    %50 = arith.addf %47, %49 : vector<8x128xf32>
    %51 = math.tanh %50 : vector<8x128xf32>
    %52 = vector.extract_strided_slice %26 {offsets = [2, 0], sizes = [1, 128], strides = [1, 1]} : vector<4x128xf32> to vector<1x128xf32>
    %53 = vector.broadcast %52 : vector<1x128xf32> to vector<8x128xf32>
    %54 = arith.mulf %51, %53 : vector<8x128xf32>
    %55 = arith.addf %24, %54 : vector<8x128xf32>
    %56 = vector.extract_strided_slice %26 {offsets = [3, 0], sizes = [1, 128], strides = [1, 1]} : vector<4x128xf32> to vector<1x128xf32>
    %57 = vector.broadcast %56 : vector<1x128xf32> to vector<8x128xf32>
    %58 = arith.addf %55, %57 : vector<8x128xf32>
    %c1_40 = arith.constant 1 : index
    %c0_41 = arith.constant 0 : index
    %c0_42 = arith.constant 0 : index
    %59 = vector.load %arg10[%c1_40, %c0_41, %c0_42] : memref<14x4x128xf32, #tpu.memory_space<vmem>>, vector<1x4x128xf32>
    %60 = vector.shape_cast %59 : vector<1x4x128xf32> to vector<4x128xf32>
    %c1_43 = arith.constant 1 : index
    %c0_44 = arith.constant 0 : index
    %c0_45 = arith.constant 0 : index
    %61 = vector.load %arg7[%c1_43, %c0_44, %c0_45] : memref<14x55x24xf32, #tpu.memory_space<vmem>>, vector<1x55x24xf32>
    %62 = vector.shape_cast %61 : vector<1x55x24xf32> to vector<55x24xf32>
    %cst_46 = arith.constant dense<0.000000e+00> : vector<8x24xf32>
    %63 = tpu.matmul %9, %62, %cst_46 {dimension_numbers = #tpu.dot_dimension_numbers<[1], [0], [0], [1], [0, 0, 1, 1], [], []>} : vector<8x55xf32>, vector<55x24xf32>, vector<8x24xf32> -> vector<8x24xf32>
    %c1_47 = arith.constant 1 : index
    %c0_48 = arith.constant 0 : index
    %c0_49 = arith.constant 0 : index
    %64 = vector.load %arg8[%c1_47, %c0_48, %c0_49] : memref<14x7x24xf32, #tpu.memory_space<vmem>>, vector<1x7x24xf32>
    %65 = vector.shape_cast %64 : vector<1x7x24xf32> to vector<7x24xf32>
    %cst_50 = arith.constant dense<0.000000e+00> : vector<8x24xf32>
    %66 = tpu.matmul %16, %65, %cst_50 {dimension_numbers = #tpu.dot_dimension_numbers<[1], [0], [0], [1], [0, 0, 1, 1], [], []>} : vector<8x7xf32>, vector<7x24xf32>, vector<8x24xf32> -> vector<8x24xf32>
    %67 = arith.addf %63, %66 : vector<8x24xf32>
    %c1_51 = arith.constant 1 : index
    %c0_52 = arith.constant 0 : index
    %c0_53 = arith.constant 0 : index
    %68 = vector.load %arg9[%c1_51, %c0_52, %c0_53] : memref<14x7x24xf32, #tpu.memory_space<vmem>>, vector<1x7x24xf32>
    %69 = vector.shape_cast %68 : vector<1x7x24xf32> to vector<7x24xf32>
    %cst_54 = arith.constant dense<0.000000e+00> : vector<8x24xf32>
    %70 = tpu.matmul %23, %69, %cst_54 {dimension_numbers = #tpu.dot_dimension_numbers<[1], [0], [0], [1], [0, 0, 1, 1], [], []>} : vector<8x7xf32>, vector<7x24xf32>, vector<8x24xf32> -> vector<8x24xf32>
    %71 = arith.addf %67, %70 : vector<8x24xf32>
    %c1_55 = arith.constant 1 : index
    %c0_56 = arith.constant 0 : index
    %c0_57 = arith.constant 0 : index
    %72 = vector.load %arg11[%c1_55, %c0_56, %c0_57] : memref<14x24x128xf32, #tpu.memory_space<vmem>>, vector<1x24x128xf32>
    %73 = vector.shape_cast %72 : vector<1x24x128xf32> to vector<24x128xf32>
    %cst_58 = arith.constant dense<0.000000e+00> : vector<8x128xf32>
    %74 = tpu.matmul %71, %73, %cst_58 {dimension_numbers = #tpu.dot_dimension_numbers<[1], [0], [0], [1], [0, 0, 1, 1], [], []>} : vector<8x24xf32>, vector<24x128xf32>, vector<8x128xf32> -> vector<8x128xf32>
    %75 = vector.extract_strided_slice %60 {offsets = [0, 0], sizes = [1, 128], strides = [1, 1]} : vector<4x128xf32> to vector<1x128xf32>
    %76 = vector.broadcast %75 : vector<1x128xf32> to vector<8x128xf32>
    %77 = arith.addf %74, %76 : vector<8x128xf32>
    %78 = math.tanh %77 : vector<8x128xf32>
    %c1_59 = arith.constant 1 : index
    %c0_60 = arith.constant 0 : index
    %c0_61 = arith.constant 0 : index
    %79 = vector.load %arg12[%c1_59, %c0_60, %c0_61] : memref<14x128x128xf32, #tpu.memory_space<vmem>>, vector<1x128x128xf32>
    %80 = vector.shape_cast %79 : vector<1x128x128xf32> to vector<128x128xf32>
    %cst_62 = arith.constant dense<0.000000e+00> : vector<8x128xf32>
    %81 = tpu.matmul %78, %80, %cst_62 {dimension_numbers = #tpu.dot_dimension_numbers<[1], [0], [0], [1], [0, 0, 1, 1], [], []>} : vector<8x128xf32>, vector<128x128xf32>, vector<8x128xf32> -> vector<8x128xf32>
    %82 = vector.extract_strided_slice %60 {offsets = [1, 0], sizes = [1, 128], strides = [1, 1]} : vector<4x128xf32> to vector<1x128xf32>
    %83 = vector.broadcast %82 : vector<1x128xf32> to vector<8x128xf32>
    %84 = arith.addf %81, %83 : vector<8x128xf32>
    %85 = math.tanh %84 : vector<8x128xf32>
    %86 = vector.extract_strided_slice %60 {offsets = [2, 0], sizes = [1, 128], strides = [1, 1]} : vector<4x128xf32> to vector<1x128xf32>
    %87 = vector.broadcast %86 : vector<1x128xf32> to vector<8x128xf32>
    %88 = arith.mulf %85, %87 : vector<8x128xf32>
    %89 = arith.addf %58, %88 : vector<8x128xf32>
    %90 = vector.extract_strided_slice %60 {offsets = [3, 0], sizes = [1, 128], strides = [1, 1]} : vector<4x128xf32> to vector<1x128xf32>
    %91 = vector.broadcast %90 : vector<1x128xf32> to vector<8x128xf32>
    %92 = arith.addf %89, %91 : vector<8x128xf32>
    %c2 = arith.constant 2 : index
    %c0_63 = arith.constant 0 : index
    %c0_64 = arith.constant 0 : index
    %93 = vector.load %arg10[%c2, %c0_63, %c0_64] : memref<14x4x128xf32, #tpu.memory_space<vmem>>, vector<1x4x128xf32>
    %94 = vector.shape_cast %93 : vector<1x4x128xf32> to vector<4x128xf32>
    %c2_65 = arith.constant 2 : index
    %c0_66 = arith.constant 0 : index
    %c0_67 = arith.constant 0 : index
    %95 = vector.load %arg7[%c2_65, %c0_66, %c0_67] : memref<14x55x24xf32, #tpu.memory_space<vmem>>, vector<1x55x24xf32>
    %96 = vector.shape_cast %95 : vector<1x55x24xf32> to vector<55x24xf32>
    %cst_68 = arith.constant dense<0.000000e+00> : vector<8x24xf32>
    %97 = tpu.matmul %9, %96, %cst_68 {dimension_numbers = #tpu.dot_dimension_numbers<[1], [0], [0], [1], [0, 0, 1, 1], [], []>} : vector<8x55xf32>, vector<55x24xf32>, vector<8x24xf32> -> vector<8x24xf32>
    %c2_69 = arith.constant 2 : index
    %c0_70 = arith.constant 0 : index
    %c0_71 = arith.constant 0 : index
    %98 = vector.load %arg8[%c2_69, %c0_70, %c0_71] : memref<14x7x24xf32, #tpu.memory_space<vmem>>, vector<1x7x24xf32>
    %99 = vector.shape_cast %98 : vector<1x7x24xf32> to vector<7x24xf32>
    %cst_72 = arith.constant dense<0.000000e+00> : vector<8x24xf32>
    %100 = tpu.matmul %16, %99, %cst_72 {dimension_numbers = #tpu.dot_dimension_numbers<[1], [0], [0], [1], [0, 0, 1, 1], [], []>} : vector<8x7xf32>, vector<7x24xf32>, vector<8x24xf32> -> vector<8x24xf32>
    %101 = arith.addf %97, %100 : vector<8x24xf32>
    %c2_73 = arith.constant 2 : index
    %c0_74 = arith.constant 0 : index
    %c0_75 = arith.constant 0 : index
    %102 = vector.load %arg9[%c2_73, %c0_74, %c0_75] : memref<14x7x24xf32, #tpu.memory_space<vmem>>, vector<1x7x24xf32>
    %103 = vector.shape_cast %102 : vector<1x7x24xf32> to vector<7x24xf32>
    %cst_76 = arith.constant dense<0.000000e+00> : vector<8x24xf32>
    %104 = tpu.matmul %23, %103, %cst_76 {dimension_numbers = #tpu.dot_dimension_numbers<[1], [0], [0], [1], [0, 0, 1, 1], [], []>} : vector<8x7xf32>, vector<7x24xf32>, vector<8x24xf32> -> vector<8x24xf32>
    %105 = arith.addf %101, %104 : vector<8x24xf32>
    %c2_77 = arith.constant 2 : index
    %c0_78 = arith.constant 0 : index
    %c0_79 = arith.constant 0 : index
    %106 = vector.load %arg11[%c2_77, %c0_78, %c0_79] : memref<14x24x128xf32, #tpu.memory_space<vmem>>, vector<1x24x128xf32>
    %107 = vector.shape_cast %106 : vector<1x24x128xf32> to vector<24x128xf32>
    %cst_80 = arith.constant dense<0.000000e+00> : vector<8x128xf32>
    %108 = tpu.matmul %105, %107, %cst_80 {dimension_numbers = #tpu.dot_dimension_numbers<[1], [0], [0], [1], [0, 0, 1, 1], [], []>} : vector<8x24xf32>, vector<24x128xf32>, vector<8x128xf32> -> vector<8x128xf32>
    %109 = vector.extract_strided_slice %94 {offsets = [0, 0], sizes = [1, 128], strides = [1, 1]} : vector<4x128xf32> to vector<1x128xf32>
    %110 = vector.broadcast %109 : vector<1x128xf32> to vector<8x128xf32>
    %111 = arith.addf %108, %110 : vector<8x128xf32>
    %112 = math.tanh %111 : vector<8x128xf32>
    %c2_81 = arith.constant 2 : index
    %c0_82 = arith.constant 0 : index
    %c0_83 = arith.constant 0 : index
    %113 = vector.load %arg12[%c2_81, %c0_82, %c0_83] : memref<14x128x128xf32, #tpu.memory_space<vmem>>, vector<1x128x128xf32>
    %114 = vector.shape_cast %113 : vector<1x128x128xf32> to vector<128x128xf32>
    %cst_84 = arith.constant dense<0.000000e+00> : vector<8x128xf32>
    %115 = tpu.matmul %112, %114, %cst_84 {dimension_numbers = #tpu.dot_dimension_numbers<[1], [0], [0], [1], [0, 0, 1, 1], [], []>} : vector<8x128xf32>, vector<128x128xf32>, vector<8x128xf32> -> vector<8x128xf32>
    %116 = vector.extract_strided_slice %94 {offsets = [1, 0], sizes = [1, 128], strides = [1, 1]} : vector<4x128xf32> to vector<1x128xf32>
    %117 = vector.broadcast %116 : vector<1x128xf32> to vector<8x128xf32>
    %118 = arith.addf %115, %117 : vector<8x128xf32>
    %119 = math.tanh %118 : vector<8x128xf32>
    %120 = vector.extract_strided_slice %94 {offsets = [2, 0], sizes = [1, 128], strides = [1, 1]} : vector<4x128xf32> to vector<1x128xf32>
    %121 = vector.broadcast %120 : vector<1x128xf32> to vector<8x128xf32>
    %122 = arith.mulf %119, %121 : vector<8x128xf32>
    %123 = arith.addf %92, %122 : vector<8x128xf32>
    %124 = vector.extract_strided_slice %94 {offsets = [3, 0], sizes = [1, 128], strides = [1, 1]} : vector<4x128xf32> to vector<1x128xf32>
    %125 = vector.broadcast %124 : vector<1x128xf32> to vector<8x128xf32>
    %126 = arith.addf %123, %125 : vector<8x128xf32>
    %c3 = arith.constant 3 : index
    %c0_85 = arith.constant 0 : index
    %c0_86 = arith.constant 0 : index
    %127 = vector.load %arg10[%c3, %c0_85, %c0_86] : memref<14x4x128xf32, #tpu.memory_space<vmem>>, vector<1x4x128xf32>
    %128 = vector.shape_cast %127 : vector<1x4x128xf32> to vector<4x128xf32>
    %c3_87 = arith.constant 3 : index
    %c0_88 = arith.constant 0 : index
    %c0_89 = arith.constant 0 : index
    %129 = vector.load %arg7[%c3_87, %c0_88, %c0_89] : memref<14x55x24xf32, #tpu.memory_space<vmem>>, vector<1x55x24xf32>
    %130 = vector.shape_cast %129 : vector<1x55x24xf32> to vector<55x24xf32>
    %cst_90 = arith.constant dense<0.000000e+00> : vector<8x24xf32>
    %131 = tpu.matmul %9, %130, %cst_90 {dimension_numbers = #tpu.dot_dimension_numbers<[1], [0], [0], [1], [0, 0, 1, 1], [], []>} : vector<8x55xf32>, vector<55x24xf32>, vector<8x24xf32> -> vector<8x24xf32>
    %c3_91 = arith.constant 3 : index
    %c0_92 = arith.constant 0 : index
    %c0_93 = arith.constant 0 : index
    %132 = vector.load %arg8[%c3_91, %c0_92, %c0_93] : memref<14x7x24xf32, #tpu.memory_space<vmem>>, vector<1x7x24xf32>
    %133 = vector.shape_cast %132 : vector<1x7x24xf32> to vector<7x24xf32>
    %cst_94 = arith.constant dense<0.000000e+00> : vector<8x24xf32>
    %134 = tpu.matmul %16, %133, %cst_94 {dimension_numbers = #tpu.dot_dimension_numbers<[1], [0], [0], [1], [0, 0, 1, 1], [], []>} : vector<8x7xf32>, vector<7x24xf32>, vector<8x24xf32> -> vector<8x24xf32>
    %135 = arith.addf %131, %134 : vector<8x24xf32>
    %c3_95 = arith.constant 3 : index
    %c0_96 = arith.constant 0 : index
    %c0_97 = arith.constant 0 : index
    %136 = vector.load %arg9[%c3_95, %c0_96, %c0_97] : memref<14x7x24xf32, #tpu.memory_space<vmem>>, vector<1x7x24xf32>
    %137 = vector.shape_cast %136 : vector<1x7x24xf32> to vector<7x24xf32>
    %cst_98 = arith.constant dense<0.000000e+00> : vector<8x24xf32>
    %138 = tpu.matmul %23, %137, %cst_98 {dimension_numbers = #tpu.dot_dimension_numbers<[1], [0], [0], [1], [0, 0, 1, 1], [], []>} : vector<8x7xf32>, vector<7x24xf32>, vector<8x24xf32> -> vector<8x24xf32>
    %139 = arith.addf %135, %138 : vector<8x24xf32>
    %c3_99 = arith.constant 3 : index
    %c0_100 = arith.constant 0 : index
    %c0_101 = arith.constant 0 : index
    %140 = vector.load %arg11[%c3_99, %c0_100, %c0_101] : memref<14x24x128xf32, #tpu.memory_space<vmem>>, vector<1x24x128xf32>
    %141 = vector.shape_cast %140 : vector<1x24x128xf32> to vector<24x128xf32>
    %cst_102 = arith.constant dense<0.000000e+00> : vector<8x128xf32>
    %142 = tpu.matmul %139, %141, %cst_102 {dimension_numbers = #tpu.dot_dimension_numbers<[1], [0], [0], [1], [0, 0, 1, 1], [], []>} : vector<8x24xf32>, vector<24x128xf32>, vector<8x128xf32> -> vector<8x128xf32>
    %143 = vector.extract_strided_slice %128 {offsets = [0, 0], sizes = [1, 128], strides = [1, 1]} : vector<4x128xf32> to vector<1x128xf32>
    %144 = vector.broadcast %143 : vector<1x128xf32> to vector<8x128xf32>
    %145 = arith.addf %142, %144 : vector<8x128xf32>
    %146 = math.tanh %145 : vector<8x128xf32>
    %c3_103 = arith.constant 3 : index
    %c0_104 = arith.constant 0 : index
    %c0_105 = arith.constant 0 : index
    %147 = vector.load %arg12[%c3_103, %c0_104, %c0_105] : memref<14x128x128xf32, #tpu.memory_space<vmem>>, vector<1x128x128xf32>
    %148 = vector.shape_cast %147 : vector<1x128x128xf32> to vector<128x128xf32>
    %cst_106 = arith.constant dense<0.000000e+00> : vector<8x128xf32>
    %149 = tpu.matmul %146, %148, %cst_106 {dimension_numbers = #tpu.dot_dimension_numbers<[1], [0], [0], [1], [0, 0, 1, 1], [], []>} : vector<8x128xf32>, vector<128x128xf32>, vector<8x128xf32> -> vector<8x128xf32>
    %150 = vector.extract_strided_slice %128 {offsets = [1, 0], sizes = [1, 128], strides = [1, 1]} : vector<4x128xf32> to vector<1x128xf32>
    %151 = vector.broadcast %150 : vector<1x128xf32> to vector<8x128xf32>
    %152 = arith.addf %149, %151 : vector<8x128xf32>
    %153 = math.tanh %152 : vector<8x128xf32>
    %154 = vector.extract_strided_slice %128 {offsets = [2, 0], sizes = [1, 128], strides = [1, 1]} : vector<4x128xf32> to vector<1x128xf32>
    %155 = vector.broadcast %154 : vector<1x128xf32> to vector<8x128xf32>
    %156 = arith.mulf %153, %155 : vector<8x128xf32>
    %157 = arith.addf %126, %156 : vector<8x128xf32>
    %158 = vector.extract_strided_slice %128 {offsets = [3, 0], sizes = [1, 128], strides = [1, 1]} : vector<4x128xf32> to vector<1x128xf32>
    %159 = vector.broadcast %158 : vector<1x128xf32> to vector<8x128xf32>
    %160 = arith.addf %157, %159 : vector<8x128xf32>
    %c4 = arith.constant 4 : index
    %c0_107 = arith.constant 0 : index
    %c0_108 = arith.constant 0 : index
    %161 = vector.load %arg10[%c4, %c0_107, %c0_108] : memref<14x4x128xf32, #tpu.memory_space<vmem>>, vector<1x4x128xf32>
    %162 = vector.shape_cast %161 : vector<1x4x128xf32> to vector<4x128xf32>
    %c4_109 = arith.constant 4 : index
    %c0_110 = arith.constant 0 : index
    %c0_111 = arith.constant 0 : index
    %163 = vector.load %arg7[%c4_109, %c0_110, %c0_111] : memref<14x55x24xf32, #tpu.memory_space<vmem>>, vector<1x55x24xf32>
    %164 = vector.shape_cast %163 : vector<1x55x24xf32> to vector<55x24xf32>
    %cst_112 = arith.constant dense<0.000000e+00> : vector<8x24xf32>
    %165 = tpu.matmul %9, %164, %cst_112 {dimension_numbers = #tpu.dot_dimension_numbers<[1], [0], [0], [1], [0, 0, 1, 1], [], []>} : vector<8x55xf32>, vector<55x24xf32>, vector<8x24xf32> -> vector<8x24xf32>
    %c4_113 = arith.constant 4 : index
    %c0_114 = arith.constant 0 : index
    %c0_115 = arith.constant 0 : index
    %166 = vector.load %arg8[%c4_113, %c0_114, %c0_115] : memref<14x7x24xf32, #tpu.memory_space<vmem>>, vector<1x7x24xf32>
    %167 = vector.shape_cast %166 : vector<1x7x24xf32> to vector<7x24xf32>
    %cst_116 = arith.constant dense<0.000000e+00> : vector<8x24xf32>
    %168 = tpu.matmul %16, %167, %cst_116 {dimension_numbers = #tpu.dot_dimension_numbers<[1], [0], [0], [1], [0, 0, 1, 1], [], []>} : vector<8x7xf32>, vector<7x24xf32>, vector<8x24xf32> -> vector<8x24xf32>
    %169 = arith.addf %165, %168 : vector<8x24xf32>
    %c4_117 = arith.constant 4 : index
    %c0_118 = arith.constant 0 : index
    %c0_119 = arith.constant 0 : index
    %170 = vector.load %arg9[%c4_117, %c0_118, %c0_119] : memref<14x7x24xf32, #tpu.memory_space<vmem>>, vector<1x7x24xf32>
    %171 = vector.shape_cast %170 : vector<1x7x24xf32> to vector<7x24xf32>
    %cst_120 = arith.constant dense<0.000000e+00> : vector<8x24xf32>
    %172 = tpu.matmul %23, %171, %cst_120 {dimension_numbers = #tpu.dot_dimension_numbers<[1], [0], [0], [1], [0, 0, 1, 1], [], []>} : vector<8x7xf32>, vector<7x24xf32>, vector<8x24xf32> -> vector<8x24xf32>
    %173 = arith.addf %169, %172 : vector<8x24xf32>
    %c4_121 = arith.constant 4 : index
    %c0_122 = arith.constant 0 : index
    %c0_123 = arith.constant 0 : index
    %174 = vector.load %arg11[%c4_121, %c0_122, %c0_123] : memref<14x24x128xf32, #tpu.memory_space<vmem>>, vector<1x24x128xf32>
    %175 = vector.shape_cast %174 : vector<1x24x128xf32> to vector<24x128xf32>
    %cst_124 = arith.constant dense<0.000000e+00> : vector<8x128xf32>
    %176 = tpu.matmul %173, %175, %cst_124 {dimension_numbers = #tpu.dot_dimension_numbers<[1], [0], [0], [1], [0, 0, 1, 1], [], []>} : vector<8x24xf32>, vector<24x128xf32>, vector<8x128xf32> -> vector<8x128xf32>
    %177 = vector.extract_strided_slice %162 {offsets = [0, 0], sizes = [1, 128], strides = [1, 1]} : vector<4x128xf32> to vector<1x128xf32>
    %178 = vector.broadcast %177 : vector<1x128xf32> to vector<8x128xf32>
    %179 = arith.addf %176, %178 : vector<8x128xf32>
    %180 = math.tanh %179 : vector<8x128xf32>
    %c4_125 = arith.constant 4 : index
    %c0_126 = arith.constant 0 : index
    %c0_127 = arith.constant 0 : index
    %181 = vector.load %arg12[%c4_125, %c0_126, %c0_127] : memref<14x128x128xf32, #tpu.memory_space<vmem>>, vector<1x128x128xf32>
    %182 = vector.shape_cast %181 : vector<1x128x128xf32> to vector<128x128xf32>
    %cst_128 = arith.constant dense<0.000000e+00> : vector<8x128xf32>
    %183 = tpu.matmul %180, %182, %cst_128 {dimension_numbers = #tpu.dot_dimension_numbers<[1], [0], [0], [1], [0, 0, 1, 1], [], []>} : vector<8x128xf32>, vector<128x128xf32>, vector<8x128xf32> -> vector<8x128xf32>
    %184 = vector.extract_strided_slice %162 {offsets = [1, 0], sizes = [1, 128], strides = [1, 1]} : vector<4x128xf32> to vector<1x128xf32>
    %185 = vector.broadcast %184 : vector<1x128xf32> to vector<8x128xf32>
    %186 = arith.addf %183, %185 : vector<8x128xf32>
    %187 = math.tanh %186 : vector<8x128xf32>
    %188 = vector.extract_strided_slice %162 {offsets = [2, 0], sizes = [1, 128], strides = [1, 1]} : vector<4x128xf32> to vector<1x128xf32>
    %189 = vector.broadcast %188 : vector<1x128xf32> to vector<8x128xf32>
    %190 = arith.mulf %187, %189 : vector<8x128xf32>
    %191 = arith.addf %160, %190 : vector<8x128xf32>
    %192 = vector.extract_strided_slice %162 {offsets = [3, 0], sizes = [1, 128], strides = [1, 1]} : vector<4x128xf32> to vector<1x128xf32>
    %193 = vector.broadcast %192 : vector<1x128xf32> to vector<8x128xf32>
    %194 = arith.addf %191, %193 : vector<8x128xf32>
    %c5 = arith.constant 5 : index
    %c0_129 = arith.constant 0 : index
    %c0_130 = arith.constant 0 : index
    %195 = vector.load %arg10[%c5, %c0_129, %c0_130] : memref<14x4x128xf32, #tpu.memory_space<vmem>>, vector<1x4x128xf32>
    %196 = vector.shape_cast %195 : vector<1x4x128xf32> to vector<4x128xf32>
    %c5_131 = arith.constant 5 : index
    %c0_132 = arith.constant 0 : index
    %c0_133 = arith.constant 0 : index
    %197 = vector.load %arg7[%c5_131, %c0_132, %c0_133] : memref<14x55x24xf32, #tpu.memory_space<vmem>>, vector<1x55x24xf32>
    %198 = vector.shape_cast %197 : vector<1x55x24xf32> to vector<55x24xf32>
    %cst_134 = arith.constant dense<0.000000e+00> : vector<8x24xf32>
    %199 = tpu.matmul %9, %198, %cst_134 {dimension_numbers = #tpu.dot_dimension_numbers<[1], [0], [0], [1], [0, 0, 1, 1], [], []>} : vector<8x55xf32>, vector<55x24xf32>, vector<8x24xf32> -> vector<8x24xf32>
    %c5_135 = arith.constant 5 : index
    %c0_136 = arith.constant 0 : index
    %c0_137 = arith.constant 0 : index
    %200 = vector.load %arg8[%c5_135, %c0_136, %c0_137] : memref<14x7x24xf32, #tpu.memory_space<vmem>>, vector<1x7x24xf32>
    %201 = vector.shape_cast %200 : vector<1x7x24xf32> to vector<7x24xf32>
    %cst_138 = arith.constant dense<0.000000e+00> : vector<8x24xf32>
    %202 = tpu.matmul %16, %201, %cst_138 {dimension_numbers = #tpu.dot_dimension_numbers<[1], [0], [0], [1], [0, 0, 1, 1], [], []>} : vector<8x7xf32>, vector<7x24xf32>, vector<8x24xf32> -> vector<8x24xf32>
    %203 = arith.addf %199, %202 : vector<8x24xf32>
    %c5_139 = arith.constant 5 : index
    %c0_140 = arith.constant 0 : index
    %c0_141 = arith.constant 0 : index
    %204 = vector.load %arg9[%c5_139, %c0_140, %c0_141] : memref<14x7x24xf32, #tpu.memory_space<vmem>>, vector<1x7x24xf32>
    %205 = vector.shape_cast %204 : vector<1x7x24xf32> to vector<7x24xf32>
    %cst_142 = arith.constant dense<0.000000e+00> : vector<8x24xf32>
    %206 = tpu.matmul %23, %205, %cst_142 {dimension_numbers = #tpu.dot_dimension_numbers<[1], [0], [0], [1], [0, 0, 1, 1], [], []>} : vector<8x7xf32>, vector<7x24xf32>, vector<8x24xf32> -> vector<8x24xf32>
    %207 = arith.addf %203, %206 : vector<8x24xf32>
    %c5_143 = arith.constant 5 : index
    %c0_144 = arith.constant 0 : index
    %c0_145 = arith.constant 0 : index
    %208 = vector.load %arg11[%c5_143, %c0_144, %c0_145] : memref<14x24x128xf32, #tpu.memory_space<vmem>>, vector<1x24x128xf32>
    %209 = vector.shape_cast %208 : vector<1x24x128xf32> to vector<24x128xf32>
    %cst_146 = arith.constant dense<0.000000e+00> : vector<8x128xf32>
    %210 = tpu.matmul %207, %209, %cst_146 {dimension_numbers = #tpu.dot_dimension_numbers<[1], [0], [0], [1], [0, 0, 1, 1], [], []>} : vector<8x24xf32>, vector<24x128xf32>, vector<8x128xf32> -> vector<8x128xf32>
    %211 = vector.extract_strided_slice %196 {offsets = [0, 0], sizes = [1, 128], strides = [1, 1]} : vector<4x128xf32> to vector<1x128xf32>
    %212 = vector.broadcast %211 : vector<1x128xf32> to vector<8x128xf32>
    %213 = arith.addf %210, %212 : vector<8x128xf32>
    %214 = math.tanh %213 : vector<8x128xf32>
    %c5_147 = arith.constant 5 : index
    %c0_148 = arith.constant 0 : index
    %c0_149 = arith.constant 0 : index
    %215 = vector.load %arg12[%c5_147, %c0_148, %c0_149] : memref<14x128x128xf32, #tpu.memory_space<vmem>>, vector<1x128x128xf32>
    %216 = vector.shape_cast %215 : vector<1x128x128xf32> to vector<128x128xf32>
    %cst_150 = arith.constant dense<0.000000e+00> : vector<8x128xf32>
    %217 = tpu.matmul %214, %216, %cst_150 {dimension_numbers = #tpu.dot_dimension_numbers<[1], [0], [0], [1], [0, 0, 1, 1], [], []>} : vector<8x128xf32>, vector<128x128xf32>, vector<8x128xf32> -> vector<8x128xf32>
    %218 = vector.extract_strided_slice %196 {offsets = [1, 0], sizes = [1, 128], strides = [1, 1]} : vector<4x128xf32> to vector<1x128xf32>
    %219 = vector.broadcast %218 : vector<1x128xf32> to vector<8x128xf32>
    %220 = arith.addf %217, %219 : vector<8x128xf32>
    %221 = math.tanh %220 : vector<8x128xf32>
    %222 = vector.extract_strided_slice %196 {offsets = [2, 0], sizes = [1, 128], strides = [1, 1]} : vector<4x128xf32> to vector<1x128xf32>
    %223 = vector.broadcast %222 : vector<1x128xf32> to vector<8x128xf32>
    %224 = arith.mulf %221, %223 : vector<8x128xf32>
    %225 = arith.addf %194, %224 : vector<8x128xf32>
    %226 = vector.extract_strided_slice %196 {offsets = [3, 0], sizes = [1, 128], strides = [1, 1]} : vector<4x128xf32> to vector<1x128xf32>
    %227 = vector.broadcast %226 : vector<1x128xf32> to vector<8x128xf32>
    %228 = arith.addf %225, %227 : vector<8x128xf32>
    %c6 = arith.constant 6 : index
    %c0_151 = arith.constant 0 : index
    %c0_152 = arith.constant 0 : index
    %229 = vector.load %arg10[%c6, %c0_151, %c0_152] : memref<14x4x128xf32, #tpu.memory_space<vmem>>, vector<1x4x128xf32>
    %230 = vector.shape_cast %229 : vector<1x4x128xf32> to vector<4x128xf32>
    %c6_153 = arith.constant 6 : index
    %c0_154 = arith.constant 0 : index
    %c0_155 = arith.constant 0 : index
    %231 = vector.load %arg7[%c6_153, %c0_154, %c0_155] : memref<14x55x24xf32, #tpu.memory_space<vmem>>, vector<1x55x24xf32>
    %232 = vector.shape_cast %231 : vector<1x55x24xf32> to vector<55x24xf32>
    %cst_156 = arith.constant dense<0.000000e+00> : vector<8x24xf32>
    %233 = tpu.matmul %9, %232, %cst_156 {dimension_numbers = #tpu.dot_dimension_numbers<[1], [0], [0], [1], [0, 0, 1, 1], [], []>} : vector<8x55xf32>, vector<55x24xf32>, vector<8x24xf32> -> vector<8x24xf32>
    %c6_157 = arith.constant 6 : index
    %c0_158 = arith.constant 0 : index
    %c0_159 = arith.constant 0 : index
    %234 = vector.load %arg8[%c6_157, %c0_158, %c0_159] : memref<14x7x24xf32, #tpu.memory_space<vmem>>, vector<1x7x24xf32>
    %235 = vector.shape_cast %234 : vector<1x7x24xf32> to vector<7x24xf32>
    %cst_160 = arith.constant dense<0.000000e+00> : vector<8x24xf32>
    %236 = tpu.matmul %16, %235, %cst_160 {dimension_numbers = #tpu.dot_dimension_numbers<[1], [0], [0], [1], [0, 0, 1, 1], [], []>} : vector<8x7xf32>, vector<7x24xf32>, vector<8x24xf32> -> vector<8x24xf32>
    %237 = arith.addf %233, %236 : vector<8x24xf32>
    %c6_161 = arith.constant 6 : index
    %c0_162 = arith.constant 0 : index
    %c0_163 = arith.constant 0 : index
    %238 = vector.load %arg9[%c6_161, %c0_162, %c0_163] : memref<14x7x24xf32, #tpu.memory_space<vmem>>, vector<1x7x24xf32>
    %239 = vector.shape_cast %238 : vector<1x7x24xf32> to vector<7x24xf32>
    %cst_164 = arith.constant dense<0.000000e+00> : vector<8x24xf32>
    %240 = tpu.matmul %23, %239, %cst_164 {dimension_numbers = #tpu.dot_dimension_numbers<[1], [0], [0], [1], [0, 0, 1, 1], [], []>} : vector<8x7xf32>, vector<7x24xf32>, vector<8x24xf32> -> vector<8x24xf32>
    %241 = arith.addf %237, %240 : vector<8x24xf32>
    %c6_165 = arith.constant 6 : index
    %c0_166 = arith.constant 0 : index
    %c0_167 = arith.constant 0 : index
    %242 = vector.load %arg11[%c6_165, %c0_166, %c0_167] : memref<14x24x128xf32, #tpu.memory_space<vmem>>, vector<1x24x128xf32>
    %243 = vector.shape_cast %242 : vector<1x24x128xf32> to vector<24x128xf32>
    %cst_168 = arith.constant dense<0.000000e+00> : vector<8x128xf32>
    %244 = tpu.matmul %241, %243, %cst_168 {dimension_numbers = #tpu.dot_dimension_numbers<[1], [0], [0], [1], [0, 0, 1, 1], [], []>} : vector<8x24xf32>, vector<24x128xf32>, vector<8x128xf32> -> vector<8x128xf32>
    %245 = vector.extract_strided_slice %230 {offsets = [0, 0], sizes = [1, 128], strides = [1, 1]} : vector<4x128xf32> to vector<1x128xf32>
    %246 = vector.broadcast %245 : vector<1x128xf32> to vector<8x128xf32>
    %247 = arith.addf %244, %246 : vector<8x128xf32>
    %248 = math.tanh %247 : vector<8x128xf32>
    %c6_169 = arith.constant 6 : index
    %c0_170 = arith.constant 0 : index
    %c0_171 = arith.constant 0 : index
    %249 = vector.load %arg12[%c6_169, %c0_170, %c0_171] : memref<14x128x128xf32, #tpu.memory_space<vmem>>, vector<1x128x128xf32>
    %250 = vector.shape_cast %249 : vector<1x128x128xf32> to vector<128x128xf32>
    %cst_172 = arith.constant dense<0.000000e+00> : vector<8x128xf32>
    %251 = tpu.matmul %248, %250, %cst_172 {dimension_numbers = #tpu.dot_dimension_numbers<[1], [0], [0], [1], [0, 0, 1, 1], [], []>} : vector<8x128xf32>, vector<128x128xf32>, vector<8x128xf32> -> vector<8x128xf32>
    %252 = vector.extract_strided_slice %230 {offsets = [1, 0], sizes = [1, 128], strides = [1, 1]} : vector<4x128xf32> to vector<1x128xf32>
    %253 = vector.broadcast %252 : vector<1x128xf32> to vector<8x128xf32>
    %254 = arith.addf %251, %253 : vector<8x128xf32>
    %255 = math.tanh %254 : vector<8x128xf32>
    %256 = vector.extract_strided_slice %230 {offsets = [2, 0], sizes = [1, 128], strides = [1, 1]} : vector<4x128xf32> to vector<1x128xf32>
    %257 = vector.broadcast %256 : vector<1x128xf32> to vector<8x128xf32>
    %258 = arith.mulf %255, %257 : vector<8x128xf32>
    %259 = arith.addf %228, %258 : vector<8x128xf32>
    %260 = vector.extract_strided_slice %230 {offsets = [3, 0], sizes = [1, 128], strides = [1, 1]} : vector<4x128xf32> to vector<1x128xf32>
    %261 = vector.broadcast %260 : vector<1x128xf32> to vector<8x128xf32>
    %262 = arith.addf %259, %261 : vector<8x128xf32>
    %c7 = arith.constant 7 : index
    %c0_173 = arith.constant 0 : index
    %c0_174 = arith.constant 0 : index
    %263 = vector.load %arg10[%c7, %c0_173, %c0_174] : memref<14x4x128xf32, #tpu.memory_space<vmem>>, vector<1x4x128xf32>
    %264 = vector.shape_cast %263 : vector<1x4x128xf32> to vector<4x128xf32>
    %c7_175 = arith.constant 7 : index
    %c0_176 = arith.constant 0 : index
    %c0_177 = arith.constant 0 : index
    %265 = vector.load %arg7[%c7_175, %c0_176, %c0_177] : memref<14x55x24xf32, #tpu.memory_space<vmem>>, vector<1x55x24xf32>
    %266 = vector.shape_cast %265 : vector<1x55x24xf32> to vector<55x24xf32>
    %cst_178 = arith.constant dense<0.000000e+00> : vector<8x24xf32>
    %267 = tpu.matmul %9, %266, %cst_178 {dimension_numbers = #tpu.dot_dimension_numbers<[1], [0], [0], [1], [0, 0, 1, 1], [], []>} : vector<8x55xf32>, vector<55x24xf32>, vector<8x24xf32> -> vector<8x24xf32>
    %c7_179 = arith.constant 7 : index
    %c0_180 = arith.constant 0 : index
    %c0_181 = arith.constant 0 : index
    %268 = vector.load %arg8[%c7_179, %c0_180, %c0_181] : memref<14x7x24xf32, #tpu.memory_space<vmem>>, vector<1x7x24xf32>
    %269 = vector.shape_cast %268 : vector<1x7x24xf32> to vector<7x24xf32>
    %cst_182 = arith.constant dense<0.000000e+00> : vector<8x24xf32>
    %270 = tpu.matmul %16, %269, %cst_182 {dimension_numbers = #tpu.dot_dimension_numbers<[1], [0], [0], [1], [0, 0, 1, 1], [], []>} : vector<8x7xf32>, vector<7x24xf32>, vector<8x24xf32> -> vector<8x24xf32>
    %271 = arith.addf %267, %270 : vector<8x24xf32>
    %c7_183 = arith.constant 7 : index
    %c0_184 = arith.constant 0 : index
    %c0_185 = arith.constant 0 : index
    %272 = vector.load %arg9[%c7_183, %c0_184, %c0_185] : memref<14x7x24xf32, #tpu.memory_space<vmem>>, vector<1x7x24xf32>
    %273 = vector.shape_cast %272 : vector<1x7x24xf32> to vector<7x24xf32>
    %cst_186 = arith.constant dense<0.000000e+00> : vector<8x24xf32>
    %274 = tpu.matmul %23, %273, %cst_186 {dimension_numbers = #tpu.dot_dimension_numbers<[1], [0], [0], [1], [0, 0, 1, 1], [], []>} : vector<8x7xf32>, vector<7x24xf32>, vector<8x24xf32> -> vector<8x24xf32>
    %275 = arith.addf %271, %274 : vector<8x24xf32>
    %c7_187 = arith.constant 7 : index
    %c0_188 = arith.constant 0 : index
    %c0_189 = arith.constant 0 : index
    %276 = vector.load %arg11[%c7_187, %c0_188, %c0_189] : memref<14x24x128xf32, #tpu.memory_space<vmem>>, vector<1x24x128xf32>
    %277 = vector.shape_cast %276 : vector<1x24x128xf32> to vector<24x128xf32>
    %cst_190 = arith.constant dense<0.000000e+00> : vector<8x128xf32>
    %278 = tpu.matmul %275, %277, %cst_190 {dimension_numbers = #tpu.dot_dimension_numbers<[1], [0], [0], [1], [0, 0, 1, 1], [], []>} : vector<8x24xf32>, vector<24x128xf32>, vector<8x128xf32> -> vector<8x128xf32>
    %279 = vector.extract_strided_slice %264 {offsets = [0, 0], sizes = [1, 128], strides = [1, 1]} : vector<4x128xf32> to vector<1x128xf32>
    %280 = vector.broadcast %279 : vector<1x128xf32> to vector<8x128xf32>
    %281 = arith.addf %278, %280 : vector<8x128xf32>
    %282 = math.tanh %281 : vector<8x128xf32>
    %c7_191 = arith.constant 7 : index
    %c0_192 = arith.constant 0 : index
    %c0_193 = arith.constant 0 : index
    %283 = vector.load %arg12[%c7_191, %c0_192, %c0_193] : memref<14x128x128xf32, #tpu.memory_space<vmem>>, vector<1x128x128xf32>
    %284 = vector.shape_cast %283 : vector<1x128x128xf32> to vector<128x128xf32>
    %cst_194 = arith.constant dense<0.000000e+00> : vector<8x128xf32>
    %285 = tpu.matmul %282, %284, %cst_194 {dimension_numbers = #tpu.dot_dimension_numbers<[1], [0], [0], [1], [0, 0, 1, 1], [], []>} : vector<8x128xf32>, vector<128x128xf32>, vector<8x128xf32> -> vector<8x128xf32>
    %286 = vector.extract_strided_slice %264 {offsets = [1, 0], sizes = [1, 128], strides = [1, 1]} : vector<4x128xf32> to vector<1x128xf32>
    %287 = vector.broadcast %286 : vector<1x128xf32> to vector<8x128xf32>
    %288 = arith.addf %285, %287 : vector<8x128xf32>
    %289 = math.tanh %288 : vector<8x128xf32>
    %290 = vector.extract_strided_slice %264 {offsets = [2, 0], sizes = [1, 128], strides = [1, 1]} : vector<4x128xf32> to vector<1x128xf32>
    %291 = vector.broadcast %290 : vector<1x128xf32> to vector<8x128xf32>
    %292 = arith.mulf %289, %291 : vector<8x128xf32>
    %293 = arith.addf %262, %292 : vector<8x128xf32>
    %294 = vector.extract_strided_slice %264 {offsets = [3, 0], sizes = [1, 128], strides = [1, 1]} : vector<4x128xf32> to vector<1x128xf32>
    %295 = vector.broadcast %294 : vector<1x128xf32> to vector<8x128xf32>
    %296 = arith.addf %293, %295 : vector<8x128xf32>
    %c8 = arith.constant 8 : index
    %c0_195 = arith.constant 0 : index
    %c0_196 = arith.constant 0 : index
    %297 = vector.load %arg10[%c8, %c0_195, %c0_196] : memref<14x4x128xf32, #tpu.memory_space<vmem>>, vector<1x4x128xf32>
    %298 = vector.shape_cast %297 : vector<1x4x128xf32> to vector<4x128xf32>
    %c8_197 = arith.constant 8 : index
    %c0_198 = arith.constant 0 : index
    %c0_199 = arith.constant 0 : index
    %299 = vector.load %arg7[%c8_197, %c0_198, %c0_199] : memref<14x55x24xf32, #tpu.memory_space<vmem>>, vector<1x55x24xf32>
    %300 = vector.shape_cast %299 : vector<1x55x24xf32> to vector<55x24xf32>
    %cst_200 = arith.constant dense<0.000000e+00> : vector<8x24xf32>
    %301 = tpu.matmul %9, %300, %cst_200 {dimension_numbers = #tpu.dot_dimension_numbers<[1], [0], [0], [1], [0, 0, 1, 1], [], []>} : vector<8x55xf32>, vector<55x24xf32>, vector<8x24xf32> -> vector<8x24xf32>
    %c8_201 = arith.constant 8 : index
    %c0_202 = arith.constant 0 : index
    %c0_203 = arith.constant 0 : index
    %302 = vector.load %arg8[%c8_201, %c0_202, %c0_203] : memref<14x7x24xf32, #tpu.memory_space<vmem>>, vector<1x7x24xf32>
    %303 = vector.shape_cast %302 : vector<1x7x24xf32> to vector<7x24xf32>
    %cst_204 = arith.constant dense<0.000000e+00> : vector<8x24xf32>
    %304 = tpu.matmul %16, %303, %cst_204 {dimension_numbers = #tpu.dot_dimension_numbers<[1], [0], [0], [1], [0, 0, 1, 1], [], []>} : vector<8x7xf32>, vector<7x24xf32>, vector<8x24xf32> -> vector<8x24xf32>
    %305 = arith.addf %301, %304 : vector<8x24xf32>
    %c8_205 = arith.constant 8 : index
    %c0_206 = arith.constant 0 : index
    %c0_207 = arith.constant 0 : index
    %306 = vector.load %arg9[%c8_205, %c0_206, %c0_207] : memref<14x7x24xf32, #tpu.memory_space<vmem>>, vector<1x7x24xf32>
    %307 = vector.shape_cast %306 : vector<1x7x24xf32> to vector<7x24xf32>
    %cst_208 = arith.constant dense<0.000000e+00> : vector<8x24xf32>
    %308 = tpu.matmul %23, %307, %cst_208 {dimension_numbers = #tpu.dot_dimension_numbers<[1], [0], [0], [1], [0, 0, 1, 1], [], []>} : vector<8x7xf32>, vector<7x24xf32>, vector<8x24xf32> -> vector<8x24xf32>
    %309 = arith.addf %305, %308 : vector<8x24xf32>
    %c8_209 = arith.constant 8 : index
    %c0_210 = arith.constant 0 : index
    %c0_211 = arith.constant 0 : index
    %310 = vector.load %arg11[%c8_209, %c0_210, %c0_211] : memref<14x24x128xf32, #tpu.memory_space<vmem>>, vector<1x24x128xf32>
    %311 = vector.shape_cast %310 : vector<1x24x128xf32> to vector<24x128xf32>
    %cst_212 = arith.constant dense<0.000000e+00> : vector<8x128xf32>
    %312 = tpu.matmul %309, %311, %cst_212 {dimension_numbers = #tpu.dot_dimension_numbers<[1], [0], [0], [1], [0, 0, 1, 1], [], []>} : vector<8x24xf32>, vector<24x128xf32>, vector<8x128xf32> -> vector<8x128xf32>
    %313 = vector.extract_strided_slice %298 {offsets = [0, 0], sizes = [1, 128], strides = [1, 1]} : vector<4x128xf32> to vector<1x128xf32>
    %314 = vector.broadcast %313 : vector<1x128xf32> to vector<8x128xf32>
    %315 = arith.addf %312, %314 : vector<8x128xf32>
    %316 = math.tanh %315 : vector<8x128xf32>
    %c8_213 = arith.constant 8 : index
    %c0_214 = arith.constant 0 : index
    %c0_215 = arith.constant 0 : index
    %317 = vector.load %arg12[%c8_213, %c0_214, %c0_215] : memref<14x128x128xf32, #tpu.memory_space<vmem>>, vector<1x128x128xf32>
    %318 = vector.shape_cast %317 : vector<1x128x128xf32> to vector<128x128xf32>
    %cst_216 = arith.constant dense<0.000000e+00> : vector<8x128xf32>
    %319 = tpu.matmul %316, %318, %cst_216 {dimension_numbers = #tpu.dot_dimension_numbers<[1], [0], [0], [1], [0, 0, 1, 1], [], []>} : vector<8x128xf32>, vector<128x128xf32>, vector<8x128xf32> -> vector<8x128xf32>
    %320 = vector.extract_strided_slice %298 {offsets = [1, 0], sizes = [1, 128], strides = [1, 1]} : vector<4x128xf32> to vector<1x128xf32>
    %321 = vector.broadcast %320 : vector<1x128xf32> to vector<8x128xf32>
    %322 = arith.addf %319, %321 : vector<8x128xf32>
    %323 = math.tanh %322 : vector<8x128xf32>
    %324 = vector.extract_strided_slice %298 {offsets = [2, 0], sizes = [1, 128], strides = [1, 1]} : vector<4x128xf32> to vector<1x128xf32>
    %325 = vector.broadcast %324 : vector<1x128xf32> to vector<8x128xf32>
    %326 = arith.mulf %323, %325 : vector<8x128xf32>
    %327 = arith.addf %296, %326 : vector<8x128xf32>
    %328 = vector.extract_strided_slice %298 {offsets = [3, 0], sizes = [1, 128], strides = [1, 1]} : vector<4x128xf32> to vector<1x128xf32>
    %329 = vector.broadcast %328 : vector<1x128xf32> to vector<8x128xf32>
    %330 = arith.addf %327, %329 : vector<8x128xf32>
    %c9 = arith.constant 9 : index
    %c0_217 = arith.constant 0 : index
    %c0_218 = arith.constant 0 : index
    %331 = vector.load %arg10[%c9, %c0_217, %c0_218] : memref<14x4x128xf32, #tpu.memory_space<vmem>>, vector<1x4x128xf32>
    %332 = vector.shape_cast %331 : vector<1x4x128xf32> to vector<4x128xf32>
    %c9_219 = arith.constant 9 : index
    %c0_220 = arith.constant 0 : index
    %c0_221 = arith.constant 0 : index
    %333 = vector.load %arg7[%c9_219, %c0_220, %c0_221] : memref<14x55x24xf32, #tpu.memory_space<vmem>>, vector<1x55x24xf32>
    %334 = vector.shape_cast %333 : vector<1x55x24xf32> to vector<55x24xf32>
    %cst_222 = arith.constant dense<0.000000e+00> : vector<8x24xf32>
    %335 = tpu.matmul %9, %334, %cst_222 {dimension_numbers = #tpu.dot_dimension_numbers<[1], [0], [0], [1], [0, 0, 1, 1], [], []>} : vector<8x55xf32>, vector<55x24xf32>, vector<8x24xf32> -> vector<8x24xf32>
    %c9_223 = arith.constant 9 : index
    %c0_224 = arith.constant 0 : index
    %c0_225 = arith.constant 0 : index
    %336 = vector.load %arg8[%c9_223, %c0_224, %c0_225] : memref<14x7x24xf32, #tpu.memory_space<vmem>>, vector<1x7x24xf32>
    %337 = vector.shape_cast %336 : vector<1x7x24xf32> to vector<7x24xf32>
    %cst_226 = arith.constant dense<0.000000e+00> : vector<8x24xf32>
    %338 = tpu.matmul %16, %337, %cst_226 {dimension_numbers = #tpu.dot_dimension_numbers<[1], [0], [0], [1], [0, 0, 1, 1], [], []>} : vector<8x7xf32>, vector<7x24xf32>, vector<8x24xf32> -> vector<8x24xf32>
    %339 = arith.addf %335, %338 : vector<8x24xf32>
    %c9_227 = arith.constant 9 : index
    %c0_228 = arith.constant 0 : index
    %c0_229 = arith.constant 0 : index
    %340 = vector.load %arg9[%c9_227, %c0_228, %c0_229] : memref<14x7x24xf32, #tpu.memory_space<vmem>>, vector<1x7x24xf32>
    %341 = vector.shape_cast %340 : vector<1x7x24xf32> to vector<7x24xf32>
    %cst_230 = arith.constant dense<0.000000e+00> : vector<8x24xf32>
    %342 = tpu.matmul %23, %341, %cst_230 {dimension_numbers = #tpu.dot_dimension_numbers<[1], [0], [0], [1], [0, 0, 1, 1], [], []>} : vector<8x7xf32>, vector<7x24xf32>, vector<8x24xf32> -> vector<8x24xf32>
    %343 = arith.addf %339, %342 : vector<8x24xf32>
    %c9_231 = arith.constant 9 : index
    %c0_232 = arith.constant 0 : index
    %c0_233 = arith.constant 0 : index
    %344 = vector.load %arg11[%c9_231, %c0_232, %c0_233] : memref<14x24x128xf32, #tpu.memory_space<vmem>>, vector<1x24x128xf32>
    %345 = vector.shape_cast %344 : vector<1x24x128xf32> to vector<24x128xf32>
    %cst_234 = arith.constant dense<0.000000e+00> : vector<8x128xf32>
    %346 = tpu.matmul %343, %345, %cst_234 {dimension_numbers = #tpu.dot_dimension_numbers<[1], [0], [0], [1], [0, 0, 1, 1], [], []>} : vector<8x24xf32>, vector<24x128xf32>, vector<8x128xf32> -> vector<8x128xf32>
    %347 = vector.extract_strided_slice %332 {offsets = [0, 0], sizes = [1, 128], strides = [1, 1]} : vector<4x128xf32> to vector<1x128xf32>
    %348 = vector.broadcast %347 : vector<1x128xf32> to vector<8x128xf32>
    %349 = arith.addf %346, %348 : vector<8x128xf32>
    %350 = math.tanh %349 : vector<8x128xf32>
    %c9_235 = arith.constant 9 : index
    %c0_236 = arith.constant 0 : index
    %c0_237 = arith.constant 0 : index
    %351 = vector.load %arg12[%c9_235, %c0_236, %c0_237] : memref<14x128x128xf32, #tpu.memory_space<vmem>>, vector<1x128x128xf32>
    %352 = vector.shape_cast %351 : vector<1x128x128xf32> to vector<128x128xf32>
    %cst_238 = arith.constant dense<0.000000e+00> : vector<8x128xf32>
    %353 = tpu.matmul %350, %352, %cst_238 {dimension_numbers = #tpu.dot_dimension_numbers<[1], [0], [0], [1], [0, 0, 1, 1], [], []>} : vector<8x128xf32>, vector<128x128xf32>, vector<8x128xf32> -> vector<8x128xf32>
    %354 = vector.extract_strided_slice %332 {offsets = [1, 0], sizes = [1, 128], strides = [1, 1]} : vector<4x128xf32> to vector<1x128xf32>
    %355 = vector.broadcast %354 : vector<1x128xf32> to vector<8x128xf32>
    %356 = arith.addf %353, %355 : vector<8x128xf32>
    %357 = math.tanh %356 : vector<8x128xf32>
    %358 = vector.extract_strided_slice %332 {offsets = [2, 0], sizes = [1, 128], strides = [1, 1]} : vector<4x128xf32> to vector<1x128xf32>
    %359 = vector.broadcast %358 : vector<1x128xf32> to vector<8x128xf32>
    %360 = arith.mulf %357, %359 : vector<8x128xf32>
    %361 = arith.addf %330, %360 : vector<8x128xf32>
    %362 = vector.extract_strided_slice %332 {offsets = [3, 0], sizes = [1, 128], strides = [1, 1]} : vector<4x128xf32> to vector<1x128xf32>
    %363 = vector.broadcast %362 : vector<1x128xf32> to vector<8x128xf32>
    %364 = arith.addf %361, %363 : vector<8x128xf32>
    %c10 = arith.constant 10 : index
    %c0_239 = arith.constant 0 : index
    %c0_240 = arith.constant 0 : index
    %365 = vector.load %arg10[%c10, %c0_239, %c0_240] : memref<14x4x128xf32, #tpu.memory_space<vmem>>, vector<1x4x128xf32>
    %366 = vector.shape_cast %365 : vector<1x4x128xf32> to vector<4x128xf32>
    %c10_241 = arith.constant 10 : index
    %c0_242 = arith.constant 0 : index
    %c0_243 = arith.constant 0 : index
    %367 = vector.load %arg7[%c10_241, %c0_242, %c0_243] : memref<14x55x24xf32, #tpu.memory_space<vmem>>, vector<1x55x24xf32>
    %368 = vector.shape_cast %367 : vector<1x55x24xf32> to vector<55x24xf32>
    %cst_244 = arith.constant dense<0.000000e+00> : vector<8x24xf32>
    %369 = tpu.matmul %9, %368, %cst_244 {dimension_numbers = #tpu.dot_dimension_numbers<[1], [0], [0], [1], [0, 0, 1, 1], [], []>} : vector<8x55xf32>, vector<55x24xf32>, vector<8x24xf32> -> vector<8x24xf32>
    %c10_245 = arith.constant 10 : index
    %c0_246 = arith.constant 0 : index
    %c0_247 = arith.constant 0 : index
    %370 = vector.load %arg8[%c10_245, %c0_246, %c0_247] : memref<14x7x24xf32, #tpu.memory_space<vmem>>, vector<1x7x24xf32>
    %371 = vector.shape_cast %370 : vector<1x7x24xf32> to vector<7x24xf32>
    %cst_248 = arith.constant dense<0.000000e+00> : vector<8x24xf32>
    %372 = tpu.matmul %16, %371, %cst_248 {dimension_numbers = #tpu.dot_dimension_numbers<[1], [0], [0], [1], [0, 0, 1, 1], [], []>} : vector<8x7xf32>, vector<7x24xf32>, vector<8x24xf32> -> vector<8x24xf32>
    %373 = arith.addf %369, %372 : vector<8x24xf32>
    %c10_249 = arith.constant 10 : index
    %c0_250 = arith.constant 0 : index
    %c0_251 = arith.constant 0 : index
    %374 = vector.load %arg9[%c10_249, %c0_250, %c0_251] : memref<14x7x24xf32, #tpu.memory_space<vmem>>, vector<1x7x24xf32>
    %375 = vector.shape_cast %374 : vector<1x7x24xf32> to vector<7x24xf32>
    %cst_252 = arith.constant dense<0.000000e+00> : vector<8x24xf32>
    %376 = tpu.matmul %23, %375, %cst_252 {dimension_numbers = #tpu.dot_dimension_numbers<[1], [0], [0], [1], [0, 0, 1, 1], [], []>} : vector<8x7xf32>, vector<7x24xf32>, vector<8x24xf32> -> vector<8x24xf32>
    %377 = arith.addf %373, %376 : vector<8x24xf32>
    %c10_253 = arith.constant 10 : index
    %c0_254 = arith.constant 0 : index
    %c0_255 = arith.constant 0 : index
    %378 = vector.load %arg11[%c10_253, %c0_254, %c0_255] : memref<14x24x128xf32, #tpu.memory_space<vmem>>, vector<1x24x128xf32>
    %379 = vector.shape_cast %378 : vector<1x24x128xf32> to vector<24x128xf32>
    %cst_256 = arith.constant dense<0.000000e+00> : vector<8x128xf32>
    %380 = tpu.matmul %377, %379, %cst_256 {dimension_numbers = #tpu.dot_dimension_numbers<[1], [0], [0], [1], [0, 0, 1, 1], [], []>} : vector<8x24xf32>, vector<24x128xf32>, vector<8x128xf32> -> vector<8x128xf32>
    %381 = vector.extract_strided_slice %366 {offsets = [0, 0], sizes = [1, 128], strides = [1, 1]} : vector<4x128xf32> to vector<1x128xf32>
    %382 = vector.broadcast %381 : vector<1x128xf32> to vector<8x128xf32>
    %383 = arith.addf %380, %382 : vector<8x128xf32>
    %384 = math.tanh %383 : vector<8x128xf32>
    %c10_257 = arith.constant 10 : index
    %c0_258 = arith.constant 0 : index
    %c0_259 = arith.constant 0 : index
    %385 = vector.load %arg12[%c10_257, %c0_258, %c0_259] : memref<14x128x128xf32, #tpu.memory_space<vmem>>, vector<1x128x128xf32>
    %386 = vector.shape_cast %385 : vector<1x128x128xf32> to vector<128x128xf32>
    %cst_260 = arith.constant dense<0.000000e+00> : vector<8x128xf32>
    %387 = tpu.matmul %384, %386, %cst_260 {dimension_numbers = #tpu.dot_dimension_numbers<[1], [0], [0], [1], [0, 0, 1, 1], [], []>} : vector<8x128xf32>, vector<128x128xf32>, vector<8x128xf32> -> vector<8x128xf32>
    %388 = vector.extract_strided_slice %366 {offsets = [1, 0], sizes = [1, 128], strides = [1, 1]} : vector<4x128xf32> to vector<1x128xf32>
    %389 = vector.broadcast %388 : vector<1x128xf32> to vector<8x128xf32>
    %390 = arith.addf %387, %389 : vector<8x128xf32>
    %391 = math.tanh %390 : vector<8x128xf32>
    %392 = vector.extract_strided_slice %366 {offsets = [2, 0], sizes = [1, 128], strides = [1, 1]} : vector<4x128xf32> to vector<1x128xf32>
    %393 = vector.broadcast %392 : vector<1x128xf32> to vector<8x128xf32>
    %394 = arith.mulf %391, %393 : vector<8x128xf32>
    %395 = arith.addf %364, %394 : vector<8x128xf32>
    %396 = vector.extract_strided_slice %366 {offsets = [3, 0], sizes = [1, 128], strides = [1, 1]} : vector<4x128xf32> to vector<1x128xf32>
    %397 = vector.broadcast %396 : vector<1x128xf32> to vector<8x128xf32>
    %398 = arith.addf %395, %397 : vector<8x128xf32>
    %c11 = arith.constant 11 : index
    %c0_261 = arith.constant 0 : index
    %c0_262 = arith.constant 0 : index
    %399 = vector.load %arg10[%c11, %c0_261, %c0_262] : memref<14x4x128xf32, #tpu.memory_space<vmem>>, vector<1x4x128xf32>
    %400 = vector.shape_cast %399 : vector<1x4x128xf32> to vector<4x128xf32>
    %c11_263 = arith.constant 11 : index
    %c0_264 = arith.constant 0 : index
    %c0_265 = arith.constant 0 : index
    %401 = vector.load %arg7[%c11_263, %c0_264, %c0_265] : memref<14x55x24xf32, #tpu.memory_space<vmem>>, vector<1x55x24xf32>
    %402 = vector.shape_cast %401 : vector<1x55x24xf32> to vector<55x24xf32>
    %cst_266 = arith.constant dense<0.000000e+00> : vector<8x24xf32>
    %403 = tpu.matmul %9, %402, %cst_266 {dimension_numbers = #tpu.dot_dimension_numbers<[1], [0], [0], [1], [0, 0, 1, 1], [], []>} : vector<8x55xf32>, vector<55x24xf32>, vector<8x24xf32> -> vector<8x24xf32>
    %c11_267 = arith.constant 11 : index
    %c0_268 = arith.constant 0 : index
    %c0_269 = arith.constant 0 : index
    %404 = vector.load %arg8[%c11_267, %c0_268, %c0_269] : memref<14x7x24xf32, #tpu.memory_space<vmem>>, vector<1x7x24xf32>
    %405 = vector.shape_cast %404 : vector<1x7x24xf32> to vector<7x24xf32>
    %cst_270 = arith.constant dense<0.000000e+00> : vector<8x24xf32>
    %406 = tpu.matmul %16, %405, %cst_270 {dimension_numbers = #tpu.dot_dimension_numbers<[1], [0], [0], [1], [0, 0, 1, 1], [], []>} : vector<8x7xf32>, vector<7x24xf32>, vector<8x24xf32> -> vector<8x24xf32>
    %407 = arith.addf %403, %406 : vector<8x24xf32>
    %c11_271 = arith.constant 11 : index
    %c0_272 = arith.constant 0 : index
    %c0_273 = arith.constant 0 : index
    %408 = vector.load %arg9[%c11_271, %c0_272, %c0_273] : memref<14x7x24xf32, #tpu.memory_space<vmem>>, vector<1x7x24xf32>
    %409 = vector.shape_cast %408 : vector<1x7x24xf32> to vector<7x24xf32>
    %cst_274 = arith.constant dense<0.000000e+00> : vector<8x24xf32>
    %410 = tpu.matmul %23, %409, %cst_274 {dimension_numbers = #tpu.dot_dimension_numbers<[1], [0], [0], [1], [0, 0, 1, 1], [], []>} : vector<8x7xf32>, vector<7x24xf32>, vector<8x24xf32> -> vector<8x24xf32>
    %411 = arith.addf %407, %410 : vector<8x24xf32>
    %c11_275 = arith.constant 11 : index
    %c0_276 = arith.constant 0 : index
    %c0_277 = arith.constant 0 : index
    %412 = vector.load %arg11[%c11_275, %c0_276, %c0_277] : memref<14x24x128xf32, #tpu.memory_space<vmem>>, vector<1x24x128xf32>
    %413 = vector.shape_cast %412 : vector<1x24x128xf32> to vector<24x128xf32>
    %cst_278 = arith.constant dense<0.000000e+00> : vector<8x128xf32>
    %414 = tpu.matmul %411, %413, %cst_278 {dimension_numbers = #tpu.dot_dimension_numbers<[1], [0], [0], [1], [0, 0, 1, 1], [], []>} : vector<8x24xf32>, vector<24x128xf32>, vector<8x128xf32> -> vector<8x128xf32>
    %415 = vector.extract_strided_slice %400 {offsets = [0, 0], sizes = [1, 128], strides = [1, 1]} : vector<4x128xf32> to vector<1x128xf32>
    %416 = vector.broadcast %415 : vector<1x128xf32> to vector<8x128xf32>
    %417 = arith.addf %414, %416 : vector<8x128xf32>
    %418 = math.tanh %417 : vector<8x128xf32>
    %c11_279 = arith.constant 11 : index
    %c0_280 = arith.constant 0 : index
    %c0_281 = arith.constant 0 : index
    %419 = vector.load %arg12[%c11_279, %c0_280, %c0_281] : memref<14x128x128xf32, #tpu.memory_space<vmem>>, vector<1x128x128xf32>
    %420 = vector.shape_cast %419 : vector<1x128x128xf32> to vector<128x128xf32>
    %cst_282 = arith.constant dense<0.000000e+00> : vector<8x128xf32>
    %421 = tpu.matmul %418, %420, %cst_282 {dimension_numbers = #tpu.dot_dimension_numbers<[1], [0], [0], [1], [0, 0, 1, 1], [], []>} : vector<8x128xf32>, vector<128x128xf32>, vector<8x128xf32> -> vector<8x128xf32>
    %422 = vector.extract_strided_slice %400 {offsets = [1, 0], sizes = [1, 128], strides = [1, 1]} : vector<4x128xf32> to vector<1x128xf32>
    %423 = vector.broadcast %422 : vector<1x128xf32> to vector<8x128xf32>
    %424 = arith.addf %421, %423 : vector<8x128xf32>
    %425 = math.tanh %424 : vector<8x128xf32>
    %426 = vector.extract_strided_slice %400 {offsets = [2, 0], sizes = [1, 128], strides = [1, 1]} : vector<4x128xf32> to vector<1x128xf32>
    %427 = vector.broadcast %426 : vector<1x128xf32> to vector<8x128xf32>
    %428 = arith.mulf %425, %427 : vector<8x128xf32>
    %429 = arith.addf %398, %428 : vector<8x128xf32>
    %430 = vector.extract_strided_slice %400 {offsets = [3, 0], sizes = [1, 128], strides = [1, 1]} : vector<4x128xf32> to vector<1x128xf32>
    %431 = vector.broadcast %430 : vector<1x128xf32> to vector<8x128xf32>
    %432 = arith.addf %429, %431 : vector<8x128xf32>
    %c12 = arith.constant 12 : index
    %c0_283 = arith.constant 0 : index
    %c0_284 = arith.constant 0 : index
    %433 = vector.load %arg10[%c12, %c0_283, %c0_284] : memref<14x4x128xf32, #tpu.memory_space<vmem>>, vector<1x4x128xf32>
    %434 = vector.shape_cast %433 : vector<1x4x128xf32> to vector<4x128xf32>
    %c12_285 = arith.constant 12 : index
    %c0_286 = arith.constant 0 : index
    %c0_287 = arith.constant 0 : index
    %435 = vector.load %arg7[%c12_285, %c0_286, %c0_287] : memref<14x55x24xf32, #tpu.memory_space<vmem>>, vector<1x55x24xf32>
    %436 = vector.shape_cast %435 : vector<1x55x24xf32> to vector<55x24xf32>
    %cst_288 = arith.constant dense<0.000000e+00> : vector<8x24xf32>
    %437 = tpu.matmul %9, %436, %cst_288 {dimension_numbers = #tpu.dot_dimension_numbers<[1], [0], [0], [1], [0, 0, 1, 1], [], []>} : vector<8x55xf32>, vector<55x24xf32>, vector<8x24xf32> -> vector<8x24xf32>
    %c12_289 = arith.constant 12 : index
    %c0_290 = arith.constant 0 : index
    %c0_291 = arith.constant 0 : index
    %438 = vector.load %arg8[%c12_289, %c0_290, %c0_291] : memref<14x7x24xf32, #tpu.memory_space<vmem>>, vector<1x7x24xf32>
    %439 = vector.shape_cast %438 : vector<1x7x24xf32> to vector<7x24xf32>
    %cst_292 = arith.constant dense<0.000000e+00> : vector<8x24xf32>
    %440 = tpu.matmul %16, %439, %cst_292 {dimension_numbers = #tpu.dot_dimension_numbers<[1], [0], [0], [1], [0, 0, 1, 1], [], []>} : vector<8x7xf32>, vector<7x24xf32>, vector<8x24xf32> -> vector<8x24xf32>
    %441 = arith.addf %437, %440 : vector<8x24xf32>
    %c12_293 = arith.constant 12 : index
    %c0_294 = arith.constant 0 : index
    %c0_295 = arith.constant 0 : index
    %442 = vector.load %arg9[%c12_293, %c0_294, %c0_295] : memref<14x7x24xf32, #tpu.memory_space<vmem>>, vector<1x7x24xf32>
    %443 = vector.shape_cast %442 : vector<1x7x24xf32> to vector<7x24xf32>
    %cst_296 = arith.constant dense<0.000000e+00> : vector<8x24xf32>
    %444 = tpu.matmul %23, %443, %cst_296 {dimension_numbers = #tpu.dot_dimension_numbers<[1], [0], [0], [1], [0, 0, 1, 1], [], []>} : vector<8x7xf32>, vector<7x24xf32>, vector<8x24xf32> -> vector<8x24xf32>
    %445 = arith.addf %441, %444 : vector<8x24xf32>
    %c12_297 = arith.constant 12 : index
    %c0_298 = arith.constant 0 : index
    %c0_299 = arith.constant 0 : index
    %446 = vector.load %arg11[%c12_297, %c0_298, %c0_299] : memref<14x24x128xf32, #tpu.memory_space<vmem>>, vector<1x24x128xf32>
    %447 = vector.shape_cast %446 : vector<1x24x128xf32> to vector<24x128xf32>
    %cst_300 = arith.constant dense<0.000000e+00> : vector<8x128xf32>
    %448 = tpu.matmul %445, %447, %cst_300 {dimension_numbers = #tpu.dot_dimension_numbers<[1], [0], [0], [1], [0, 0, 1, 1], [], []>} : vector<8x24xf32>, vector<24x128xf32>, vector<8x128xf32> -> vector<8x128xf32>
    %449 = vector.extract_strided_slice %434 {offsets = [0, 0], sizes = [1, 128], strides = [1, 1]} : vector<4x128xf32> to vector<1x128xf32>
    %450 = vector.broadcast %449 : vector<1x128xf32> to vector<8x128xf32>
    %451 = arith.addf %448, %450 : vector<8x128xf32>
    %452 = math.tanh %451 : vector<8x128xf32>
    %c12_301 = arith.constant 12 : index
    %c0_302 = arith.constant 0 : index
    %c0_303 = arith.constant 0 : index
    %453 = vector.load %arg12[%c12_301, %c0_302, %c0_303] : memref<14x128x128xf32, #tpu.memory_space<vmem>>, vector<1x128x128xf32>
    %454 = vector.shape_cast %453 : vector<1x128x128xf32> to vector<128x128xf32>
    %cst_304 = arith.constant dense<0.000000e+00> : vector<8x128xf32>
    %455 = tpu.matmul %452, %454, %cst_304 {dimension_numbers = #tpu.dot_dimension_numbers<[1], [0], [0], [1], [0, 0, 1, 1], [], []>} : vector<8x128xf32>, vector<128x128xf32>, vector<8x128xf32> -> vector<8x128xf32>
    %456 = vector.extract_strided_slice %434 {offsets = [1, 0], sizes = [1, 128], strides = [1, 1]} : vector<4x128xf32> to vector<1x128xf32>
    %457 = vector.broadcast %456 : vector<1x128xf32> to vector<8x128xf32>
    %458 = arith.addf %455, %457 : vector<8x128xf32>
    %459 = math.tanh %458 : vector<8x128xf32>
    %460 = vector.extract_strided_slice %434 {offsets = [2, 0], sizes = [1, 128], strides = [1, 1]} : vector<4x128xf32> to vector<1x128xf32>
    %461 = vector.broadcast %460 : vector<1x128xf32> to vector<8x128xf32>
    %462 = arith.mulf %459, %461 : vector<8x128xf32>
    %463 = arith.addf %432, %462 : vector<8x128xf32>
    %464 = vector.extract_strided_slice %434 {offsets = [3, 0], sizes = [1, 128], strides = [1, 1]} : vector<4x128xf32> to vector<1x128xf32>
    %465 = vector.broadcast %464 : vector<1x128xf32> to vector<8x128xf32>
    %466 = arith.addf %463, %465 : vector<8x128xf32>
    %c13 = arith.constant 13 : index
    %c0_305 = arith.constant 0 : index
    %c0_306 = arith.constant 0 : index
    %467 = vector.load %arg10[%c13, %c0_305, %c0_306] : memref<14x4x128xf32, #tpu.memory_space<vmem>>, vector<1x4x128xf32>
    %468 = vector.shape_cast %467 : vector<1x4x128xf32> to vector<4x128xf32>
    %c13_307 = arith.constant 13 : index
    %c0_308 = arith.constant 0 : index
    %c0_309 = arith.constant 0 : index
    %469 = vector.load %arg7[%c13_307, %c0_308, %c0_309] : memref<14x55x24xf32, #tpu.memory_space<vmem>>, vector<1x55x24xf32>
    %470 = vector.shape_cast %469 : vector<1x55x24xf32> to vector<55x24xf32>
    %cst_310 = arith.constant dense<0.000000e+00> : vector<8x24xf32>
    %471 = tpu.matmul %9, %470, %cst_310 {dimension_numbers = #tpu.dot_dimension_numbers<[1], [0], [0], [1], [0, 0, 1, 1], [], []>} : vector<8x55xf32>, vector<55x24xf32>, vector<8x24xf32> -> vector<8x24xf32>
    %c13_311 = arith.constant 13 : index
    %c0_312 = arith.constant 0 : index
    %c0_313 = arith.constant 0 : index
    %472 = vector.load %arg8[%c13_311, %c0_312, %c0_313] : memref<14x7x24xf32, #tpu.memory_space<vmem>>, vector<1x7x24xf32>
    %473 = vector.shape_cast %472 : vector<1x7x24xf32> to vector<7x24xf32>
    %cst_314 = arith.constant dense<0.000000e+00> : vector<8x24xf32>
    %474 = tpu.matmul %16, %473, %cst_314 {dimension_numbers = #tpu.dot_dimension_numbers<[1], [0], [0], [1], [0, 0, 1, 1], [], []>} : vector<8x7xf32>, vector<7x24xf32>, vector<8x24xf32> -> vector<8x24xf32>
    %475 = arith.addf %471, %474 : vector<8x24xf32>
    %c13_315 = arith.constant 13 : index
    %c0_316 = arith.constant 0 : index
    %c0_317 = arith.constant 0 : index
    %476 = vector.load %arg9[%c13_315, %c0_316, %c0_317] : memref<14x7x24xf32, #tpu.memory_space<vmem>>, vector<1x7x24xf32>
    %477 = vector.shape_cast %476 : vector<1x7x24xf32> to vector<7x24xf32>
    %cst_318 = arith.constant dense<0.000000e+00> : vector<8x24xf32>
    %478 = tpu.matmul %23, %477, %cst_318 {dimension_numbers = #tpu.dot_dimension_numbers<[1], [0], [0], [1], [0, 0, 1, 1], [], []>} : vector<8x7xf32>, vector<7x24xf32>, vector<8x24xf32> -> vector<8x24xf32>
    %479 = arith.addf %475, %478 : vector<8x24xf32>
    %c13_319 = arith.constant 13 : index
    %c0_320 = arith.constant 0 : index
    %c0_321 = arith.constant 0 : index
    %480 = vector.load %arg11[%c13_319, %c0_320, %c0_321] : memref<14x24x128xf32, #tpu.memory_space<vmem>>, vector<1x24x128xf32>
    %481 = vector.shape_cast %480 : vector<1x24x128xf32> to vector<24x128xf32>
    %cst_322 = arith.constant dense<0.000000e+00> : vector<8x128xf32>
    %482 = tpu.matmul %479, %481, %cst_322 {dimension_numbers = #tpu.dot_dimension_numbers<[1], [0], [0], [1], [0, 0, 1, 1], [], []>} : vector<8x24xf32>, vector<24x128xf32>, vector<8x128xf32> -> vector<8x128xf32>
    %483 = vector.extract_strided_slice %468 {offsets = [0, 0], sizes = [1, 128], strides = [1, 1]} : vector<4x128xf32> to vector<1x128xf32>
    %484 = vector.broadcast %483 : vector<1x128xf32> to vector<8x128xf32>
    %485 = arith.addf %482, %484 : vector<8x128xf32>
    %486 = math.tanh %485 : vector<8x128xf32>
    %c13_323 = arith.constant 13 : index
    %c0_324 = arith.constant 0 : index
    %c0_325 = arith.constant 0 : index
    %487 = vector.load %arg12[%c13_323, %c0_324, %c0_325] : memref<14x128x128xf32, #tpu.memory_space<vmem>>, vector<1x128x128xf32>
    %488 = vector.shape_cast %487 : vector<1x128x128xf32> to vector<128x128xf32>
    %cst_326 = arith.constant dense<0.000000e+00> : vector<8x128xf32>
    %489 = tpu.matmul %486, %488, %cst_326 {dimension_numbers = #tpu.dot_dimension_numbers<[1], [0], [0], [1], [0, 0, 1, 1], [], []>} : vector<8x128xf32>, vector<128x128xf32>, vector<8x128xf32> -> vector<8x128xf32>
    %490 = vector.extract_strided_slice %468 {offsets = [1, 0], sizes = [1, 128], strides = [1, 1]} : vector<4x128xf32> to vector<1x128xf32>
    %491 = vector.broadcast %490 : vector<1x128xf32> to vector<8x128xf32>
    %492 = arith.addf %489, %491 : vector<8x128xf32>
    %493 = math.tanh %492 : vector<8x128xf32>
    %494 = vector.extract_strided_slice %468 {offsets = [2, 0], sizes = [1, 128], strides = [1, 1]} : vector<4x128xf32> to vector<1x128xf32>
    %495 = vector.broadcast %494 : vector<1x128xf32> to vector<8x128xf32>
    %496 = arith.mulf %493, %495 : vector<8x128xf32>
    %497 = arith.addf %466, %496 : vector<8x128xf32>
    %498 = vector.extract_strided_slice %468 {offsets = [3, 0], sizes = [1, 128], strides = [1, 1]} : vector<4x128xf32> to vector<1x128xf32>
    %499 = vector.broadcast %498 : vector<1x128xf32> to vector<8x128xf32>
    %500 = arith.addf %497, %499 : vector<8x128xf32>
    %c0_327 = arith.constant 0 : index
    %c0_328 = arith.constant 0 : index
    %501 = vector.load %arg14[%c0_327, %c0_328] : memref<8x128xf32, #tpu.memory_space<vmem>>, vector<8x128xf32>
    %502 = arith.addf %501, %500 : vector<8x128xf32>
    %c0_329 = arith.constant 0 : index
    %c0_330 = arith.constant 0 : index
    %503 = vector.load %arg14[%c0_329, %c0_330] : memref<8x128xf32, #tpu.memory_space<vmem>>, vector<8x128xf32>
    tpu.vector_store %arg14[%c0_329, %c0_330], %502 {strides = array<i32>} : memref<8x128xf32, #tpu.memory_space<vmem>>, vector<8x128xf32>,
    %c3_i32 = arith.constant 3 : i32
    %504 = arith.cmpi eq, %arg0, %c3_i32 : i32
    %505 = arith.extui %504 : i1 to i32
    %c0_i32_331 = arith.constant 0 : i32
    %506 = arith.cmpi ne, %505, %c0_i32_331 : i32
    scf.if %506 {
      %c0_332 = arith.constant 0 : index
      %c0_333 = arith.constant 0 : index
      %507 = vector.load %arg14[%c0_332, %c0_333] : memref<8x128xf32, #tpu.memory_space<vmem>>, vector<8x128xf32>
      %508 = vector.shape_cast %507 : vector<8x128xf32> to vector<1x8x128xf32>
      %cst_334 = arith.constant dense<0.000000e+00> : vector<1xf32>
      %509 = vector.multi_reduction <add>, %508, %cst_334 [1, 2] : vector<1x8x128xf32> to vector<1xf32>
      %510 = vector.shape_cast %509 : vector<1xf32> to vector<1x1x1xf32>
      %511 = vector.extract %510[0, 0, 0] : f32 from vector<1x1x1xf32>
      %c0_335 = arith.constant 0 : index
      %512 = memref.load %arg13[%c0_335] : memref<1xf32, #tpu.memory_space<smem>>
      memref.store %511, %arg13[%c0_335] : memref<1xf32, #tpu.memory_space<smem>>
    } else {
    }
    return
  }
  func.func @transform_0(%arg0: i32) -> (i32, i32) {
    %c0_i32 = arith.constant 0 : i32
    %c0_i32_0 = arith.constant 0 : i32
    %c0_i32_1 = arith.constant 0 : i32
    return %c0_i32, %c0_i32_0 : i32, i32
  }
  func.func @transform_1(%arg0: i32) -> (i32, i32) {
    %c0_i32 = arith.constant 0 : i32
    %c0_i32_0 = arith.constant 0 : i32
    %c0_i32_1 = arith.constant 0 : i32
    return %c0_i32, %c0_i32_0 : i32, i32
  }
  func.func @transform_2(%arg0: i32) -> (i32, i32) {
    %c0_i32 = arith.constant 0 : i32
    %c0_i32_0 = arith.constant 0 : i32
    %c0_i32_1 = arith.constant 0 : i32
    return %c0_i32, %c0_i32_0 : i32, i32
  }
  func.func @transform_3(%arg0: i32) -> (i32, i32) {
    %c0_i32 = arith.constant 0 : i32
    %c0_i32_0 = arith.constant 0 : i32
    %c0_i32_1 = arith.constant 0 : i32
    return %c0_i32, %c0_i32_0 : i32, i32
  }
  func.func @transform_4(%arg0: i32) -> (i32, i32) {
    %c0_i32 = arith.constant 0 : i32
    %c0_i32_0 = arith.constant 0 : i32
    %c0_i32_1 = arith.constant 0 : i32
    return %c0_i32, %c0_i32_0 : i32, i32
  }
  func.func @transform_5(%arg0: i32) -> (i32, i32) {
    %c0_i32 = arith.constant 0 : i32
    %c0_i32_0 = arith.constant 0 : i32
    %c0_i32_1 = arith.constant 0 : i32
    return %c0_i32, %c0_i32_0 : i32, i32
  }
  func.func @transform_6(%arg0: i32) -> (i32, i32, i32) {
    %c0_i32 = arith.constant 0 : i32
    %c0_i32_0 = arith.constant 0 : i32
    %c0_i32_1 = arith.constant 0 : i32
    return %arg0, %c0_i32, %c0_i32_0 : i32, i32, i32
  }
  func.func @transform_7(%arg0: i32) -> (i32, i32, i32) {
    %c0_i32 = arith.constant 0 : i32
    %c0_i32_0 = arith.constant 0 : i32
    %c0_i32_1 = arith.constant 0 : i32
    return %arg0, %c0_i32, %c0_i32_0 : i32, i32, i32
  }
  func.func @transform_8(%arg0: i32) -> (i32, i32, i32) {
    %c0_i32 = arith.constant 0 : i32
    %c0_i32_0 = arith.constant 0 : i32
    %c0_i32_1 = arith.constant 0 : i32
    return %arg0, %c0_i32, %c0_i32_0 : i32, i32, i32
  }
  func.func @transform_9(%arg0: i32) -> (i32, i32, i32) {
    %c0_i32 = arith.constant 0 : i32
    %c0_i32_0 = arith.constant 0 : i32
    %c0_i32_1 = arith.constant 0 : i32
    return %arg0, %c0_i32, %c0_i32_0 : i32, i32, i32
  }
  func.func @transform_10(%arg0: i32) -> (i32, i32, i32) {
    %c0_i32 = arith.constant 0 : i32
    %c0_i32_0 = arith.constant 0 : i32
    %c0_i32_1 = arith.constant 0 : i32
    return %arg0, %c0_i32, %c0_i32_0 : i32, i32, i32
  }
  func.func @transform_11(%arg0: i32) -> (i32, i32, i32) {
    %c0_i32 = arith.constant 0 : i32
    %c0_i32_0 = arith.constant 0 : i32
    %c0_i32_1 = arith.constant 0 : i32
    return %arg0, %c0_i32, %c0_i32_0 : i32, i32, i32
  }
  func.func @transform_12(%arg0: i32) -> i32 {
    %c0_i32 = arith.constant 0 : i32
    %c0_i32_0 = arith.constant 0 : i32
    return %c0_i32 : i32
  }
}

</mosaic_0001>

<llo_original>
// kernel: model4bd_forward.1
$region0: #{model4bd_forward.1}
  #allocation0 [shape = 'u32[]', space=smem, size = 0x4, offset = 0x4, fixed_abs, tag = 'smem constant byte address 0x4 - core index']
  #allocation1 [shape = 'u32[72,128]{1,0:T(1,128)}', space=vmem, size = 0x9000, scoped, tag = 'internal scratch']
  #allocation2 [shape = 'f32[8,128]{1,0:T(8,128)}', space=vmem, size = 0x1000, scoped, tag = 'scratch operand']
  %s0 = inlined_call_operand.hbm [shape: f32[2,55], index: 0, kind: input, shape index: {}]
  %s1 = inlined_call_operand.hbm [shape: f32[2,7], index: 1, kind: input, shape index: {}]
  %s2 = inlined_call_operand.hbm [shape: f32[2,7], index: 2, kind: input, shape index: {}]
  %s3 = inlined_call_operand.hbm [shape: f32[8,55], index: 3, kind: input, shape index: {}]
  %s4 = inlined_call_operand.hbm [shape: f32[8,7], index: 4, kind: input, shape index: {}]
  %s5 = inlined_call_operand.hbm [shape: f32[8,7], index: 5, kind: input, shape index: {}]
  %s6 = inlined_call_operand.vmem [shape: f32[56,55,24], index: 6, kind: input, shape index: {}]
  %s7 = inlined_call_operand.vmem [shape: f32[56,7,24], index: 7, kind: input, shape index: {}]
  %s8 = inlined_call_operand.vmem [shape: f32[56,7,24], index: 8, kind: input, shape index: {}]
  %s9 = inlined_call_operand.hbm [shape: f32[56,4,128], index: 9, kind: input, shape index: {}]
  %s10 = inlined_call_operand.hbm [shape: f32[56,24,128], index: 10, kind: input, shape index: {}]
  %s11 = inlined_call_operand.hbm [shape: f32[56,128,128], index: 11, kind: input, shape index: {}]
  %s12 = inlined_call_operand.hbm [shape: f32[1], index: 12, kind: output, shape index: {}]
  %s13 = sld [smem:[#allocation0]]
  $region125: #{model4bd_forward.1} parent=0
    _
  %s15 = ssub.s32 1, %s13
  %s16 = scalar_select 0, %s15, %s13
  $region1: #{model4bd_forward.1} parent=0
    #allocation3 [shape = 'u8[1024]{0}', space=vmem, size = 0x400, scoped, tag = 'input window, operand 0, single buffered']
    #allocation4 [shape = 's32[2]{0}', space=sflag, size = 0x8, scoped, tag = 'scoped memory for model4bd_forward.1']
    #allocation5 [shape = 's32[2]{0}', space=sflag, size = 0x8, scoped, tag = 'scoped memory for model4bd_forward.1']
    #allocation6 [shape = 'u8[1024]{0}', space=vmem, size = 0x400, scoped, tag = 'input window, operand 1, single buffered']
    #allocation7 [shape = 's32[1]{0}', space=sflag, size = 0x4, scoped, tag = 'scoped memory for model4bd_forward.1']
    #allocation8 [shape = 'u8[1024]{0}', space=vmem, size = 0x400, scoped, tag = 'input window, operand 2, single buffered']
    #allocation9 [shape = 'u8[4096]{0}', space=vmem, size = 0x1000, scoped, tag = 'input window, operand 3, single buffered']
    #allocation10 [shape = 's32[1]{0}', space=sflag, size = 0x4, scoped, tag = 'scoped memory for model4bd_forward.1']
    #allocation11 [shape = 'u8[4096]{0}', space=vmem, size = 0x1000, scoped, tag = 'input window, operand 4, single buffered']
    #allocation12 [shape = 'u8[4096]{0}', space=vmem, size = 0x1000, scoped, tag = 'input window, operand 5, single buffered']
    #allocation13 [shape = 's32[1]{0}', space=sflag, size = 0x4, scoped, tag = 'scoped memory for model4bd_forward.1']
    #allocation14 [shape = 'u8[57344]{0}', space=vmem, size = 0xe000, scoped, tag = 'input window, operand 9']
    #allocation15 [shape = 'u8[344064]{0}', space=vmem, size = 0x54000, scoped, tag = 'input window, operand 10']
    #allocation16 [shape = 'u8[1835008]{0}', space=vmem, size = 0x1c0000, scoped, tag = 'input window, operand 11']
    #allocation17 [shape = 'u8[512]{0}', space=smem, size = 0x200, scoped, tag = 'output window, operand 0, single buffered']
    %17 = vsyncpa [#allocation4], 0
    %18 = vsyncpa [#allocation7], 0
    %19 = vsyncpa [#allocation10], 0
    %20 = vsyncpa [#allocation13], 0
    %21 = vsyncpa [#allocation5], 0
    loop: start=0, step=1, limit=6
    $region2: #{model4bd_forward.1} parent=1 // loop_pre_header
      _
    $region3: #{model4bd_forward.1} parent=1 // loop_header
      %s23 = sphi 0, %s27
      %p24 = scmp.ge.s32.totalorder %s23, 6
      %s31 = sphi 0, %s31
      %s33 = sphi 0, %s31
      %s34 = sphi 0, %s33
      %s48 = sphi 0, %s34
      %s52 = sphi 0, %s52
      %s54 = sphi 0, %s52
      %s55 = sphi 0, %s54
      %s69 = sphi 0, %s55
      %s73 = sphi 0, %s73
      %s75 = sphi 0, %s73
      %s76 = sphi 0, %s75
      %s90 = sphi 0, %s76
      %s94 = sphi 0, %s94
      %s96 = sphi 0, %s94
      %s97 = sphi 0, %s96
      %s111 = sphi 0, %s97
      %s115 = sphi 0, %s115
      %s117 = sphi 0, %s115
      %s118 = sphi 0, %s117
      %s132 = sphi 0, %s118
      %s136 = sphi 0, %s136
      %s138 = sphi 0, %s136
      %s139 = sphi 0, %s138
      %s153 = sphi 0, %s139
      %s159 = sphi 0, %s161
      %s162 = sphi 0, %s159
      %s163 = sphi 0, %s162
      %s179 = sphi 0, %s163
      %s185 = sphi 0, %s187
      %s188 = sphi 0, %s185
      %s189 = sphi 0, %s188
      %s205 = sphi 0, %s189
      %s211 = sphi 0, %s213
      %s214 = sphi 0, %s211
      %s215 = sphi 0, %s214
      %s231 = sphi 0, %s215
      %s237 = sphi 0, %s239
      %s240 = sphi 0, %s237
      %s241 = sphi 0, %s240
      %s257 = sphi 0, %s241
      %s263 = sphi 0, %s265
      %s266 = sphi 0, %s263
      %s267 = sphi 0, %s266
      %s283 = sphi 0, %s267
      %s289 = sphi 0, %s291
      %s292 = sphi 0, %s289
      %s293 = sphi 0, %s292
      %s309 = sphi 0, %s293
      %s313 = sphi 0, %s313
      %s315 = sphi 0, %s313
      %s316 = sphi 0, %s315
      %s330 = sphi 0, %s316
    $region4: #{model4bd_forward.1} parent=1 // loop_header_branch
      %26 = sbr.rel (%p24) target = $region8
    $region5: #{model4bd_forward.1} parent=1 // loop_body
      %s28 = ssub.s32 %s23, 1
      %s29 = ssub.s32 %s23, 2
      %s30 = sadd.s32 %s23, 1
      %s32 = sadd.s32 %s31, 1
      %p35 = scmp.eq.s32.totalorder %s23, 3
      %p36 = scmp.ne.s32.totalorder %s31, %s33
      %p37 = scmp.eq.s32.totalorder %s23, 0
      %p38 = por %p36, %p37
      %p39 = scmp.ne.s32.totalorder %s31, %s33
      %p40 = scmp.eq.s32.totalorder %s28, 3
      %p41 = por %p39, %p40
      %p42 = scmp.ne.s32.totalorder %s33, %s34
      %p43 = scmp.eq.s32.totalorder %s28, 0
      %p44 = por %p42, %p43
      %p45 = scmp.ne.s32.totalorder %s33, %s34
      %p46 = scmp.eq.s32.totalorder %s29, 3
      %p47 = por %p45, %p46
      %p49 = scmp.ne.s32.totalorder %s34, %s48
      %p50 = scmp.eq.s32.totalorder %s29, 0
      %p51 = por %p49, %p50
      %s53 = sadd.s32 %s52, 1
      %p56 = scmp.eq.s32.totalorder %s23, 3
      %p57 = scmp.ne.s32.totalorder %s52, %s54
      %p58 = scmp.eq.s32.totalorder %s23, 0
      %p59 = por %p57, %p58
      %p60 = scmp.ne.s32.totalorder %s52, %s54
      %p61 = scmp.eq.s32.totalorder %s28, 3
      %p62 = por %p60, %p61
      %p63 = scmp.ne.s32.totalorder %s54, %s55
      %p64 = scmp.eq.s32.totalorder %s28, 0
      %p65 = por %p63, %p64
      %p66 = scmp.ne.s32.totalorder %s54, %s55
      %p67 = scmp.eq.s32.totalorder %s29, 3
      %p68 = por %p66, %p67
      %p70 = scmp.ne.s32.totalorder %s55, %s69
      %p71 = scmp.eq.s32.totalorder %s29, 0
      %p72 = por %p70, %p71
      %s74 = sadd.s32 %s73, 1
      %p77 = scmp.eq.s32.totalorder %s23, 3
      %p78 = scmp.ne.s32.totalorder %s73, %s75
      %p79 = scmp.eq.s32.totalorder %s23, 0
      %p80 = por %p78, %p79
      %p81 = scmp.ne.s32.totalorder %s73, %s75
      %p82 = scmp.eq.s32.totalorder %s28, 3
      %p83 = por %p81, %p82
      %p84 = scmp.ne.s32.totalorder %s75, %s76
      %p85 = scmp.eq.s32.totalorder %s28, 0
      %p86 = por %p84, %p85
      %p87 = scmp.ne.s32.totalorder %s75, %s76
      %p88 = scmp.eq.s32.totalorder %s29, 3
      %p89 = por %p87, %p88
      %p91 = scmp.ne.s32.totalorder %s76, %s90
      %p92 = scmp.eq.s32.totalorder %s29, 0
      %p93 = por %p91, %p92
      %s95 = sadd.s32 %s94, 1
      %p98 = scmp.eq.s32.totalorder %s23, 3
      %p99 = scmp.ne.s32.totalorder %s94, %s96
      %p100 = scmp.eq.s32.totalorder %s23, 0
      %p101 = por %p99, %p100
      %p102 = scmp.ne.s32.totalorder %s94, %s96
      %p103 = scmp.eq.s32.totalorder %s28, 3
      %p104 = por %p102, %p103
      %p105 = scmp.ne.s32.totalorder %s96, %s97
      %p106 = scmp.eq.s32.totalorder %s28, 0
      %p107 = por %p105, %p106
      %p108 = scmp.ne.s32.totalorder %s96, %s97
      %p109 = scmp.eq.s32.totalorder %s29, 3
      %p110 = por %p108, %p109
      %p112 = scmp.ne.s32.totalorder %s97, %s111
      %p113 = scmp.eq.s32.totalorder %s29, 0
      %p114 = por %p112, %p113
      %s116 = sadd.s32 %s115, 1
      %p119 = scmp.eq.s32.totalorder %s23, 3
      %p120 = scmp.ne.s32.totalorder %s115, %s117
      %p121 = scmp.eq.s32.totalorder %s23, 0
      %p122 = por %p120, %p121
      %p123 = scmp.ne.s32.totalorder %s115, %s117
      %p124 = scmp.eq.s32.totalorder %s28, 3
      %p125 = por %p123, %p124
      %p126 = scmp.ne.s32.totalorder %s117, %s118
      %p127 = scmp.eq.s32.totalorder %s28, 0
      %p128 = por %p126, %p127
      %p129 = scmp.ne.s32.totalorder %s117, %s118
      %p130 = scmp.eq.s32.totalorder %s29, 3
      %p131 = por %p129, %p130
      %p133 = scmp.ne.s32.totalorder %s118, %s132
      %p134 = scmp.eq.s32.totalorder %s29, 0
      %p135 = por %p133, %p134
      %s137 = sadd.s32 %s136, 1
      %p140 = scmp.eq.s32.totalorder %s23, 3
      %p141 = scmp.ne.s32.totalorder %s136, %s138
      %p142 = scmp.eq.s32.totalorder %s23, 0
      %p143 = por %p141, %p142
      %p144 = scmp.ne.s32.totalorder %s136, %s138
      %p145 = scmp.eq.s32.totalorder %s28, 3
      %p146 = por %p144, %p145
      %p147 = scmp.ne.s32.totalorder %s138, %s139
      %p148 = scmp.eq.s32.totalorder %s28, 0
      %p149 = por %p147, %p148
      %p150 = scmp.ne.s32.totalorder %s138, %s139
      %p151 = scmp.eq.s32.totalorder %s29, 3
      %p152 = por %p150, %p151
      %p154 = scmp.ne.s32.totalorder %s139, %s153
      %p155 = scmp.eq.s32.totalorder %s29, 0
      %p156 = por %p154, %p155
      %s157 = ssub.s32 %s23, %s30
      %p158 = scmp.eq.s32.totalorder %s157, 0
      %s160 = sadd.s32 %s159, 1
      %s161 = scalar_select %p158, %s159, %s160
      %p164 = pneg %p158
      %p165 = scmp.eq.s32.totalorder %s23, 3
      %p166 = por %p164, %p165
      %p167 = scmp.ne.s32.totalorder %s159, %s162
      %p168 = scmp.eq.s32.totalorder %s23, 0
      %p169 = por %p167, %p168
      %p170 = scmp.ne.s32.totalorder %s159, %s162
      %p171 = scmp.eq.s32.totalorder %s28, 3
      %p172 = por %p170, %p171
      %p173 = scmp.ne.s32.totalorder %s162, %s163
      %p174 = scmp.eq.s32.totalorder %s28, 0
      %p175 = por %p173, %p174
      %p176 = scmp.ne.s32.totalorder %s162, %s163
      %p177 = scmp.eq.s32.totalorder %s29, 3
      %p178 = por %p176, %p177
      %p180 = scmp.ne.s32.totalorder %s163, %s179
      %p181 = scmp.eq.s32.totalorder %s29, 0
      %p182 = por %p180, %p181
      %s183 = ssub.s32 %s23, %s30
      %p184 = scmp.eq.s32.totalorder %s183, 0
      %s186 = sadd.s32 %s185, 1
      %s187 = scalar_select %p184, %s185, %s186
      %p190 = pneg %p184
      %p191 = scmp.eq.s32.totalorder %s23, 3
      %p192 = por %p190, %p191
      %p193 = scmp.ne.s32.totalorder %s185, %s188
      %p194 = scmp.eq.s32.totalorder %s23, 0
      %p195 = por %p193, %p194
      %p196 = scmp.ne.s32.totalorder %s185, %s188
      %p197 = scmp.eq.s32.totalorder %s28, 3
      %p198 = por %p196, %p197
      %p199 = scmp.ne.s32.totalorder %s188, %s189
      %p200 = scmp.eq.s32.totalorder %s28, 0
      %p201 = por %p199, %p200
      %p202 = scmp.ne.s32.totalorder %s188, %s189
      %p203 = scmp.eq.s32.totalorder %s29, 3
      %p204 = por %p202, %p203
      %p206 = scmp.ne.s32.totalorder %s189, %s205
      %p207 = scmp.eq.s32.totalorder %s29, 0
      %p208 = por %p206, %p207
      %s209 = ssub.s32 %s23, %s30
      %p210 = scmp.eq.s32.totalorder %s209, 0
      %s212 = sadd.s32 %s211, 1
      %s213 = scalar_select %p210, %s211, %s212
      %p216 = pneg %p210
      %p217 = scmp.eq.s32.totalorder %s23, 3
      %p218 = por %p216, %p217
      %p219 = scmp.ne.s32.totalorder %s211, %s214
      %p220 = scmp.eq.s32.totalorder %s23, 0
      %p221 = por %p219, %p220
      %p222 = scmp.ne.s32.totalorder %s211, %s214
      %p223 = scmp.eq.s32.totalorder %s28, 3
      %p224 = por %p222, %p223
      %p225 = scmp.ne.s32.totalorder %s214, %s215
      %p226 = scmp.eq.s32.totalorder %s28, 0
      %p227 = por %p225, %p226
      %p228 = scmp.ne.s32.totalorder %s214, %s215
      %p229 = scmp.eq.s32.totalorder %s29, 3
      %p230 = por %p228, %p229
      %p232 = scmp.ne.s32.totalorder %s215, %s231
      %p233 = scmp.eq.s32.totalorder %s29, 0
      %p234 = por %p232, %p233
      %s235 = ssub.s32 %s23, %s30
      %p236 = scmp.eq.s32.totalorder %s235, 0
      %s238 = sadd.s32 %s237, 1
      %s239 = scalar_select %p236, %s237, %s238
      %p242 = pneg %p236
      %p243 = scmp.eq.s32.totalorder %s23, 3
      %p244 = por %p242, %p243
      %p245 = scmp.ne.s32.totalorder %s237, %s240
      %p246 = scmp.eq.s32.totalorder %s23, 0
      %p247 = por %p245, %p246
      %p248 = scmp.ne.s32.totalorder %s237, %s240
      %p249 = scmp.eq.s32.totalorder %s28, 3
      %p250 = por %p248, %p249
      %p251 = scmp.ne.s32.totalorder %s240, %s241
      %p252 = scmp.eq.s32.totalorder %s28, 0
      %p253 = por %p251, %p252
      %p254 = scmp.ne.s32.totalorder %s240, %s241
      %p255 = scmp.eq.s32.totalorder %s29, 3
      %p256 = por %p254, %p255
      %p258 = scmp.ne.s32.totalorder %s241, %s257
      %p259 = scmp.eq.s32.totalorder %s29, 0
      %p260 = por %p258, %p259
      %s261 = ssub.s32 %s23, %s30
      %p262 = scmp.eq.s32.totalorder %s261, 0
      %s264 = sadd.s32 %s263, 1
      %s265 = scalar_select %p262, %s263, %s264
      %p268 = pneg %p262
      %p269 = scmp.eq.s32.totalorder %s23, 3
      %p270 = por %p268, %p269
      %p271 = scmp.ne.s32.totalorder %s263, %s266
      %p272 = scmp.eq.s32.totalorder %s23, 0
      %p273 = por %p271, %p272
      %p274 = scmp.ne.s32.totalorder %s263, %s266
      %p275 = scmp.eq.s32.totalorder %s28, 3
      %p276 = por %p274, %p275
      %p277 = scmp.ne.s32.totalorder %s266, %s267
      %p278 = scmp.eq.s32.totalorder %s28, 0
      %p279 = por %p277, %p278
      %p280 = scmp.ne.s32.totalorder %s266, %s267
      %p281 = scmp.eq.s32.totalorder %s29, 3
      %p282 = por %p280, %p281
      %p284 = scmp.ne.s32.totalorder %s267, %s283
      %p285 = scmp.eq.s32.totalorder %s29, 0
      %p286 = por %p284, %p285
      %s287 = ssub.s32 %s23, %s30
      %p288 = scmp.eq.s32.totalorder %s287, 0
      %s290 = sadd.s32 %s289, 1
      %s291 = scalar_select %p288, %s289, %s290
      %p294 = pneg %p288
      %p295 = scmp.eq.s32.totalorder %s23, 3
      %p296 = por %p294, %p295
      %p297 = scmp.ne.s32.totalorder %s289, %s292
      %p298 = scmp.eq.s32.totalorder %s23, 0
      %p299 = por %p297, %p298
      %p300 = scmp.ne.s32.totalorder %s289, %s292
      %p301 = scmp.eq.s32.totalorder %s28, 3
      %p302 = por %p300, %p301
      %p303 = scmp.ne.s32.totalorder %s292, %s293
      %p304 = scmp.eq.s32.totalorder %s28, 0
      %p305 = por %p303, %p304
      %p306 = scmp.ne.s32.totalorder %s292, %s293
      %p307 = scmp.eq.s32.totalorder %s29, 3
      %p308 = por %p306, %p307
      %p310 = scmp.ne.s32.totalorder %s293, %s309
      %p311 = scmp.eq.s32.totalorder %s29, 0
      %p312 = por %p310, %p311
      %s314 = sadd.s32 %s313, 1
      %p317 = scmp.eq.s32.totalorder %s23, 3
      %p318 = scmp.ne.s32.totalorder %s313, %s315
      %p319 = scmp.eq.s32.totalorder %s23, 0
      %p320 = por %p318, %p319
      %p321 = scmp.ne.s32.totalorder %s313, %s315
      %p322 = scmp.eq.s32.totalorder %s28, 3
      %p323 = por %p321, %p322
      %p324 = scmp.ne.s32.totalorder %s315, %s316
      %p325 = scmp.eq.s32.totalorder %s28, 0
      %p326 = por %p324, %p325
      %p327 = scmp.ne.s32.totalorder %s315, %s316
      %p328 = scmp.eq.s32.totalorder %s29, 3
      %p329 = por %p327, %p328
      %p331 = scmp.ne.s32.totalorder %s316, %s330
      %p332 = scmp.eq.s32.totalorder %s29, 0
      %p333 = por %p331, %p332
      %p334 = scmp.le.s32.totalorder 1, %s23
      %p335 = scmp.lt.s32.totalorder %s23, 5
      %p336 = pnand %p334, %p335
      %p337 = pneg %p336
      // Predicated region
      $region9: #{model4bd_forward.1} parent=5 // pred_check
        _
      $region10: #{model4bd_forward.1} parent=5 // pred_check_branch
        %339 = sbr.rel (%p336) target = $region12
      $region11: #{model4bd_forward.1} parent=5 // pred_region
        %s340 = ssub.s32 %s23, 1
        // Predicated region
        $region13: #{model4bd_forward.1} parent=11 // pred_check
          %p341 = pneg %p44
        $region14: #{model4bd_forward.1} parent=11 // pred_check_branch
          %343 = sbr.rel (%p341) target = $region16
        $region15: #{model4bd_forward.1} parent=11 // pred_region
          %345 = vsyncadd [#allocation4], 0
          %s347 = sshll.u32 %s0, 4
          %s348 = int_to_ptr.hbm [resolvable:$true] %s347
          %s349 = sshll.u32 [#allocation3], 4
          %s350 = int_to_ptr.vmem [resolvable:$true] %s349
          %352 = dma.hbm_to_vmem [thread:$0]  %s348, 32, %s350, [#allocation4]
        $region16: #{model4bd_forward.1} parent=11 // pred_fallthru
          _
        // Predicated region
        $region17: #{model4bd_forward.1} parent=11 // pred_check
          %p353 = pneg %p65
        $region18: #{model4bd_forward.1} parent=11 // pred_check_branch
          %355 = sbr.rel (%p353) target = $region20
        $region19: #{model4bd_forward.1} parent=11 // pred_region
          %357 = vsyncadd [#allocation7], 0
          %s359 = sshll.u32 %s1, 4
          %s360 = int_to_ptr.hbm [resolvable:$true] %s359
          %s361 = sshll.u32 [#allocation6], 4
          %s362 = int_to_ptr.vmem [resolvable:$true] %s361
          %364 = dma.hbm_to_vmem [thread:$0]  %s360, 32, %s362, [#allocation7]
        $region20: #{model4bd_forward.1} parent=11 // pred_fallthru
          _
        // Predicated region
        $region21: #{model4bd_forward.1} parent=11 // pred_check
          %p365 = pneg %p86
        $region22: #{model4bd_forward.1} parent=11 // pred_check_branch
          %367 = sbr.rel (%p365) target = $region24
        $region23: #{model4bd_forward.1} parent=11 // pred_region
          %369 = vsyncadd [#allocation7], 0
          %s371 = sshll.u32 %s2, 4
          %s372 = int_to_ptr.hbm [resolvable:$true] %s371
          %s373 = sshll.u32 [#allocation8], 4
          %s374 = int_to_ptr.vmem [resolvable:$true] %s373
          %376 = dma.hbm_to_vmem [thread:$0]  %s372, 32, %s374, [#allocation7]
        $region24: #{model4bd_forward.1} parent=11 // pred_fallthru
          _
        // Predicated region
        $region25: #{model4bd_forward.1} parent=11 // pred_check
          %p377 = pneg %p107
        $region26: #{model4bd_forward.1} parent=11 // pred_check_branch
          %379 = sbr.rel (%p377) target = $region28
        $region27: #{model4bd_forward.1} parent=11 // pred_region
          %381 = vsyncadd [#allocation10], 0
          %s383 = sshll.u32 %s3, 4
          %s384 = int_to_ptr.hbm [resolvable:$true] %s383
          %s385 = sshll.u32 [#allocation9], 4
          %s386 = int_to_ptr.vmem [resolvable:$true] %s385
          %388 = dma.hbm_to_vmem [thread:$0]  %s384, 128, %s386, [#allocation10]
        $region28: #{model4bd_forward.1} parent=11 // pred_fallthru
          _
        // Predicated region
        $region29: #{model4bd_forward.1} parent=11 // pred_check
          %p389 = pneg %p128
        $region30: #{model4bd_forward.1} parent=11 // pred_check_branch
          %391 = sbr.rel (%p389) target = $region32
        $region31: #{model4bd_forward.1} parent=11 // pred_region
          %393 = vsyncadd [#allocation10], 0
          %s395 = sshll.u32 %s4, 4
          %s396 = int_to_ptr.hbm [resolvable:$true] %s395
          %s397 = sshll.u32 [#allocation11], 4
          %s398 = int_to_ptr.vmem [resolvable:$true] %s397
          %400 = dma.hbm_to_vmem [thread:$0]  %s396, 128, %s398, [#allocation10]
        $region32: #{model4bd_forward.1} parent=11 // pred_fallthru
          _
        // Predicated region
        $region33: #{model4bd_forward.1} parent=11 // pred_check
          %p401 = pneg %p149
        $region34: #{model4bd_forward.1} parent=11 // pred_check_branch
          %403 = sbr.rel (%p401) target = $region36
        $region35: #{model4bd_forward.1} parent=11 // pred_region
          %405 = vsyncadd [#allocation13], 0
          %s407 = sshll.u32 %s5, 4
          %s408 = int_to_ptr.hbm [resolvable:$true] %s407
          %s409 = sshll.u32 [#allocation12], 4
          %s410 = int_to_ptr.vmem [resolvable:$true] %s409
          %412 = dma.hbm_to_vmem [thread:$0]  %s408, 128, %s410, [#allocation13]
        $region36: #{model4bd_forward.1} parent=11 // pred_fallthru
          _
      $region12: #{model4bd_forward.1} parent=5 // pred_fallthru
        _
      %p413 = scmp.lt.s32.totalorder %s23, 4
      // Predicated region
      $region37: #{model4bd_forward.1} parent=5 // pred_check
        %p414 = pneg %p413
      $region38: #{model4bd_forward.1} parent=5 // pred_check_branch
        %416 = sbr.rel (%p414) target = $region40
      $region39: #{model4bd_forward.1} parent=5 // pred_region
        // Predicated region
        $region41: #{model4bd_forward.1} parent=39 // pred_check
          %p417 = pneg %p169
        $region42: #{model4bd_forward.1} parent=39 // pred_check_branch
          %419 = sbr.rel (%p417) target = $region44
        $region43: #{model4bd_forward.1} parent=39 // pred_region
          %s420 = smul.u32 14, %s23
          %p421 = scmp.lt.s32.totalorder %s420, 55
          %s422 = scalar_select %p421, %s420, 55
          %s423 = smul.addr %s422, 7
          %s424 = smul.addr %s423, 8
          %s425 = scalar_lea.vmem %s6, %s424
          %s426 = smul.u32 14, %s23
        $region44: #{model4bd_forward.1} parent=39 // pred_fallthru
          _
        // Predicated region
        $region45: #{model4bd_forward.1} parent=39 // pred_check
          %p427 = pneg %p195
        $region46: #{model4bd_forward.1} parent=39 // pred_check_branch
          %429 = sbr.rel (%p427) target = $region48
        $region47: #{model4bd_forward.1} parent=39 // pred_region
          %s430 = smul.u32 14, %s23
          %p431 = scmp.lt.s32.totalorder %s430, 55
          %s432 = scalar_select %p431, %s430, 55
          %s433 = smul.addr %s432, 8
          %s434 = scalar_lea.vmem %s7, %s433
          %s435 = smul.u32 14, %s23
        $region48: #{model4bd_forward.1} parent=39 // pred_fallthru
          _
        // Predicated region
        $region49: #{model4bd_forward.1} parent=39 // pred_check
          %p436 = pneg %p221
        $region50: #{model4bd_forward.1} parent=39 // pred_check_branch
          %438 = sbr.rel (%p436) target = $region52
        $region51: #{model4bd_forward.1} parent=39 // pred_region
          %s439 = smul.u32 14, %s23
          %p440 = scmp.lt.s32.totalorder %s439, 55
          %s441 = scalar_select %p440, %s439, 55
          %s442 = smul.addr %s441, 8
          %s443 = scalar_lea.vmem %s8, %s442
          %s444 = smul.u32 14, %s23
        $region52: #{model4bd_forward.1} parent=39 // pred_fallthru
          _
        // Predicated region
        $region53: #{model4bd_forward.1} parent=39 // pred_check
          %p445 = pneg %p247
        $region54: #{model4bd_forward.1} parent=39 // pred_check_branch
          %447 = sbr.rel (%p445) target = $region56
        $region55: #{model4bd_forward.1} parent=39 // pred_region
          %s448 = sand.u32 %s23, 1
          %s449 = scalar_lea.sflag [#allocation4], %s448
          %s450 = sand.u32 %s237, 1
          %s451 = smul.addr %s450, 56
          %s452 = scalar_lea.vmem [#allocation14], %s451
          %s453 = smul.u32 14, %s23
          %455 = vsyncadd %s449, 0
          %s456 = smul.addr %s453, 4
          %s457 = scalar_lea.hbm %s9, %s456
          %s458 = sshll.u32 %s457, 4
          %s459 = int_to_ptr.hbm [resolvable:$true] %s458
          %s460 = sshll.u32 %s452, 4
          %s461 = int_to_ptr.vmem [resolvable:$true] %s460
          %466 = dma.hbm_to_vmem [thread:$0]  %s459, 896, %s461, %s449, 64, 64, 4
        $region56: #{model4bd_forward.1} parent=39 // pred_fallthru
          _
        // Predicated region
        $region57: #{model4bd_forward.1} parent=39 // pred_check
          %p467 = pneg %p273
        $region58: #{model4bd_forward.1} parent=39 // pred_check_branch
          %469 = sbr.rel (%p467) target = $region60
        $region59: #{model4bd_forward.1} parent=39 // pred_region
          %s470 = sand.u32 %s23, 1
          %s471 = scalar_lea.sflag [#allocation4], %s470
          %s472 = sand.u32 %s263, 1
          %s473 = smul.addr %s472, 336
          %s474 = scalar_lea.vmem [#allocation15], %s473
          %s475 = smul.u32 14, %s23
          %477 = vsyncadd %s471, 0
          %s478 = smul.addr %s475, 3
          %s479 = smul.addr %s478, 8
          %s480 = scalar_lea.hbm %s10, %s479
          %s481 = sshll.u32 %s480, 4
          %s482 = int_to_ptr.hbm [resolvable:$true] %s481
          %s483 = sshll.u32 %s474, 4
          %s484 = int_to_ptr.vmem [resolvable:$true] %s483
          %489 = dma.hbm_to_vmem [thread:$0]  %s482, 5376, %s484, %s471, 128, 128, 8
        $region60: #{model4bd_forward.1} parent=39 // pred_fallthru
          _
        // Predicated region
        $region61: #{model4bd_forward.1} parent=39 // pred_check
          %p490 = pneg %p299
        $region62: #{model4bd_forward.1} parent=39 // pred_check_branch
          %492 = sbr.rel (%p490) target = $region64
        $region63: #{model4bd_forward.1} parent=39 // pred_region
          %s493 = sand.u32 %s23, 1
          %s494 = scalar_lea.sflag [#allocation4], %s493
          %s495 = sand.u32 %s289, 1
          %s496 = smul.addr %s495, 1792
          %s497 = scalar_lea.vmem [#allocation16], %s496
          %s498 = smul.u32 14, %s23
          %500 = vsyncadd %s494, 0
          %s501 = smul.addr %s498, 16
          %s502 = smul.addr %s501, 8
          %s503 = scalar_lea.hbm %s11, %s502
          %s504 = sshll.u32 %s503, 4
          %s505 = int_to_ptr.hbm [resolvable:$true] %s504
          %s506 = sshll.u32 %s497, 4
          %s507 = int_to_ptr.vmem [resolvable:$true] %s506
          %512 = dma.hbm_to_vmem [thread:$0]  %s505, 28672, %s507, %s494, 128, 128, 8
        $region64: #{model4bd_forward.1} parent=39 // pred_fallthru
          _
      $region40: #{model4bd_forward.1} parent=5 // pred_fallthru
        _
      %p513 = scmp.le.s32.totalorder 1, %s23
      %p514 = scmp.lt.s32.totalorder %s23, 5
      %p515 = pnand %p513, %p514
      %p516 = pneg %p515
      // Predicated region
      $region65: #{model4bd_forward.1} parent=5 // pred_check
        _
      $region66: #{model4bd_forward.1} parent=5 // pred_check_branch
        %518 = sbr.rel (%p515) target = $region68
      $region67: #{model4bd_forward.1} parent=5 // pred_region
        %s519 = ssub.s32 %s23, 1
        // Predicated region
        $region69: #{model4bd_forward.1} parent=67 // pred_check
          %p520 = pneg %p44
        $region70: #{model4bd_forward.1} parent=67 // pred_check_branch
          %522 = sbr.rel (%p520) target = $region72
        $region71: #{model4bd_forward.1} parent=67 // pred_region
          %524 = dma.done [#allocation4], 32
        $region72: #{model4bd_forward.1} parent=67 // pred_fallthru
          _
        // Predicated region
        $region73: #{model4bd_forward.1} parent=67 // pred_check
          %p525 = pneg %p65
        $region74: #{model4bd_forward.1} parent=67 // pred_check_branch
          %527 = sbr.rel (%p525) target = $region76
        $region75: #{model4bd_forward.1} parent=67 // pred_region
          %529 = dma.done [#allocation7], 32
        $region76: #{model4bd_forward.1} parent=67 // pred_fallthru
          _
        // Predicated region
        $region77: #{model4bd_forward.1} parent=67 // pred_check
          %p530 = pneg %p86
        $region78: #{model4bd_forward.1} parent=67 // pred_check_branch
          %532 = sbr.rel (%p530) target = $region80
        $region79: #{model4bd_forward.1} parent=67 // pred_region
          %534 = dma.done [#allocation7], 32
        $region80: #{model4bd_forward.1} parent=67 // pred_fallthru
          _
        // Predicated region
        $region81: #{model4bd_forward.1} parent=67 // pred_check
          %p535 = pneg %p107
        $region82: #{model4bd_forward.1} parent=67 // pred_check_branch
          %537 = sbr.rel (%p535) target = $region84
        $region83: #{model4bd_forward.1} parent=67 // pred_region
          %539 = dma.done [#allocation10], 128
        $region84: #{model4bd_forward.1} parent=67 // pred_fallthru
          _
        // Predicated region
        $region85: #{model4bd_forward.1} parent=67 // pred_check
          %p540 = pneg %p128
        $region86: #{model4bd_forward.1} parent=67 // pred_check_branch
          %542 = sbr.rel (%p540) target = $region88
        $region87: #{model4bd_forward.1} parent=67 // pred_region
          %544 = dma.done [#allocation10], 128
        $region88: #{model4bd_forward.1} parent=67 // pred_fallthru
          _
        // Predicated region
        $region89: #{model4bd_forward.1} parent=67 // pred_check
          %p545 = pneg %p149
        $region90: #{model4bd_forward.1} parent=67 // pred_check_branch
          %547 = sbr.rel (%p545) target = $region92
        $region91: #{model4bd_forward.1} parent=67 // pred_region
          %549 = dma.done [#allocation13], 128
        $region92: #{model4bd_forward.1} parent=67 // pred_fallthru
          _
        %s550 = sand.u32 %s28, 1
        %s551 = scalar_lea.sflag [#allocation4], %s550
        %s552 = sand.u32 %s240, 1
        %s553 = smul.addr %s552, 56
        %s554 = scalar_lea.vmem [#allocation14], %s553
        // Predicated region
        $region93: #{model4bd_forward.1} parent=67 // pred_check
          %p555 = pneg %p253
        $region94: #{model4bd_forward.1} parent=67 // pred_check_branch
          %557 = sbr.rel (%p555) target = $region96
        $region95: #{model4bd_forward.1} parent=67 // pred_region
          %559 = dma.done %s551, 896
        $region96: #{model4bd_forward.1} parent=67 // pred_fallthru
          _
        %s560 = sand.u32 %s28, 1
        %s561 = scalar_lea.sflag [#allocation4], %s560
        %s562 = sand.u32 %s266, 1
        %s563 = smul.addr %s562, 336
        %s564 = scalar_lea.vmem [#allocation15], %s563
        // Predicated region
        $region97: #{model4bd_forward.1} parent=67 // pred_check
          %p565 = pneg %p279
        $region98: #{model4bd_forward.1} parent=67 // pred_check_branch
          %567 = sbr.rel (%p565) target = $region100
        $region99: #{model4bd_forward.1} parent=67 // pred_region
          %569 = dma.done %s561, 5376
        $region100: #{model4bd_forward.1} parent=67 // pred_fallthru
          _
        %s570 = sand.u32 %s28, 1
        %s571 = scalar_lea.sflag [#allocation4], %s570
        %s572 = sand.u32 %s292, 1
        %s573 = smul.addr %s572, 1792
        %s574 = scalar_lea.vmem [#allocation16], %s573
        // Predicated region
        $region101: #{model4bd_forward.1} parent=67 // pred_check
          %p575 = pneg %p305
        $region102: #{model4bd_forward.1} parent=67 // pred_check_branch
          %577 = sbr.rel (%p575) target = $region104
        $region103: #{model4bd_forward.1} parent=67 // pred_region
          %579 = dma.done %s571, 28672
        $region104: #{model4bd_forward.1} parent=67 // pred_fallthru
          _
        %p580 = pneg %p44
        %p581 = pneg %p41
        %p582 = pneg %p65
        %p583 = pneg %p62
        %p584 = pneg %p86
        %p585 = pneg %p83
        %p586 = pneg %p107
        %p587 = pneg %p104
        %p588 = pneg %p128
        %p589 = pneg %p125
        %p590 = pneg %p149
        %p591 = pneg %p146
        %s592 = smul.u32 14, %s28
        %p593 = scmp.lt.s32.totalorder %s592, 55
        %s594 = scalar_select %p593, %s592, 55
        %s595 = smul.addr %s594, 7
        %s596 = smul.addr %s595, 8
        %s597 = scalar_lea.vmem %s6, %s596
        %p598 = pneg %p175
        %p599 = pneg %p172
        %s600 = smul.u32 14, %s28
        %p601 = scmp.lt.s32.totalorder %s600, 55
        %s602 = scalar_select %p601, %s600, 55
        %s603 = smul.addr %s602, 8
        %s604 = scalar_lea.vmem %s7, %s603
        %p605 = pneg %p201
        %p606 = pneg %p198
        %s607 = smul.u32 14, %s28
        %p608 = scmp.lt.s32.totalorder %s607, 55
        %s609 = scalar_select %p608, %s607, 55
        %s610 = smul.addr %s609, 8
        %s611 = scalar_lea.vmem %s8, %s610
        %p612 = pneg %p227
        %p613 = pneg %p224
        %s614 = sand.u32 %s28, 1
        %s615 = scalar_lea.sflag [#allocation4], %s614
        %s616 = sand.u32 %s240, 1
        %s617 = smul.addr %s616, 56
        %s618 = scalar_lea.vmem [#allocation14], %s617
        %p619 = pneg %p253
        %p620 = pneg %p250
        %s621 = sand.u32 %s28, 1
        %s622 = scalar_lea.sflag [#allocation4], %s621
        %s623 = sand.u32 %s266, 1
        %s624 = smul.addr %s623, 336
        %s625 = scalar_lea.vmem [#allocation15], %s624
        %p626 = pneg %p279
        %p627 = pneg %p276
        %s628 = sand.u32 %s28, 1
        %s629 = scalar_lea.sflag [#allocation4], %s628
        %s630 = sand.u32 %s292, 1
        %s631 = smul.addr %s630, 1792
        %s632 = scalar_lea.vmem [#allocation16], %s631
        %p633 = pneg %p305
        %p634 = pneg %p302
        %p635 = pneg %p326
        %p636 = pneg %p323
        %s637 = smul.u32 14, %s28
        %p638 = scmp.lt.s32.totalorder %s637, 55
        %s639 = scalar_select %p638, %s637, 55
        %s640 = smul.addr %s639, 7
        %s641 = smul.addr %s640, 8
        %s642 = scalar_lea.vmem %s6, %s641
        %s643 = smul.u32 14, %s28
        %s644 = smul.u32 14, %s28
        %p645 = scmp.lt.s32.totalorder %s644, 55
        %s646 = scalar_select %p645, %s644, 55
        %s647 = smul.addr %s646, 8
        %s648 = scalar_lea.vmem %s7, %s647
        %s649 = smul.u32 14, %s28
        %s650 = smul.u32 14, %s28
        %p651 = scmp.lt.s32.totalorder %s650, 55
        %s652 = scalar_select %p651, %s650, 55
        %s653 = smul.addr %s652, 8
        %s654 = scalar_lea.vmem %s8, %s653
        %s655 = smul.u32 14, %s28
        %s656 = smul.u32 14, %s28
        %s657 = smul.u32 14, %s28
        %s658 = smul.u32 14, %s28
        %p659 = scmp.eq.s32.totalorder %s28, 0
        // Predicated region
        $region105: #{model4bd_forward.1} parent=67 // pred_check
          %p660 = pneg %p659
        $region106: #{model4bd_forward.1} parent=67 // pred_check_branch
          %662 = sbr.rel (%p660) target = $region108
        $region107: #{model4bd_forward.1} parent=67 // pred_region
          %663 = vst [vmem:[#allocation2] sm:$0xff] 0.0
        $region108: #{model4bd_forward.1} parent=67 // pred_fallthru
          _
        %v664 = vld [vmem:[#allocation9] sm:$0xff]
        %v665 = vld [vmem:[#allocation3] sm:$0x1]
        %v666 = vperm.slane %v665, 0
        %v667 = vsub.f32 %v664, %v666
        %v668 = vld [vmem:[#allocation3 + $0x1] sm:$0x1]
        %v669 = vperm.slane %v668, 0
        %v670 = vrcp.pop %v669
        %v671 = vmul.f32 %v669, %v670
        %v672 = vsub.f32 1.0, %v671
        %v673 = vmul.f32 %v670, %v672
        %v674 = vadd.f32 %v670, %v673
        %vm675 = vweird.f32 %v669
        %vm676 = vweird.f32 %v670
        %vm677 = vmor %vm675, %vm676
        %v678 = vsel %vm677, %v670, %v674
        %v679 = vand.u32 2147483647, %v669
        %vm680 = vcmp.eq.f32.partialorder %v679, 8.507059e+37
        %v681 = vand.u32 %v669, 2147483648
        %v682 = vor.u32 1.1754944e-38, %v681
        %v683 = vsel %vm680, %v682, %v678
        %v684 = vmul.f32 %v667, %v683
        %v685 = vld [vmem:[#allocation11] sm:$0xff]
        %v686 = vld [vmem:[#allocation6] sm:$0x1]
        %v687 = vperm.slane %v686, 0
        %v688 = vsub.f32 %v685, %v687
        %v689 = vld [vmem:[#allocation6 + $0x1] sm:$0x1]
        %v690 = vperm.slane %v689, 0
        %v691 = vrcp.pop %v690
        %v692 = vmul.f32 %v690, %v691
        %v693 = vsub.f32 1.0, %v692
        %v694 = vmul.f32 %v691, %v693
        %v695 = vadd.f32 %v691, %v694
        %vm696 = vweird.f32 %v690
        %vm697 = vweird.f32 %v691
        %vm698 = vmor %vm696, %vm697
        %v699 = vsel %vm698, %v691, %v695
        %v700 = vand.u32 2147483647, %v690
        %vm701 = vcmp.eq.f32.partialorder %v700, 8.507059e+37
        %v702 = vand.u32 %v690, 2147483648
        %v703 = vor.u32 1.1754944e-38, %v702
        %v704 = vsel %vm701, %v703, %v699
        %v705 = vmul.f32 %v688, %v704
        %v706 = vld [vmem:[#allocation12] sm:$0xff]
        %v707 = vld [vmem:[#allocation8] sm:$0x1]
        %v708 = vperm.slane %v707, 0
        %v709 = vsub.f32 %v706, %v708
        %v710 = vld [vmem:[#allocation8 + $0x1] sm:$0x1]
        %v711 = vperm.slane %v710, 0
        %v712 = vrcp.pop %v711
        %v713 = vmul.f32 %v711, %v712
        %v714 = vsub.f32 1.0, %v713
        %v715 = vmul.f32 %v712, %v714
        %v716 = vadd.f32 %v712, %v715
        %vm717 = vweird.f32 %v711
        %vm718 = vweird.f32 %v712
        %vm719 = vmor %vm717, %vm718
        %v720 = vsel %vm719, %v712, %v716
        %v721 = vand.u32 2147483647, %v711
        %vm722 = vcmp.eq.f32.partialorder %v721, 8.507059e+37
        %v723 = vand.u32 %v711, 2147483648
        %v724 = vor.u32 1.1754944e-38, %v723
        %v725 = vsel %vm722, %v724, %v720
        %v726 = vmul.f32 %v709, %v725
        %v727 = vld [vmem:[%s554] sm:$0xf]
        %v728 = vld [vmem:[%s642] sm:$0xff]
        %v729 = vld [vmem:[%s642 + $0x8] sm:$0xff]
        %v730 = vld [vmem:[%s642 + $0x10] sm:$0xff]
        %v731 = vld [vmem:[%s642 + $0x18] sm:$0xff]
        %v732 = vld [vmem:[%s642 + $0x20] sm:$0xff]
        %v733 = vld [vmem:[%s642 + $0x28] sm:$0xff]
        %v734 = vld [vmem:[%s642 + $0x30] sm:$0x7f]
        %v735 = vld [vmem:[%s648] sm:$0x7f]
        %vm736 = vcmask 56320
        %v738 = vsel %vm736, %v705, 0
        %vm740 = vcmask 1046528
        %v742 = vsel %vm740, %v735, 0
        %744 = vmatpush.msra.mxu0 0.0
        %745 = vmatpush.msra.mxu0 0.0
        %746 = vmatpush.msra.mxu0 0.0
        %747 = vmatpush.msra.mxu0 0.0
        %748 = vmatpush.msra.mxu0 0.0
        %749 = vmatpush.msra.mxu0 0.0
        %750 = vmatpush.msra.mxu0 0.0
        %751 = vmatpush.msra.mxu0 0.0
        %752 = vmatpush.msra.mxu0 0.0
        %753 = vmatpush.msra.mxu0 0.0
        %754 = vmatpush.msra.mxu0 0.0
        %755 = vmatpush.msra.mxu0 0.0
        %756 = vmatpush.msra.mxu0 0.0
        %757 = vmatpush.msra.mxu0 0.0
        %758 = vmatpush.msra.mxu0 0.0
        %759 = vmatpush.msra.mxu0 %v742
        %760 = vmatmul.f32.gmra.mxu0 %v738
        %v761 = vpop.f32.mrf.mxu0
        %v762 = vadd.f32 0.0, %v761
        %763 = vdwg.mxu0
        %vm764 = vcmask 449536
        %v766 = vsel %vm764, %v684, 0
        %v769 = vsel %vm740, %v734, 0
        %771 = vmatpush.msra.mxu0 0.0
        %772 = vmatpush.msra.mxu0 0.0
        %773 = vmatpush.msra.mxu0 0.0
        %774 = vmatpush.msra.mxu0 0.0
        %775 = vmatpush.msra.mxu0 0.0
        %776 = vmatpush.msra.mxu0 0.0
        %777 = vmatpush.msra.mxu0 0.0
        %778 = vmatpush.msra.mxu0 0.0
        %779 = vmatpush.msra.mxu0 0.0
        %780 = vmatpush.msra.mxu0 %v769
        %781 = vmatpush.msra.mxu0 %v733
        %782 = vmatpush.msra.mxu0 %v732
        %783 = vmatpush.msra.mxu0 %v731
        %784 = vmatpush.msra.mxu0 %v730
        %785 = vmatpush.msra.mxu0 %v729
        %786 = vmatpush.msra.mxu0 %v728
        %787 = vmatmul.f32.gmra.mxu0 %v766
        %v788 = vpop.f32.mrf.mxu0
        %v789 = vadd.f32 %v762, %v788
        %790 = vdwg.mxu0
        %v791 = vld [vmem:[%s654] sm:$0x7f]
        %v793 = vsel %vm736, %v726, 0
        %v796 = vsel %vm740, %v791, 0
        %798 = vmatpush.msra.mxu0 0.0
        %799 = vmatpush.msra.mxu0 0.0
        %800 = vmatpush.msra.mxu0 0.0
        %801 = vmatpush.msra.mxu0 0.0
        %802 = vmatpush.msra.mxu0 0.0
        %803 = vmatpush.msra.mxu0 0.0
        %804 = vmatpush.msra.mxu0 0.0
        %805 = vmatpush.msra.mxu0 0.0
        %806 = vmatpush.msra.mxu0 0.0
        %807 = vmatpush.msra.mxu0 0.0
        %808 = vmatpush.msra.mxu0 0.0
        %809 = vmatpush.msra.mxu0 0.0
        %810 = vmatpush.msra.mxu0 0.0
        %811 = vmatpush.msra.mxu0 0.0
        %812 = vmatpush.msra.mxu0 0.0
        %813 = vmatpush.msra.mxu0 %v796
        %814 = vmatmul.f32.gmra.mxu0 %v793
        %v815 = vpop.f32.mrf.mxu0
        %v816 = vadd.f32 0.0, %v815
        %817 = vdwg.mxu0
        %v818 = vadd.f32 %v789, %v816
        %v819 = vld [vmem:[%s564] sm:$0xff]
        %v820 = vld [vmem:[%s564 + $0x8] sm:$0xff]
        %v821 = vld [vmem:[%s564 + $0x10] sm:$0xff]
        %v822 = vperm.slane %v727, 0
        %vm823 = vcmask 195584
        %v825 = vsel %vm823, %v818, 0
        %827 = vmatpush.msra.mxu0 0.0
        %828 = vmatpush.msra.mxu0 0.0
        %829 = vmatpush.msra.mxu0 0.0
        %830 = vmatpush.msra.mxu0 0.0
        %831 = vmatpush.msra.mxu0 0.0
        %832 = vmatpush.msra.mxu0 0.0
        %833 = vmatpush.msra.mxu0 0.0
        %834 = vmatpush.msra.mxu0 0.0
        %835 = vmatpush.msra.mxu0 0.0
        %836 = vmatpush.msra.mxu0 0.0
        %837 = vmatpush.msra.mxu0 0.0
        %838 = vmatpush.msra.mxu0 0.0
        %839 = vmatpush.msra.mxu0 0.0
        %840 = vmatpush.msra.mxu0 %v821
        %841 = vmatpush.msra.mxu0 %v820
        %842 = vmatpush.msra.mxu0 %v819
        %843 = vmatmul.f32.gmra.mxu0 %v825
        %v844 = vpop.f32.mrf.mxu0
        %v845 = vadd.f32 %v822, %v844
        %846 = vdwg.mxu0
        %v847 = vtanh.pop %v845
        %v848 = vld [vmem:[%s574] sm:$0xff]
        %v849 = vld [vmem:[%s574 + $0x8] sm:$0xff]
        %v850 = vld [vmem:[%s574 + $0x10] sm:$0xff]
        %v851 = vld [vmem:[%s574 + $0x18] sm:$0xff]
        %v852 = vld [vmem:[%s574 + $0x20] sm:$0xff]
        %v853 = vld [vmem:[%s574 + $0x28] sm:$0xff]
        %v854 = vld [vmem:[%s574 + $0x30] sm:$0xff]
        %v855 = vld [vmem:[%s574 + $0x38] sm:$0xff]
        %v856 = vld [vmem:[%s574 + $0x40] sm:$0xff]
        %v857 = vld [vmem:[%s574 + $0x48] sm:$0xff]
        %v858 = vld [vmem:[%s574 + $0x50] sm:$0xff]
        %v859 = vld [vmem:[%s574 + $0x58] sm:$0xff]
        %v860 = vld [vmem:[%s574 + $0x60] sm:$0xff]
        %v861 = vld [vmem:[%s574 + $0x68] sm:$0xff]
        %v862 = vld [vmem:[%s574 + $0x70] sm:$0xff]
        %v863 = vld [vmem:[%s574 + $0x78] sm:$0xff]
        %v864 = vperm.slane %v727, 1
        %865 = vmatpush.msra.mxu0 %v863
        %866 = vmatpush.msra.mxu0 %v862
        %867 = vmatpush.msra.mxu0 %v861
        %868 = vmatpush.msra.mxu0 %v860
        %869 = vmatpush.msra.mxu0 %v859
        %870 = vmatpush.msra.mxu0 %v858
        %871 = vmatpush.msra.mxu0 %v857
        %872 = vmatpush.msra.mxu0 %v856
        %873 = vmatpush.msra.mxu0 %v855
        %874 = vmatpush.msra.mxu0 %v854
        %875 = vmatpush.msra.mxu0 %v853
        %876 = vmatpush.msra.mxu0 %v852
        %877 = vmatpush.msra.mxu0 %v851
        %878 = vmatpush.msra.mxu0 %v850
        %879 = vmatpush.msra.mxu0 %v849
        %880 = vmatpush.msra.mxu0 %v848
        %881 = vmatmul.f32.gmra.mxu0 %v847
        %v882 = vpop.f32.mrf.mxu0
        %v883 = vadd.f32 %v864, %v882
        %884 = vdwg.mxu0
        %v885 = vtanh.pop %v883
        %v886 = vperm.slane %v727, 2
        %v887 = vmul.f32 %v885, %v886
        %v888 = vadd.f32 %v887, 0.0
        %v889 = vperm.slane %v727, 3
        %v890 = vadd.f32 %v888, %v889
        %s891 = scalar_lea.vmem %s554, 4 [#allocation14]
        %v892 = vld [vmem:[%s891] sm:$0xf]
        %s893 = scalar_lea.vmem %s642, 56
        %v894 = vld [vmem:[%s893] sm:$0xff]
        %v895 = vld [vmem:[%s893 + $0x8] sm:$0xff]
        %v896 = vld [vmem:[%s893 + $0x10] sm:$0xff]
        %v897 = vld [vmem:[%s893 + $0x18] sm:$0xff]
        %v898 = vld [vmem:[%s893 + $0x20] sm:$0xff]
        %v899 = vld [vmem:[%s893 + $0x28] sm:$0xff]
        %v900 = vld [vmem:[%s893 + $0x30] sm:$0x7f]
        %s901 = scalar_lea.vmem %s648, 8
        %v902 = vld [vmem:[%s901] sm:$0x7f]
        %v904 = vsel %vm740, %v902, 0
        %906 = vmatpush.msra.mxu0 0.0
        %907 = vmatpush.msra.mxu0 0.0
        %908 = vmatpush.msra.mxu0 0.0
        %909 = vmatpush.msra.mxu0 0.0
        %910 = vmatpush.msra.mxu0 0.0
        %911 = vmatpush.msra.mxu0 0.0
        %912 = vmatpush.msra.mxu0 0.0
        %913 = vmatpush.msra.mxu0 0.0
        %914 = vmatpush.msra.mxu0 0.0
        %915 = vmatpush.msra.mxu0 0.0
        %916 = vmatpush.msra.mxu0 0.0
        %917 = vmatpush.msra.mxu0 0.0
        %918 = vmatpush.msra.mxu0 0.0
        %919 = vmatpush.msra.mxu0 0.0
        %920 = vmatpush.msra.mxu0 0.0
        %921 = vmatpush.msra.mxu0 %v904
        %922 = vmatmul.f32.gmra.mxu0 %v738
        %v923 = vpop.f32.mrf.mxu0
        %v924 = vadd.f32 0.0, %v923
        %925 = vdwg.mxu0
        %v927 = vsel %vm740, %v900, 0
        %929 = vmatpush.msra.mxu0 0.0
        %930 = vmatpush.msra.mxu0 0.0
        %931 = vmatpush.msra.mxu0 0.0
        %932 = vmatpush.msra.mxu0 0.0
        %933 = vmatpush.msra.mxu0 0.0
        %934 = vmatpush.msra.mxu0 0.0
        %935 = vmatpush.msra.mxu0 0.0
        %936 = vmatpush.msra.mxu0 0.0
        %937 = vmatpush.msra.mxu0 0.0
        %938 = vmatpush.msra.mxu0 %v927
        %939 = vmatpush.msra.mxu0 %v899
        %940 = vmatpush.msra.mxu0 %v898
        %941 = vmatpush.msra.mxu0 %v897
        %942 = vmatpush.msra.mxu0 %v896
        %943 = vmatpush.msra.mxu0 %v895
        %944 = vmatpush.msra.mxu0 %v894
        %945 = vmatmul.f32.gmra.mxu0 %v766
        %v946 = vpop.f32.mrf.mxu0
        %v947 = vadd.f32 %v924, %v946
        %948 = vdwg.mxu0
        %s949 = scalar_lea.vmem %s654, 8
        %v950 = vld [vmem:[%s949] sm:$0x7f]
        %v952 = vsel %vm740, %v950, 0
        %954 = vmatpush.msra.mxu0 0.0
        %955 = vmatpush.msra.mxu0 0.0
        %956 = vmatpush.msra.mxu0 0.0
        %957 = vmatpush.msra.mxu0 0.0
        %958 = vmatpush.msra.mxu0 0.0
        %959 = vmatpush.msra.mxu0 0.0
        %960 = vmatpush.msra.mxu0 0.0
        %961 = vmatpush.msra.mxu0 0.0
        %962 = vmatpush.msra.mxu0 0.0
        %963 = vmatpush.msra.mxu0 0.0
        %964 = vmatpush.msra.mxu0 0.0
        %965 = vmatpush.msra.mxu0 0.0
        %966 = vmatpush.msra.mxu0 0.0
        %967 = vmatpush.msra.mxu0 0.0
        %968 = vmatpush.msra.mxu0 0.0
        %969 = vmatpush.msra.mxu0 %v952
        %970 = vmatmul.f32.gmra.mxu0 %v793
        %v971 = vpop.f32.mrf.mxu0
        %v972 = vadd.f32 0.0, %v971
        %973 = vdwg.mxu0
        %v974 = vadd.f32 %v947, %v972
        %s975 = scalar_lea.vmem %s564, 24 [#allocation15]
        %v976 = vld [vmem:[%s975] sm:$0xff]
        %v977 = vld [vmem:[%s975 + $0x8] sm:$0xff]
        %v978 = vld [vmem:[%s975 + $0x10] sm:$0xff]
        %v979 = vperm.slane %v892, 0
        %v981 = vsel %vm823, %v974, 0
        %983 = vmatpush.msra.mxu0 0.0
        %984 = vmatpush.msra.mxu0 0.0
        %985 = vmatpush.msra.mxu0 0.0
        %986 = vmatpush.msra.mxu0 0.0
        %987 = vmatpush.msra.mxu0 0.0
        %988 = vmatpush.msra.mxu0 0.0
        %989 = vmatpush.msra.mxu0 0.0
        %990 = vmatpush.msra.mxu0 0.0
        %991 = vmatpush.msra.mxu0 0.0
        %992 = vmatpush.msra.mxu0 0.0
        %993 = vmatpush.msra.mxu0 0.0
        %994 = vmatpush.msra.mxu0 0.0
        %995 = vmatpush.msra.mxu0 0.0
        %996 = vmatpush.msra.mxu0 %v978
        %997 = vmatpush.msra.mxu0 %v977
        %998 = vmatpush.msra.mxu0 %v976
        %999 = vmatmul.f32.gmra.mxu0 %v981
        %v1000 = vpop.f32.mrf.mxu0
        %v1001 = vadd.f32 %v979, %v1000
        %1002 = vdwg.mxu0
        %v1003 = vtanh.pop %v1001
        %s1004 = scalar_lea.vmem %s574, 128 [#allocation16]
        %v1005 = vld [vmem:[%s1004] sm:$0xff]
        %v1006 = vld [vmem:[%s1004 + $0x8] sm:$0xff]
        %v1007 = vld [vmem:[%s1004 + $0x10] sm:$0xff]
        %v1008 = vld [vmem:[%s1004 + $0x18] sm:$0xff]
        %v1009 = vld [vmem:[%s1004 + $0x20] sm:$0xff]
        %v1010 = vld [vmem:[%s1004 + $0x28] sm:$0xff]
        %v1011 = vld [vmem:[%s1004 + $0x30] sm:$0xff]
        %v1012 = vld [vmem:[%s1004 + $0x38] sm:$0xff]
        %v1013 = vld [vmem:[%s1004 + $0x40] sm:$0xff]
        %v1014 = vld [vmem:[%s1004 + $0x48] sm:$0xff]
        %v1015 = vld [vmem:[%s1004 + $0x50] sm:$0xff]
        %v1016 = vld [vmem:[%s1004 + $0x58] sm:$0xff]
        %v1017 = vld [vmem:[%s1004 + $0x60] sm:$0xff]
        %v1018 = vld [vmem:[%s1004 + $0x68] sm:$0xff]
        %v1019 = vld [vmem:[%s1004 + $0x70] sm:$0xff]
        %v1020 = vld [vmem:[%s1004 + $0x78] sm:$0xff]
        %v1021 = vperm.slane %v892, 1
        %1022 = vmatpush.msra.mxu0 %v1020
        %1023 = vmatpush.msra.mxu0 %v1019
        %1024 = vmatpush.msra.mxu0 %v1018
        %1025 = vmatpush.msra.mxu0 %v1017
        %1026 = vmatpush.msra.mxu0 %v1016
        %1027 = vmatpush.msra.mxu0 %v1015
        %1028 = vmatpush.msra.mxu0 %v1014
        %1029 = vmatpush.msra.mxu0 %v1013
        %1030 = vmatpush.msra.mxu0 %v1012
        %1031 = vmatpush.msra.mxu0 %v1011
        %1032 = vmatpush.msra.mxu0 %v1010
        %1033 = vmatpush.msra.mxu0 %v1009
        %1034 = vmatpush.msra.mxu0 %v1008
        %1035 = vmatpush.msra.mxu0 %v1007
        %1036 = vmatpush.msra.mxu0 %v1006
        %1037 = vmatpush.msra.mxu0 %v1005
        %1038 = vmatmul.f32.gmra.mxu0 %v1003
        %v1039 = vpop.f32.mrf.mxu0
        %v1040 = vadd.f32 %v1021, %v1039
        %1041 = vdwg.mxu0
        %v1042 = vtanh.pop %v1040
        %v1043 = vperm.slane %v892, 2
        %v1044 = vmul.f32 %v1042, %v1043
        %v1045 = vadd.f32 %v890, %v1044
        %v1046 = vperm.slane %v892, 3
        %v1047 = vadd.f32 %v1045, %v1046
        %s1048 = scalar_lea.vmem %s554, 8 [#allocation14]
        %v1049 = vld [vmem:[%s1048] sm:$0xf]
        %s1050 = scalar_lea.vmem %s642, 112
        %v1051 = vld [vmem:[%s1050] sm:$0xff]
        %v1052 = vld [vmem:[%s1050 + $0x8] sm:$0xff]
        %v1053 = vld [vmem:[%s1050 + $0x10] sm:$0xff]
        %v1054 = vld [vmem:[%s1050 + $0x18] sm:$0xff]
        %v1055 = vld [vmem:[%s1050 + $0x20] sm:$0xff]
        %v1056 = vld [vmem:[%s1050 + $0x28] sm:$0xff]
        %v1057 = vld [vmem:[%s1050 + $0x30] sm:$0x7f]
        %s1058 = scalar_lea.vmem %s648, 16
        %v1059 = vld [vmem:[%s1058] sm:$0x7f]
        %v1061 = vsel %vm740, %v1059, 0
        %1063 = vmatpush.msra.mxu0 0.0
        %1064 = vmatpush.msra.mxu0 0.0
        %1065 = vmatpush.msra.mxu0 0.0
        %1066 = vmatpush.msra.mxu0 0.0
        %1067 = vmatpush.msra.mxu0 0.0
        %1068 = vmatpush.msra.mxu0 0.0
        %1069 = vmatpush.msra.mxu0 0.0
        %1070 = vmatpush.msra.mxu0 0.0
        %1071 = vmatpush.msra.mxu0 0.0
        %1072 = vmatpush.msra.mxu0 0.0
        %1073 = vmatpush.msra.mxu0 0.0
        %1074 = vmatpush.msra.mxu0 0.0
        %1075 = vmatpush.msra.mxu0 0.0
        %1076 = vmatpush.msra.mxu0 0.0
        %1077 = vmatpush.msra.mxu0 0.0
        %1078 = vmatpush.msra.mxu0 %v1061
        %1079 = vmatmul.f32.gmra.mxu0 %v738
        %v1080 = vpop.f32.mrf.mxu0
        %v1081 = vadd.f32 0.0, %v1080
        %1082 = vdwg.mxu0
        %v1084 = vsel %vm740, %v1057, 0
        %1086 = vmatpush.msra.mxu0 0.0
        %1087 = vmatpush.msra.mxu0 0.0
        %1088 = vmatpush.msra.mxu0 0.0
        %1089 = vmatpush.msra.mxu0 0.0
        %1090 = vmatpush.msra.mxu0 0.0
        %1091 = vmatpush.msra.mxu0 0.0
        %1092 = vmatpush.msra.mxu0 0.0
        %1093 = vmatpush.msra.mxu0 0.0
        %1094 = vmatpush.msra.mxu0 0.0
        %1095 = vmatpush.msra.mxu0 %v1084
        %1096 = vmatpush.msra.mxu0 %v1056
        %1097 = vmatpush.msra.mxu0 %v1055
        %1098 = vmatpush.msra.mxu0 %v1054
        %1099 = vmatpush.msra.mxu0 %v1053
        %1100 = vmatpush.msra.mxu0 %v1052
        %1101 = vmatpush.msra.mxu0 %v1051
        %1102 = vmatmul.f32.gmra.mxu0 %v766
        %v1103 = vpop.f32.mrf.mxu0
        %v1104 = vadd.f32 %v1081, %v1103
        %1105 = vdwg.mxu0
        %s1106 = scalar_lea.vmem %s654, 16
        %v1107 = vld [vmem:[%s1106] sm:$0x7f]
        %v1109 = vsel %vm740, %v1107, 0
        %1111 = vmatpush.msra.mxu0 0.0
        %1112 = vmatpush.msra.mxu0 0.0
        %1113 = vmatpush.msra.mxu0 0.0
        %1114 = vmatpush.msra.mxu0 0.0
        %1115 = vmatpush.msra.mxu0 0.0
        %1116 = vmatpush.msra.mxu0 0.0
        %1117 = vmatpush.msra.mxu0 0.0
        %1118 = vmatpush.msra.mxu0 0.0
        %1119 = vmatpush.msra.mxu0 0.0
        %1120 = vmatpush.msra.mxu0 0.0
        %1121 = vmatpush.msra.mxu0 0.0
        %1122 = vmatpush.msra.mxu0 0.0
        %1123 = vmatpush.msra.mxu0 0.0
        %1124 = vmatpush.msra.mxu0 0.0
        %1125 = vmatpush.msra.mxu0 0.0
        %1126 = vmatpush.msra.mxu0 %v1109
        %1127 = vmatmul.f32.gmra.mxu0 %v793
        %v1128 = vpop.f32.mrf.mxu0
        %v1129 = vadd.f32 0.0, %v1128
        %1130 = vdwg.mxu0
        %v1131 = vadd.f32 %v1104, %v1129
        %s1132 = scalar_lea.vmem %s564, 48 [#allocation15]
        %v1133 = vld [vmem:[%s1132] sm:$0xff]
        %v1134 = vld [vmem:[%s1132 + $0x8] sm:$0xff]
        %v1135 = vld [vmem:[%s1132 + $0x10] sm:$0xff]
        %v1136 = vperm.slane %v1049, 0
        %v1138 = vsel %vm823, %v1131, 0
        %1140 = vmatpush.msra.mxu0 0.0
        %1141 = vmatpush.msra.mxu0 0.0
        %1142 = vmatpush.msra.mxu0 0.0
        %1143 = vmatpush.msra.mxu0 0.0
        %1144 = vmatpush.msra.mxu0 0.0
        %1145 = vmatpush.msra.mxu0 0.0
        %1146 = vmatpush.msra.mxu0 0.0
        %1147 = vmatpush.msra.mxu0 0.0
        %1148 = vmatpush.msra.mxu0 0.0
        %1149 = vmatpush.msra.mxu0 0.0
        %1150 = vmatpush.msra.mxu0 0.0
        %1151 = vmatpush.msra.mxu0 0.0
        %1152 = vmatpush.msra.mxu0 0.0
        %1153 = vmatpush.msra.mxu0 %v1135
        %1154 = vmatpush.msra.mxu0 %v1134
        %1155 = vmatpush.msra.mxu0 %v1133
        %1156 = vmatmul.f32.gmra.mxu0 %v1138
        %v1157 = vpop.f32.mrf.mxu0
        %v1158 = vadd.f32 %v1136, %v1157
        %1159 = vdwg.mxu0
        %v1160 = vtanh.pop %v1158
        %s1161 = scalar_lea.vmem %s574, 256 [#allocation16]
        %v1162 = vld [vmem:[%s1161] sm:$0xff]
        %v1163 = vld [vmem:[%s1161 + $0x8] sm:$0xff]
        %v1164 = vld [vmem:[%s1161 + $0x10] sm:$0xff]
        %v1165 = vld [vmem:[%s1161 + $0x18] sm:$0xff]
        %v1166 = vld [vmem:[%s1161 + $0x20] sm:$0xff]
        %v1167 = vld [vmem:[%s1161 + $0x28] sm:$0xff]
        %v1168 = vld [vmem:[%s1161 + $0x30] sm:$0xff]
        %v1169 = vld [vmem:[%s1161 + $0x38] sm:$0xff]
        %v1170 = vld [vmem:[%s1161 + $0x40] sm:$0xff]
        %v1171 = vld [vmem:[%s1161 + $0x48] sm:$0xff]
        %v1172 = vld [vmem:[%s1161 + $0x50] sm:$0xff]
        %v1173 = vld [vmem:[%s1161 + $0x58] sm:$0xff]
        %v1174 = vld [vmem:[%s1161 + $0x60] sm:$0xff]
        %v1175 = vld [vmem:[%s1161 + $0x68] sm:$0xff]
        %v1176 = vld [vmem:[%s1161 + $0x70] sm:$0xff]
        %v1177 = vld [vmem:[%s1161 + $0x78] sm:$0xff]
        %v1178 = vperm.slane %v1049, 1
        %1179 = vmatpush.msra.mxu0 %v1177
        %1180 = vmatpush.msra.mxu0 %v1176
        %1181 = vmatpush.msra.mxu0 %v1175
        %1182 = vmatpush.msra.mxu0 %v1174
        %1183 = vmatpush.msra.mxu0 %v1173
        %1184 = vmatpush.msra.mxu0 %v1172
        %1185 = vmatpush.msra.mxu0 %v1171
        %1186 = vmatpush.msra.mxu0 %v1170
        %1187 = vmatpush.msra.mxu0 %v1169
        %1188 = vmatpush.msra.mxu0 %v1168
        %1189 = vmatpush.msra.mxu0 %v1167
        %1190 = vmatpush.msra.mxu0 %v1166
        %1191 = vmatpush.msra.mxu0 %v1165
        %1192 = vmatpush.msra.mxu0 %v1164
        %1193 = vmatpush.msra.mxu0 %v1163
        %1194 = vmatpush.msra.mxu0 %v1162
        %1195 = vmatmul.f32.gmra.mxu0 %v1160
        %v1196 = vpop.f32.mrf.mxu0
        %v1197 = vadd.f32 %v1178, %v1196
        %1198 = vdwg.mxu0
        %v1199 = vtanh.pop %v1197
        %v1200 = vperm.slane %v1049, 2
        %v1201 = vmul.f32 %v1199, %v1200
        %v1202 = vadd.f32 %v1047, %v1201
        %v1203 = vperm.slane %v1049, 3
        %v1204 = vadd.f32 %v1202, %v1203
        %s1205 = scalar_lea.vmem %s554, 12 [#allocation14]
        %v1206 = vld [vmem:[%s1205] sm:$0xf]
        %s1207 = scalar_lea.vmem %s642, 168
        %v1208 = vld [vmem:[%s1207] sm:$0xff]
        %v1209 = vld [vmem:[%s1207 + $0x8] sm:$0xff]
        %v1210 = vld [vmem:[%s1207 + $0x10] sm:$0xff]
        %v1211 = vld [vmem:[%s1207 + $0x18] sm:$0xff]
        %v1212 = vld [vmem:[%s1207 + $0x20] sm:$0xff]
        %v1213 = vld [vmem:[%s1207 + $0x28] sm:$0xff]
        %v1214 = vld [vmem:[%s1207 + $0x30] sm:$0x7f]
        %s1215 = scalar_lea.vmem %s648, 24
        %v1216 = vld [vmem:[%s1215] sm:$0x7f]
        %v1218 = vsel %vm740, %v1216, 0
        %1220 = vmatpush.msra.mxu0 0.0
        %1221 = vmatpush.msra.mxu0 0.0
        %1222 = vmatpush.msra.mxu0 0.0
        %1223 = vmatpush.msra.mxu0 0.0
        %1224 = vmatpush.msra.mxu0 0.0
        %1225 = vmatpush.msra.mxu0 0.0
        %1226 = vmatpush.msra.mxu0 0.0
        %1227 = vmatpush.msra.mxu0 0.0
        %1228 = vmatpush.msra.mxu0 0.0
        %1229 = vmatpush.msra.mxu0 0.0
        %1230 = vmatpush.msra.mxu0 0.0
        %1231 = vmatpush.msra.mxu0 0.0
        %1232 = vmatpush.msra.mxu0 0.0
        %1233 = vmatpush.msra.mxu0 0.0
        %1234 = vmatpush.msra.mxu0 0.0
        %1235 = vmatpush.msra.mxu0 %v1218
        %1236 = vmatmul.f32.gmra.mxu0 %v738
        %v1237 = vpop.f32.mrf.mxu0
        %v1238 = vadd.f32 0.0, %v1237
        %1239 = vdwg.mxu0
        %v1241 = vsel %vm740, %v1214, 0
        %1243 = vmatpush.msra.mxu0 0.0
        %1244 = vmatpush.msra.mxu0 0.0
        %1245 = vmatpush.msra.mxu0 0.0
        %1246 = vmatpush.msra.mxu0 0.0
        %1247 = vmatpush.msra.mxu0 0.0
        %1248 = vmatpush.msra.mxu0 0.0
        %1249 = vmatpush.msra.mxu0 0.0
        %1250 = vmatpush.msra.mxu0 0.0
        %1251 = vmatpush.msra.mxu0 0.0
        %1252 = vmatpush.msra.mxu0 %v1241
        %1253 = vmatpush.msra.mxu0 %v1213
        %1254 = vmatpush.msra.mxu0 %v1212
        %1255 = vmatpush.msra.mxu0 %v1211
        %1256 = vmatpush.msra.mxu0 %v1210
        %1257 = vmatpush.msra.mxu0 %v1209
        %1258 = vmatpush.msra.mxu0 %v1208
        %1259 = vmatmul.f32.gmra.mxu0 %v766
        %v1260 = vpop.f32.mrf.mxu0
        %v1261 = vadd.f32 %v1238, %v1260
        %1262 = vdwg.mxu0
        %s1263 = scalar_lea.vmem %s654, 24
        %v1264 = vld [vmem:[%s1263] sm:$0x7f]
        %v1266 = vsel %vm740, %v1264, 0
        %1268 = vmatpush.msra.mxu0 0.0
        %1269 = vmatpush.msra.mxu0 0.0
        %1270 = vmatpush.msra.mxu0 0.0
        %1271 = vmatpush.msra.mxu0 0.0
        %1272 = vmatpush.msra.mxu0 0.0
        %1273 = vmatpush.msra.mxu0 0.0
        %1274 = vmatpush.msra.mxu0 0.0
        %1275 = vmatpush.msra.mxu0 0.0
        %1276 = vmatpush.msra.mxu0 0.0
        %1277 = vmatpush.msra.mxu0 0.0
        %1278 = vmatpush.msra.mxu0 0.0
        %1279 = vmatpush.msra.mxu0 0.0
        %1280 = vmatpush.msra.mxu0 0.0
        %1281 = vmatpush.msra.mxu0 0.0
        %1282 = vmatpush.msra.mxu0 0.0
        %1283 = vmatpush.msra.mxu0 %v1266
        %1284 = vmatmul.f32.gmra.mxu0 %v793
        %v1285 = vpop.f32.mrf.mxu0
        %v1286 = vadd.f32 0.0, %v1285
        %1287 = vdwg.mxu0
        %v1288 = vadd.f32 %v1261, %v1286
        %s1289 = scalar_lea.vmem %s564, 72 [#allocation15]
        %v1290 = vld [vmem:[%s1289] sm:$0xff]
        %v1291 = vld [vmem:[%s1289 + $0x8] sm:$0xff]
        %v1292 = vld [vmem:[%s1289 + $0x10] sm:$0xff]
        %v1293 = vperm.slane %v1206, 0
        %v1295 = vsel %vm823, %v1288, 0
        %1297 = vmatpush.msra.mxu0 0.0
        %1298 = vmatpush.msra.mxu0 0.0
        %1299 = vmatpush.msra.mxu0 0.0
        %1300 = vmatpush.msra.mxu0 0.0
        %1301 = vmatpush.msra.mxu0 0.0
        %1302 = vmatpush.msra.mxu0 0.0
        %1303 = vmatpush.msra.mxu0 0.0
        %1304 = vmatpush.msra.mxu0 0.0
        %1305 = vmatpush.msra.mxu0 0.0
        %1306 = vmatpush.msra.mxu0 0.0
        %1307 = vmatpush.msra.mxu0 0.0
        %1308 = vmatpush.msra.mxu0 0.0
        %1309 = vmatpush.msra.mxu0 0.0
        %1310 = vmatpush.msra.mxu0 %v1292
        %1311 = vmatpush.msra.mxu0 %v1291
        %1312 = vmatpush.msra.mxu0 %v1290
        %1313 = vmatmul.f32.gmra.mxu0 %v1295
        %v1314 = vpop.f32.mrf.mxu0
        %v1315 = vadd.f32 %v1293, %v1314
        %1316 = vdwg.mxu0
        %v1317 = vtanh.pop %v1315
        %s1318 = scalar_lea.vmem %s574, 384 [#allocation16]
        %v1319 = vld [vmem:[%s1318] sm:$0xff]
        %v1320 = vld [vmem:[%s1318 + $0x8] sm:$0xff]
        %v1321 = vld [vmem:[%s1318 + $0x10] sm:$0xff]
        %v1322 = vld [vmem:[%s1318 + $0x18] sm:$0xff]
        %v1323 = vld [vmem:[%s1318 + $0x20] sm:$0xff]
        %v1324 = vld [vmem:[%s1318 + $0x28] sm:$0xff]
        %v1325 = vld [vmem:[%s1318 + $0x30] sm:$0xff]
        %v1326 = vld [vmem:[%s1318 + $0x38] sm:$0xff]
        %v1327 = vld [vmem:[%s1318 + $0x40] sm:$0xff]
        %v1328 = vld [vmem:[%s1318 + $0x48] sm:$0xff]
        %v1329 = vld [vmem:[%s1318 + $0x50] sm:$0xff]
        %v1330 = vld [vmem:[%s1318 + $0x58] sm:$0xff]
        %v1331 = vld [vmem:[%s1318 + $0x60] sm:$0xff]
        %v1332 = vld [vmem:[%s1318 + $0x68] sm:$0xff]
        %v1333 = vld [vmem:[%s1318 + $0x70] sm:$0xff]
        %v1334 = vld [vmem:[%s1318 + $0x78] sm:$0xff]
        %v1335 = vperm.slane %v1206, 1
        %1336 = vmatpush.msra.mxu0 %v1334
        %1337 = vmatpush.msra.mxu0 %v1333
        %1338 = vmatpush.msra.mxu0 %v1332
        %1339 = vmatpush.msra.mxu0 %v1331
        %1340 = vmatpush.msra.mxu0 %v1330
        %1341 = vmatpush.msra.mxu0 %v1329
        %1342 = vmatpush.msra.mxu0 %v1328
        %1343 = vmatpush.msra.mxu0 %v1327
        %1344 = vmatpush.msra.mxu0 %v1326
        %1345 = vmatpush.msra.mxu0 %v1325
        %1346 = vmatpush.msra.mxu0 %v1324
        %1347 = vmatpush.msra.mxu0 %v1323
        %1348 = vmatpush.msra.mxu0 %v1322
        %1349 = vmatpush.msra.mxu0 %v1321
        %1350 = vmatpush.msra.mxu0 %v1320
        %1351 = vmatpush.msra.mxu0 %v1319
        %1352 = vmatmul.f32.gmra.mxu0 %v1317
        %v1353 = vpop.f32.mrf.mxu0
        %v1354 = vadd.f32 %v1335, %v1353
        %1355 = vdwg.mxu0
        %v1356 = vtanh.pop %v1354
        %v1357 = vperm.slane %v1206, 2
        %v1358 = vmul.f32 %v1356, %v1357
        %v1359 = vadd.f32 %v1204, %v1358
        %v1360 = vperm.slane %v1206, 3
        %v1361 = vadd.f32 %v1359, %v1360
        %s1362 = scalar_lea.vmem %s554, 16 [#allocation14]
        %v1363 = vld [vmem:[%s1362] sm:$0xf]
        %s1364 = scalar_lea.vmem %s642, 224
        %v1365 = vld [vmem:[%s1364] sm:$0xff]
        %v1366 = vld [vmem:[%s1364 + $0x8] sm:$0xff]
        %v1367 = vld [vmem:[%s1364 + $0x10] sm:$0xff]
        %v1368 = vld [vmem:[%s1364 + $0x18] sm:$0xff]
        %v1369 = vld [vmem:[%s1364 + $0x20] sm:$0xff]
        %v1370 = vld [vmem:[%s1364 + $0x28] sm:$0xff]
        %v1371 = vld [vmem:[%s1364 + $0x30] sm:$0x7f]
        %s1372 = scalar_lea.vmem %s648, 32
        %v1373 = vld [vmem:[%s1372] sm:$0x7f]
        %v1375 = vsel %vm740, %v1373, 0
        %1377 = vmatpush.msra.mxu0 0.0
        %1378 = vmatpush.msra.mxu0 0.0
        %1379 = vmatpush.msra.mxu0 0.0
        %1380 = vmatpush.msra.mxu0 0.0
        %1381 = vmatpush.msra.mxu0 0.0
        %1382 = vmatpush.msra.mxu0 0.0
        %1383 = vmatpush.msra.mxu0 0.0
        %1384 = vmatpush.msra.mxu0 0.0
        %1385 = vmatpush.msra.mxu0 0.0
        %1386 = vmatpush.msra.mxu0 0.0
        %1387 = vmatpush.msra.mxu0 0.0
        %1388 = vmatpush.msra.mxu0 0.0
        %1389 = vmatpush.msra.mxu0 0.0
        %1390 = vmatpush.msra.mxu0 0.0
        %1391 = vmatpush.msra.mxu0 0.0
        %1392 = vmatpush.msra.mxu0 %v1375
        %1393 = vmatmul.f32.gmra.mxu0 %v738
        %v1394 = vpop.f32.mrf.mxu0
        %v1395 = vadd.f32 0.0, %v1394
        %1396 = vdwg.mxu0
        %v1398 = vsel %vm740, %v1371, 0
        %1400 = vmatpush.msra.mxu0 0.0
        %1401 = vmatpush.msra.mxu0 0.0
        %1402 = vmatpush.msra.mxu0 0.0
        %1403 = vmatpush.msra.mxu0 0.0
        %1404 = vmatpush.msra.mxu0 0.0
        %1405 = vmatpush.msra.mxu0 0.0
        %1406 = vmatpush.msra.mxu0 0.0
        %1407 = vmatpush.msra.mxu0 0.0
        %1408 = vmatpush.msra.mxu0 0.0
        %1409 = vmatpush.msra.mxu0 %v1398
        %1410 = vmatpush.msra.mxu0 %v1370
        %1411 = vmatpush.msra.mxu0 %v1369
        %1412 = vmatpush.msra.mxu0 %v1368
        %1413 = vmatpush.msra.mxu0 %v1367
        %1414 = vmatpush.msra.mxu0 %v1366
        %1415 = vmatpush.msra.mxu0 %v1365
        %1416 = vmatmul.f32.gmra.mxu0 %v766
        %v1417 = vpop.f32.mrf.mxu0
        %v1418 = vadd.f32 %v1395, %v1417
        %1419 = vdwg.mxu0
        %s1420 = scalar_lea.vmem %s654, 32
        %v1421 = vld [vmem:[%s1420] sm:$0x7f]
        %v1423 = vsel %vm740, %v1421, 0
        %1425 = vmatpush.msra.mxu0 0.0
        %1426 = vmatpush.msra.mxu0 0.0
        %1427 = vmatpush.msra.mxu0 0.0
        %1428 = vmatpush.msra.mxu0 0.0
        %1429 = vmatpush.msra.mxu0 0.0
        %1430 = vmatpush.msra.mxu0 0.0
        %1431 = vmatpush.msra.mxu0 0.0
        %1432 = vmatpush.msra.mxu0 0.0
        %1433 = vmatpush.msra.mxu0 0.0
        %1434 = vmatpush.msra.mxu0 0.0
        %1435 = vmatpush.msra.mxu0 0.0
        %1436 = vmatpush.msra.mxu0 0.0
        %1437 = vmatpush.msra.mxu0 0.0
        %1438 = vmatpush.msra.mxu0 0.0
        %1439 = vmatpush.msra.mxu0 0.0
        %1440 = vmatpush.msra.mxu0 %v1423
        %1441 = vmatmul.f32.gmra.mxu0 %v793
        %v1442 = vpop.f32.mrf.mxu0
        %v1443 = vadd.f32 0.0, %v1442
        %1444 = vdwg.mxu0
        %v1445 = vadd.f32 %v1418, %v1443
        %s1446 = scalar_lea.vmem %s564, 96 [#allocation15]
        %v1447 = vld [vmem:[%s1446] sm:$0xff]
        %v1448 = vld [vmem:[%s1446 + $0x8] sm:$0xff]
        %v1449 = vld [vmem:[%s1446 + $0x10] sm:$0xff]
        %v1450 = vperm.slane %v1363, 0
        %v1452 = vsel %vm823, %v1445, 0
        %1454 = vmatpush.msra.mxu0 0.0
        %1455 = vmatpush.msra.mxu0 0.0
        %1456 = vmatpush.msra.mxu0 0.0
        %1457 = vmatpush.msra.mxu0 0.0
        %1458 = vmatpush.msra.mxu0 0.0
        %1459 = vmatpush.msra.mxu0 0.0
        %1460 = vmatpush.msra.mxu0 0.0
        %1461 = vmatpush.msra.mxu0 0.0
        %1462 = vmatpush.msra.mxu0 0.0
        %1463 = vmatpush.msra.mxu0 0.0
        %1464 = vmatpush.msra.mxu0 0.0
        %1465 = vmatpush.msra.mxu0 0.0
        %1466 = vmatpush.msra.mxu0 0.0
        %1467 = vmatpush.msra.mxu0 %v1449
        %1468 = vmatpush.msra.mxu0 %v1448
        %1469 = vmatpush.msra.mxu0 %v1447
        %1470 = vmatmul.f32.gmra.mxu0 %v1452
        %v1471 = vpop.f32.mrf.mxu0
        %v1472 = vadd.f32 %v1450, %v1471
        %1473 = vdwg.mxu0
        %v1474 = vtanh.pop %v1472
        %s1475 = scalar_lea.vmem %s574, 512 [#allocation16]
        %v1476 = vld [vmem:[%s1475] sm:$0xff]
        %v1477 = vld [vmem:[%s1475 + $0x8] sm:$0xff]
        %v1478 = vld [vmem:[%s1475 + $0x10] sm:$0xff]
        %v1479 = vld [vmem:[%s1475 + $0x18] sm:$0xff]
        %v1480 = vld [vmem:[%s1475 + $0x20] sm:$0xff]
        %v1481 = vld [vmem:[%s1475 + $0x28] sm:$0xff]
        %v1482 = vld [vmem:[%s1475 + $0x30] sm:$0xff]
        %v1483 = vld [vmem:[%s1475 + $0x38] sm:$0xff]
        %v1484 = vld [vmem:[%s1475 + $0x40] sm:$0xff]
        %v1485 = vld [vmem:[%s1475 + $0x48] sm:$0xff]
        %v1486 = vld [vmem:[%s1475 + $0x50] sm:$0xff]
        %v1487 = vld [vmem:[%s1475 + $0x58] sm:$0xff]
        %v1488 = vld [vmem:[%s1475 + $0x60] sm:$0xff]
        %v1489 = vld [vmem:[%s1475 + $0x68] sm:$0xff]
        %v1490 = vld [vmem:[%s1475 + $0x70] sm:$0xff]
        %v1491 = vld [vmem:[%s1475 + $0x78] sm:$0xff]
        %v1492 = vperm.slane %v1363, 1
        %1493 = vmatpush.msra.mxu0 %v1491
        %1494 = vmatpush.msra.mxu0 %v1490
        %1495 = vmatpush.msra.mxu0 %v1489
        %1496 = vmatpush.msra.mxu0 %v1488
        %1497 = vmatpush.msra.mxu0 %v1487
        %1498 = vmatpush.msra.mxu0 %v1486
        %1499 = vmatpush.msra.mxu0 %v1485
        %1500 = vmatpush.msra.mxu0 %v1484
        %1501 = vmatpush.msra.mxu0 %v1483
        %1502 = vmatpush.msra.mxu0 %v1482
        %1503 = vmatpush.msra.mxu0 %v1481
        %1504 = vmatpush.msra.mxu0 %v1480
        %1505 = vmatpush.msra.mxu0 %v1479
        %1506 = vmatpush.msra.mxu0 %v1478
        %1507 = vmatpush.msra.mxu0 %v1477
        %1508 = vmatpush.msra.mxu0 %v1476
        %1509 = vmatmul.f32.gmra.mxu0 %v1474
        %v1510 = vpop.f32.mrf.mxu0
        %v1511 = vadd.f32 %v1492, %v1510
        %1512 = vdwg.mxu0
        %v1513 = vtanh.pop %v1511
        %v1514 = vperm.slane %v1363, 2
        %v1515 = vmul.f32 %v1513, %v1514
        %v1516 = vadd.f32 %v1361, %v1515
        %v1517 = vperm.slane %v1363, 3
        %v1518 = vadd.f32 %v1516, %v1517
        %s1519 = scalar_lea.vmem %s554, 20 [#allocation14]
        %v1520 = vld [vmem:[%s1519] sm:$0xf]
        %s1521 = scalar_lea.vmem %s642, 280
        %v1522 = vld [vmem:[%s1521] sm:$0xff]
        %v1523 = vld [vmem:[%s1521 + $0x8] sm:$0xff]
        %v1524 = vld [vmem:[%s1521 + $0x10] sm:$0xff]
        %v1525 = vld [vmem:[%s1521 + $0x18] sm:$0xff]
        %v1526 = vld [vmem:[%s1521 + $0x20] sm:$0xff]
        %v1527 = vld [vmem:[%s1521 + $0x28] sm:$0xff]
        %v1528 = vld [vmem:[%s1521 + $0x30] sm:$0x7f]
        %s1529 = scalar_lea.vmem %s648, 40
        %v1530 = vld [vmem:[%s1529] sm:$0x7f]
        %v1532 = vsel %vm740, %v1530, 0
        %1534 = vmatpush.msra.mxu0 0.0
        %1535 = vmatpush.msra.mxu0 0.0
        %1536 = vmatpush.msra.mxu0 0.0
        %1537 = vmatpush.msra.mxu0 0.0
        %1538 = vmatpush.msra.mxu0 0.0
        %1539 = vmatpush.msra.mxu0 0.0
        %1540 = vmatpush.msra.mxu0 0.0
        %1541 = vmatpush.msra.mxu0 0.0
        %1542 = vmatpush.msra.mxu0 0.0
        %1543 = vmatpush.msra.mxu0 0.0
        %1544 = vmatpush.msra.mxu0 0.0
        %1545 = vmatpush.msra.mxu0 0.0
        %1546 = vmatpush.msra.mxu0 0.0
        %1547 = vmatpush.msra.mxu0 0.0
        %1548 = vmatpush.msra.mxu0 0.0
        %1549 = vmatpush.msra.mxu0 %v1532
        %1550 = vmatmul.f32.gmra.mxu0 %v738
        %v1551 = vpop.f32.mrf.mxu0
        %v1552 = vadd.f32 0.0, %v1551
        %1553 = vdwg.mxu0
        %v1555 = vsel %vm740, %v1528, 0
        %1557 = vmatpush.msra.mxu0 0.0
        %1558 = vmatpush.msra.mxu0 0.0
        %1559 = vmatpush.msra.mxu0 0.0
        %1560 = vmatpush.msra.mxu0 0.0
        %1561 = vmatpush.msra.mxu0 0.0
        %1562 = vmatpush.msra.mxu0 0.0
        %1563 = vmatpush.msra.mxu0 0.0
        %1564 = vmatpush.msra.mxu0 0.0
        %1565 = vmatpush.msra.mxu0 0.0
        %1566 = vmatpush.msra.mxu0 %v1555
        %1567 = vmatpush.msra.mxu0 %v1527
        %1568 = vmatpush.msra.mxu0 %v1526
        %1569 = vmatpush.msra.mxu0 %v1525
        %1570 = vmatpush.msra.mxu0 %v1524
        %1571 = vmatpush.msra.mxu0 %v1523
        %1572 = vmatpush.msra.mxu0 %v1522
        %1573 = vmatmul.f32.gmra.mxu0 %v766
        %v1574 = vpop.f32.mrf.mxu0
        %v1575 = vadd.f32 %v1552, %v1574
        %1576 = vdwg.mxu0
        %s1577 = scalar_lea.vmem %s654, 40
        %v1578 = vld [vmem:[%s1577] sm:$0x7f]
        %v1580 = vsel %vm740, %v1578, 0
        %1582 = vmatpush.msra.mxu0 0.0
        %1583 = vmatpush.msra.mxu0 0.0
        %1584 = vmatpush.msra.mxu0 0.0
        %1585 = vmatpush.msra.mxu0 0.0
        %1586 = vmatpush.msra.mxu0 0.0
        %1587 = vmatpush.msra.mxu0 0.0
        %1588 = vmatpush.msra.mxu0 0.0
        %1589 = vmatpush.msra.mxu0 0.0
        %1590 = vmatpush.msra.mxu0 0.0
        %1591 = vmatpush.msra.mxu0 0.0
        %1592 = vmatpush.msra.mxu0 0.0
        %1593 = vmatpush.msra.mxu0 0.0
        %1594 = vmatpush.msra.mxu0 0.0
        %1595 = vmatpush.msra.mxu0 0.0
        %1596 = vmatpush.msra.mxu0 0.0
        %1597 = vmatpush.msra.mxu0 %v1580
        %1598 = vmatmul.f32.gmra.mxu0 %v793
        %v1599 = vpop.f32.mrf.mxu0
        %v1600 = vadd.f32 0.0, %v1599
        %1601 = vdwg.mxu0
        %v1602 = vadd.f32 %v1575, %v1600
        %s1603 = scalar_lea.vmem %s564, 120 [#allocation15]
        %v1604 = vld [vmem:[%s1603] sm:$0xff]
        %v1605 = vld [vmem:[%s1603 + $0x8] sm:$0xff]
        %v1606 = vld [vmem:[%s1603 + $0x10] sm:$0xff]
        %v1607 = vperm.slane %v1520, 0
        %v1609 = vsel %vm823, %v1602, 0
        %1611 = vmatpush.msra.mxu0 0.0
        %1612 = vmatpush.msra.mxu0 0.0
        %1613 = vmatpush.msra.mxu0 0.0
        %1614 = vmatpush.msra.mxu0 0.0
        %1615 = vmatpush.msra.mxu0 0.0
        %1616 = vmatpush.msra.mxu0 0.0
        %1617 = vmatpush.msra.mxu0 0.0
        %1618 = vmatpush.msra.mxu0 0.0
        %1619 = vmatpush.msra.mxu0 0.0
        %1620 = vmatpush.msra.mxu0 0.0
        %1621 = vmatpush.msra.mxu0 0.0
        %1622 = vmatpush.msra.mxu0 0.0
        %1623 = vmatpush.msra.mxu0 0.0
        %1624 = vmatpush.msra.mxu0 %v1606
        %1625 = vmatpush.msra.mxu0 %v1605
        %1626 = vmatpush.msra.mxu0 %v1604
        %1627 = vmatmul.f32.gmra.mxu0 %v1609
        %v1628 = vpop.f32.mrf.mxu0
        %v1629 = vadd.f32 %v1607, %v1628
        %1630 = vdwg.mxu0
        %v1631 = vtanh.pop %v1629
        %s1632 = scalar_lea.vmem %s574, 640 [#allocation16]
        %v1633 = vld [vmem:[%s1632] sm:$0xff]
        %v1634 = vld [vmem:[%s1632 + $0x8] sm:$0xff]
        %v1635 = vld [vmem:[%s1632 + $0x10] sm:$0xff]
        %v1636 = vld [vmem:[%s1632 + $0x18] sm:$0xff]
        %v1637 = vld [vmem:[%s1632 + $0x20] sm:$0xff]
        %v1638 = vld [vmem:[%s1632 + $0x28] sm:$0xff]
        %v1639 = vld [vmem:[%s1632 + $0x30] sm:$0xff]
        %v1640 = vld [vmem:[%s1632 + $0x38] sm:$0xff]
        %v1641 = vld [vmem:[%s1632 + $0x40] sm:$0xff]
        %v1642 = vld [vmem:[%s1632 + $0x48] sm:$0xff]
        %v1643 = vld [vmem:[%s1632 + $0x50] sm:$0xff]
        %v1644 = vld [vmem:[%s1632 + $0x58] sm:$0xff]
        %v1645 = vld [vmem:[%s1632 + $0x60] sm:$0xff]
        %v1646 = vld [vmem:[%s1632 + $0x68] sm:$0xff]
        %v1647 = vld [vmem:[%s1632 + $0x70] sm:$0xff]
        %v1648 = vld [vmem:[%s1632 + $0x78] sm:$0xff]
        %v1649 = vperm.slane %v1520, 1
        %1650 = vmatpush.msra.mxu0 %v1648
        %1651 = vmatpush.msra.mxu0 %v1647
        %1652 = vmatpush.msra.mxu0 %v1646
        %1653 = vmatpush.msra.mxu0 %v1645
        %1654 = vmatpush.msra.mxu0 %v1644
        %1655 = vmatpush.msra.mxu0 %v1643
        %1656 = vmatpush.msra.mxu0 %v1642
        %1657 = vmatpush.msra.mxu0 %v1641
        %1658 = vmatpush.msra.mxu0 %v1640
        %1659 = vmatpush.msra.mxu0 %v1639
        %1660 = vmatpush.msra.mxu0 %v1638
        %1661 = vmatpush.msra.mxu0 %v1637
        %1662 = vmatpush.msra.mxu0 %v1636
        %1663 = vmatpush.msra.mxu0 %v1635
        %1664 = vmatpush.msra.mxu0 %v1634
        %1665 = vmatpush.msra.mxu0 %v1633
        %1666 = vmatmul.f32.gmra.mxu0 %v1631
        %v1667 = vpop.f32.mrf.mxu0
        %v1668 = vadd.f32 %v1649, %v1667
        %1669 = vdwg.mxu0
        %v1670 = vtanh.pop %v1668
        %v1671 = vperm.slane %v1520, 2
        %v1672 = vmul.f32 %v1670, %v1671
        %v1673 = vadd.f32 %v1518, %v1672
        %v1674 = vperm.slane %v1520, 3
        %v1675 = vadd.f32 %v1673, %v1674
        %s1676 = scalar_lea.vmem %s554, 24 [#allocation14]
        %v1677 = vld [vmem:[%s1676] sm:$0xf]
        %s1678 = scalar_lea.vmem %s642, 336
        %v1679 = vld [vmem:[%s1678] sm:$0xff]
        %v1680 = vld [vmem:[%s1678 + $0x8] sm:$0xff]
        %v1681 = vld [vmem:[%s1678 + $0x10] sm:$0xff]
        %v1682 = vld [vmem:[%s1678 + $0x18] sm:$0xff]
        %v1683 = vld [vmem:[%s1678 + $0x20] sm:$0xff]
        %v1684 = vld [vmem:[%s1678 + $0x28] sm:$0xff]
        %v1685 = vld [vmem:[%s1678 + $0x30] sm:$0x7f]
        %s1686 = scalar_lea.vmem %s648, 48
        %v1687 = vld [vmem:[%s1686] sm:$0x7f]
        %v1689 = vsel %vm740, %v1687, 0
        %1691 = vmatpush.msra.mxu0 0.0
        %1692 = vmatpush.msra.mxu0 0.0
        %1693 = vmatpush.msra.mxu0 0.0
        %1694 = vmatpush.msra.mxu0 0.0
        %1695 = vmatpush.msra.mxu0 0.0
        %1696 = vmatpush.msra.mxu0 0.0
        %1697 = vmatpush.msra.mxu0 0.0
        %1698 = vmatpush.msra.mxu0 0.0
        %1699 = vmatpush.msra.mxu0 0.0
        %1700 = vmatpush.msra.mxu0 0.0
        %1701 = vmatpush.msra.mxu0 0.0
        %1702 = vmatpush.msra.mxu0 0.0
        %1703 = vmatpush.msra.mxu0 0.0
        %1704 = vmatpush.msra.mxu0 0.0
        %1705 = vmatpush.msra.mxu0 0.0
        %1706 = vmatpush.msra.mxu0 %v1689
        %1707 = vmatmul.f32.gmra.mxu0 %v738
        %v1708 = vpop.f32.mrf.mxu0
        %v1709 = vadd.f32 0.0, %v1708
        %1710 = vdwg.mxu0
        %v1712 = vsel %vm740, %v1685, 0
        %1714 = vmatpush.msra.mxu0 0.0
        %1715 = vmatpush.msra.mxu0 0.0
        %1716 = vmatpush.msra.mxu0 0.0
        %1717 = vmatpush.msra.mxu0 0.0
        %1718 = vmatpush.msra.mxu0 0.0
        %1719 = vmatpush.msra.mxu0 0.0
        %1720 = vmatpush.msra.mxu0 0.0
        %1721 = vmatpush.msra.mxu0 0.0
        %1722 = vmatpush.msra.mxu0 0.0
        %1723 = vmatpush.msra.mxu0 %v1712
        %1724 = vmatpush.msra.mxu0 %v1684
        %1725 = vmatpush.msra.mxu0 %v1683
        %1726 = vmatpush.msra.mxu0 %v1682
        %1727 = vmatpush.msra.mxu0 %v1681
        %1728 = vmatpush.msra.mxu0 %v1680
        %1729 = vmatpush.msra.mxu0 %v1679
        %1730 = vmatmul.f32.gmra.mxu0 %v766
        %v1731 = vpop.f32.mrf.mxu0
        %v1732 = vadd.f32 %v1709, %v1731
        %1733 = vdwg.mxu0
        %s1734 = scalar_lea.vmem %s654, 48
        %v1735 = vld [vmem:[%s1734] sm:$0x7f]
        %v1737 = vsel %vm740, %v1735, 0
        %1739 = vmatpush.msra.mxu0 0.0
        %1740 = vmatpush.msra.mxu0 0.0
        %1741 = vmatpush.msra.mxu0 0.0
        %1742 = vmatpush.msra.mxu0 0.0
        %1743 = vmatpush.msra.mxu0 0.0
        %1744 = vmatpush.msra.mxu0 0.0
        %1745 = vmatpush.msra.mxu0 0.0
        %1746 = vmatpush.msra.mxu0 0.0
        %1747 = vmatpush.msra.mxu0 0.0
        %1748 = vmatpush.msra.mxu0 0.0
        %1749 = vmatpush.msra.mxu0 0.0
        %1750 = vmatpush.msra.mxu0 0.0
        %1751 = vmatpush.msra.mxu0 0.0
        %1752 = vmatpush.msra.mxu0 0.0
        %1753 = vmatpush.msra.mxu0 0.0
        %1754 = vmatpush.msra.mxu0 %v1737
        %1755 = vmatmul.f32.gmra.mxu0 %v793
        %v1756 = vpop.f32.mrf.mxu0
        %v1757 = vadd.f32 0.0, %v1756
        %1758 = vdwg.mxu0
        %v1759 = vadd.f32 %v1732, %v1757
        %s1760 = scalar_lea.vmem %s564, 144 [#allocation15]
        %v1761 = vld [vmem:[%s1760] sm:$0xff]
        %v1762 = vld [vmem:[%s1760 + $0x8] sm:$0xff]
        %v1763 = vld [vmem:[%s1760 + $0x10] sm:$0xff]
        %v1764 = vperm.slane %v1677, 0
        %v1766 = vsel %vm823, %v1759, 0
        %1768 = vmatpush.msra.mxu0 0.0
        %1769 = vmatpush.msra.mxu0 0.0
        %1770 = vmatpush.msra.mxu0 0.0
        %1771 = vmatpush.msra.mxu0 0.0
        %1772 = vmatpush.msra.mxu0 0.0
        %1773 = vmatpush.msra.mxu0 0.0
        %1774 = vmatpush.msra.mxu0 0.0
        %1775 = vmatpush.msra.mxu0 0.0
        %1776 = vmatpush.msra.mxu0 0.0
        %1777 = vmatpush.msra.mxu0 0.0
        %1778 = vmatpush.msra.mxu0 0.0
        %1779 = vmatpush.msra.mxu0 0.0
        %1780 = vmatpush.msra.mxu0 0.0
        %1781 = vmatpush.msra.mxu0 %v1763
        %1782 = vmatpush.msra.mxu0 %v1762
        %1783 = vmatpush.msra.mxu0 %v1761
        %1784 = vmatmul.f32.gmra.mxu0 %v1766
        %v1785 = vpop.f32.mrf.mxu0
        %v1786 = vadd.f32 %v1764, %v1785
        %1787 = vdwg.mxu0
        %v1788 = vtanh.pop %v1786
        %s1789 = scalar_lea.vmem %s574, 768 [#allocation16]
        %v1790 = vld [vmem:[%s1789] sm:$0xff]
        %v1791 = vld [vmem:[%s1789 + $0x8] sm:$0xff]
        %v1792 = vld [vmem:[%s1789 + $0x10] sm:$0xff]
        %v1793 = vld [vmem:[%s1789 + $0x18] sm:$0xff]
        %v1794 = vld [vmem:[%s1789 + $0x20] sm:$0xff]
        %v1795 = vld [vmem:[%s1789 + $0x28] sm:$0xff]
        %v1796 = vld [vmem:[%s1789 + $0x30] sm:$0xff]
        %v1797 = vld [vmem:[%s1789 + $0x38] sm:$0xff]
        %v1798 = vld [vmem:[%s1789 + $0x40] sm:$0xff]
        %v1799 = vld [vmem:[%s1789 + $0x48] sm:$0xff]
        %v1800 = vld [vmem:[%s1789 + $0x50] sm:$0xff]
        %v1801 = vld [vmem:[%s1789 + $0x58] sm:$0xff]
        %v1802 = vld [vmem:[%s1789 + $0x60] sm:$0xff]
        %v1803 = vld [vmem:[%s1789 + $0x68] sm:$0xff]
        %v1804 = vld [vmem:[%s1789 + $0x70] sm:$0xff]
        %v1805 = vld [vmem:[%s1789 + $0x78] sm:$0xff]
        %v1806 = vperm.slane %v1677, 1
        %1807 = vmatpush.msra.mxu0 %v1805
        %1808 = vmatpush.msra.mxu0 %v1804
        %1809 = vmatpush.msra.mxu0 %v1803
        %1810 = vmatpush.msra.mxu0 %v1802
        %1811 = vmatpush.msra.mxu0 %v1801
        %1812 = vmatpush.msra.mxu0 %v1800
        %1813 = vmatpush.msra.mxu0 %v1799
        %1814 = vmatpush.msra.mxu0 %v1798
        %1815 = vmatpush.msra.mxu0 %v1797
        %1816 = vmatpush.msra.mxu0 %v1796
        %1817 = vmatpush.msra.mxu0 %v1795
        %1818 = vmatpush.msra.mxu0 %v1794
        %1819 = vmatpush.msra.mxu0 %v1793
        %1820 = vmatpush.msra.mxu0 %v1792
        %1821 = vmatpush.msra.mxu0 %v1791
        %1822 = vmatpush.msra.mxu0 %v1790
        %1823 = vmatmul.f32.gmra.mxu0 %v1788
        %v1824 = vpop.f32.mrf.mxu0
        %v1825 = vadd.f32 %v1806, %v1824
        %1826 = vdwg.mxu0
        %v1827 = vtanh.pop %v1825
        %v1828 = vperm.slane %v1677, 2
        %v1829 = vmul.f32 %v1827, %v1828
        %v1830 = vadd.f32 %v1675, %v1829
        %v1831 = vperm.slane %v1677, 3
        %v1832 = vadd.f32 %v1830, %v1831
        %s1833 = scalar_lea.vmem %s554, 28 [#allocation14]
        %v1834 = vld [vmem:[%s1833] sm:$0xf]
        %s1835 = scalar_lea.vmem %s642, 392
        %v1836 = vld [vmem:[%s1835] sm:$0xff]
        %v1837 = vld [vmem:[%s1835 + $0x8] sm:$0xff]
        %v1838 = vld [vmem:[%s1835 + $0x10] sm:$0xff]
        %v1839 = vld [vmem:[%s1835 + $0x18] sm:$0xff]
        %v1840 = vld [vmem:[%s1835 + $0x20] sm:$0xff]
        %v1841 = vld [vmem:[%s1835 + $0x28] sm:$0xff]
        %v1842 = vld [vmem:[%s1835 + $0x30] sm:$0x7f]
        %s1843 = scalar_lea.vmem %s648, 56
        %v1844 = vld [vmem:[%s1843] sm:$0x7f]
        %v1846 = vsel %vm740, %v1844, 0
        %1848 = vmatpush.msra.mxu0 0.0
        %1849 = vmatpush.msra.mxu0 0.0
        %1850 = vmatpush.msra.mxu0 0.0
        %1851 = vmatpush.msra.mxu0 0.0
        %1852 = vmatpush.msra.mxu0 0.0
        %1853 = vmatpush.msra.mxu0 0.0
        %1854 = vmatpush.msra.mxu0 0.0
        %1855 = vmatpush.msra.mxu0 0.0
        %1856 = vmatpush.msra.mxu0 0.0
        %1857 = vmatpush.msra.mxu0 0.0
        %1858 = vmatpush.msra.mxu0 0.0
        %1859 = vmatpush.msra.mxu0 0.0
        %1860 = vmatpush.msra.mxu0 0.0
        %1861 = vmatpush.msra.mxu0 0.0
        %1862 = vmatpush.msra.mxu0 0.0
        %1863 = vmatpush.msra.mxu0 %v1846
        %1864 = vmatmul.f32.gmra.mxu0 %v738
        %v1865 = vpop.f32.mrf.mxu0
        %v1866 = vadd.f32 0.0, %v1865
        %1867 = vdwg.mxu0
        %v1869 = vsel %vm740, %v1842, 0
        %1871 = vmatpush.msra.mxu0 0.0
        %1872 = vmatpush.msra.mxu0 0.0
        %1873 = vmatpush.msra.mxu0 0.0
        %1874 = vmatpush.msra.mxu0 0.0
        %1875 = vmatpush.msra.mxu0 0.0
        %1876 = vmatpush.msra.mxu0 0.0
        %1877 = vmatpush.msra.mxu0 0.0
        %1878 = vmatpush.msra.mxu0 0.0
        %1879 = vmatpush.msra.mxu0 0.0
        %1880 = vmatpush.msra.mxu0 %v1869
        %1881 = vmatpush.msra.mxu0 %v1841
        %1882 = vmatpush.msra.mxu0 %v1840
        %1883 = vmatpush.msra.mxu0 %v1839
        %1884 = vmatpush.msra.mxu0 %v1838
        %1885 = vmatpush.msra.mxu0 %v1837
        %1886 = vmatpush.msra.mxu0 %v1836
        %1887 = vmatmul.f32.gmra.mxu0 %v766
        %v1888 = vpop.f32.mrf.mxu0
        %v1889 = vadd.f32 %v1866, %v1888
        %1890 = vdwg.mxu0
        %s1891 = scalar_lea.vmem %s654, 56
        %v1892 = vld [vmem:[%s1891] sm:$0x7f]
        %v1894 = vsel %vm740, %v1892, 0
        %1896 = vmatpush.msra.mxu0 0.0
        %1897 = vmatpush.msra.mxu0 0.0
        %1898 = vmatpush.msra.mxu0 0.0
        %1899 = vmatpush.msra.mxu0 0.0
        %1900 = vmatpush.msra.mxu0 0.0
        %1901 = vmatpush.msra.mxu0 0.0
        %1902 = vmatpush.msra.mxu0 0.0
        %1903 = vmatpush.msra.mxu0 0.0
        %1904 = vmatpush.msra.mxu0 0.0
        %1905 = vmatpush.msra.mxu0 0.0
        %1906 = vmatpush.msra.mxu0 0.0
        %1907 = vmatpush.msra.mxu0 0.0
        %1908 = vmatpush.msra.mxu0 0.0
        %1909 = vmatpush.msra.mxu0 0.0
        %1910 = vmatpush.msra.mxu0 0.0
        %1911 = vmatpush.msra.mxu0 %v1894
        %1912 = vmatmul.f32.gmra.mxu0 %v793
        %v1913 = vpop.f32.mrf.mxu0
        %v1914 = vadd.f32 0.0, %v1913
        %1915 = vdwg.mxu0
        %v1916 = vadd.f32 %v1889, %v1914
        %s1917 = scalar_lea.vmem %s564, 168 [#allocation15]
        %v1918 = vld [vmem:[%s1917] sm:$0xff]
        %v1919 = vld [vmem:[%s1917 + $0x8] sm:$0xff]
        %v1920 = vld [vmem:[%s1917 + $0x10] sm:$0xff]
        %v1921 = vperm.slane %v1834, 0
        %v1923 = vsel %vm823, %v1916, 0
        %1925 = vmatpush.msra.mxu0 0.0
        %1926 = vmatpush.msra.mxu0 0.0
        %1927 = vmatpush.msra.mxu0 0.0
        %1928 = vmatpush.msra.mxu0 0.0
        %1929 = vmatpush.msra.mxu0 0.0
        %1930 = vmatpush.msra.mxu0 0.0
        %1931 = vmatpush.msra.mxu0 0.0
        %1932 = vmatpush.msra.mxu0 0.0
        %1933 = vmatpush.msra.mxu0 0.0
        %1934 = vmatpush.msra.mxu0 0.0
        %1935 = vmatpush.msra.mxu0 0.0
        %1936 = vmatpush.msra.mxu0 0.0
        %1937 = vmatpush.msra.mxu0 0.0
        %1938 = vmatpush.msra.mxu0 %v1920
        %1939 = vmatpush.msra.mxu0 %v1919
        %1940 = vmatpush.msra.mxu0 %v1918
        %1941 = vmatmul.f32.gmra.mxu0 %v1923
        %v1942 = vpop.f32.mrf.mxu0
        %v1943 = vadd.f32 %v1921, %v1942
        %1944 = vdwg.mxu0
        %v1945 = vtanh.pop %v1943
        %s1946 = scalar_lea.vmem %s574, 896 [#allocation16]
        %v1947 = vld [vmem:[%s1946] sm:$0xff]
        %v1948 = vld [vmem:[%s1946 + $0x8] sm:$0xff]
        %v1949 = vld [vmem:[%s1946 + $0x10] sm:$0xff]
        %v1950 = vld [vmem:[%s1946 + $0x18] sm:$0xff]
        %v1951 = vld [vmem:[%s1946 + $0x20] sm:$0xff]
        %v1952 = vld [vmem:[%s1946 + $0x28] sm:$0xff]
        %v1953 = vld [vmem:[%s1946 + $0x30] sm:$0xff]
        %v1954 = vld [vmem:[%s1946 + $0x38] sm:$0xff]
        %v1955 = vld [vmem:[%s1946 + $0x40] sm:$0xff]
        %v1956 = vld [vmem:[%s1946 + $0x48] sm:$0xff]
        %v1957 = vld [vmem:[%s1946 + $0x50] sm:$0xff]
        %v1958 = vld [vmem:[%s1946 + $0x58] sm:$0xff]
        %v1959 = vld [vmem:[%s1946 + $0x60] sm:$0xff]
        %v1960 = vld [vmem:[%s1946 + $0x68] sm:$0xff]
        %v1961 = vld [vmem:[%s1946 + $0x70] sm:$0xff]
        %v1962 = vld [vmem:[%s1946 + $0x78] sm:$0xff]
        %v1963 = vperm.slane %v1834, 1
        %1964 = vmatpush.msra.mxu0 %v1962
        %1965 = vmatpush.msra.mxu0 %v1961
        %1966 = vmatpush.msra.mxu0 %v1960
        %1967 = vmatpush.msra.mxu0 %v1959
        %1968 = vmatpush.msra.mxu0 %v1958
        %1969 = vmatpush.msra.mxu0 %v1957
        %1970 = vmatpush.msra.mxu0 %v1956
        %1971 = vmatpush.msra.mxu0 %v1955
        %1972 = vmatpush.msra.mxu0 %v1954
        %1973 = vmatpush.msra.mxu0 %v1953
        %1974 = vmatpush.msra.mxu0 %v1952
        %1975 = vmatpush.msra.mxu0 %v1951
        %1976 = vmatpush.msra.mxu0 %v1950
        %1977 = vmatpush.msra.mxu0 %v1949
        %1978 = vmatpush.msra.mxu0 %v1948
        %1979 = vmatpush.msra.mxu0 %v1947
        %1980 = vmatmul.f32.gmra.mxu0 %v1945
        %v1981 = vpop.f32.mrf.mxu0
        %v1982 = vadd.f32 %v1963, %v1981
        %1983 = vdwg.mxu0
        %v1984 = vtanh.pop %v1982
        %v1985 = vperm.slane %v1834, 2
        %v1986 = vmul.f32 %v1984, %v1985
        %v1987 = vadd.f32 %v1832, %v1986
        %v1988 = vperm.slane %v1834, 3
        %v1989 = vadd.f32 %v1987, %v1988
        %s1990 = scalar_lea.vmem %s554, 32 [#allocation14]
        %v1991 = vld [vmem:[%s1990] sm:$0xf]
        %s1992 = scalar_lea.vmem %s642, 448
        %v1993 = vld [vmem:[%s1992] sm:$0xff]
        %v1994 = vld [vmem:[%s1992 + $0x8] sm:$0xff]
        %v1995 = vld [vmem:[%s1992 + $0x10] sm:$0xff]
        %v1996 = vld [vmem:[%s1992 + $0x18] sm:$0xff]
        %v1997 = vld [vmem:[%s1992 + $0x20] sm:$0xff]
        %v1998 = vld [vmem:[%s1992 + $0x28] sm:$0xff]
        %v1999 = vld [vmem:[%s1992 + $0x30] sm:$0x7f]
        %s2000 = scalar_lea.vmem %s648, 64
        %v2001 = vld [vmem:[%s2000] sm:$0x7f]
        %v2003 = vsel %vm740, %v2001, 0
        %2005 = vmatpush.msra.mxu0 0.0
        %2006 = vmatpush.msra.mxu0 0.0
        %2007 = vmatpush.msra.mxu0 0.0
        %2008 = vmatpush.msra.mxu0 0.0
        %2009 = vmatpush.msra.mxu0 0.0
        %2010 = vmatpush.msra.mxu0 0.0
        %2011 = vmatpush.msra.mxu0 0.0
        %2012 = vmatpush.msra.mxu0 0.0
        %2013 = vmatpush.msra.mxu0 0.0
        %2014 = vmatpush.msra.mxu0 0.0
        %2015 = vmatpush.msra.mxu0 0.0
        %2016 = vmatpush.msra.mxu0 0.0
        %2017 = vmatpush.msra.mxu0 0.0
        %2018 = vmatpush.msra.mxu0 0.0
        %2019 = vmatpush.msra.mxu0 0.0
        %2020 = vmatpush.msra.mxu0 %v2003
        %2021 = vmatmul.f32.gmra.mxu0 %v738
        %v2022 = vpop.f32.mrf.mxu0
        %v2023 = vadd.f32 0.0, %v2022
        %2024 = vdwg.mxu0
        %v2026 = vsel %vm740, %v1999, 0
        %2028 = vmatpush.msra.mxu0 0.0
        %2029 = vmatpush.msra.mxu0 0.0
        %2030 = vmatpush.msra.mxu0 0.0
        %2031 = vmatpush.msra.mxu0 0.0
        %2032 = vmatpush.msra.mxu0 0.0
        %2033 = vmatpush.msra.mxu0 0.0
        %2034 = vmatpush.msra.mxu0 0.0
        %2035 = vmatpush.msra.mxu0 0.0
        %2036 = vmatpush.msra.mxu0 0.0
        %2037 = vmatpush.msra.mxu0 %v2026
        %2038 = vmatpush.msra.mxu0 %v1998
        %2039 = vmatpush.msra.mxu0 %v1997
        %2040 = vmatpush.msra.mxu0 %v1996
        %2041 = vmatpush.msra.mxu0 %v1995
        %2042 = vmatpush.msra.mxu0 %v1994
        %2043 = vmatpush.msra.mxu0 %v1993
        %2044 = vmatmul.f32.gmra.mxu0 %v766
        %v2045 = vpop.f32.mrf.mxu0
        %v2046 = vadd.f32 %v2023, %v2045
        %2047 = vdwg.mxu0
        %s2048 = scalar_lea.vmem %s654, 64
        %v2049 = vld [vmem:[%s2048] sm:$0x7f]
        %v2051 = vsel %vm740, %v2049, 0
        %2053 = vmatpush.msra.mxu0 0.0
        %2054 = vmatpush.msra.mxu0 0.0
        %2055 = vmatpush.msra.mxu0 0.0
        %2056 = vmatpush.msra.mxu0 0.0
        %2057 = vmatpush.msra.mxu0 0.0
        %2058 = vmatpush.msra.mxu0 0.0
        %2059 = vmatpush.msra.mxu0 0.0
        %2060 = vmatpush.msra.mxu0 0.0
        %2061 = vmatpush.msra.mxu0 0.0
        %2062 = vmatpush.msra.mxu0 0.0
        %2063 = vmatpush.msra.mxu0 0.0
        %2064 = vmatpush.msra.mxu0 0.0
        %2065 = vmatpush.msra.mxu0 0.0
        %2066 = vmatpush.msra.mxu0 0.0
        %2067 = vmatpush.msra.mxu0 0.0
        %2068 = vmatpush.msra.mxu0 %v2051
        %2069 = vmatmul.f32.gmra.mxu0 %v793
        %v2070 = vpop.f32.mrf.mxu0
        %v2071 = vadd.f32 0.0, %v2070
        %2072 = vdwg.mxu0
        %v2073 = vadd.f32 %v2046, %v2071
        %s2074 = scalar_lea.vmem %s564, 192 [#allocation15]
        %v2075 = vld [vmem:[%s2074] sm:$0xff]
        %v2076 = vld [vmem:[%s2074 + $0x8] sm:$0xff]
        %v2077 = vld [vmem:[%s2074 + $0x10] sm:$0xff]
        %v2078 = vperm.slane %v1991, 0
        %v2080 = vsel %vm823, %v2073, 0
        %2082 = vmatpush.msra.mxu0 0.0
        %2083 = vmatpush.msra.mxu0 0.0
        %2084 = vmatpush.msra.mxu0 0.0
        %2085 = vmatpush.msra.mxu0 0.0
        %2086 = vmatpush.msra.mxu0 0.0
        %2087 = vmatpush.msra.mxu0 0.0
        %2088 = vmatpush.msra.mxu0 0.0
        %2089 = vmatpush.msra.mxu0 0.0
        %2090 = vmatpush.msra.mxu0 0.0
        %2091 = vmatpush.msra.mxu0 0.0
        %2092 = vmatpush.msra.mxu0 0.0
        %2093 = vmatpush.msra.mxu0 0.0
        %2094 = vmatpush.msra.mxu0 0.0
        %2095 = vmatpush.msra.mxu0 %v2077
        %2096 = vmatpush.msra.mxu0 %v2076
        %2097 = vmatpush.msra.mxu0 %v2075
        %2098 = vmatmul.f32.gmra.mxu0 %v2080
        %v2099 = vpop.f32.mrf.mxu0
        %v2100 = vadd.f32 %v2078, %v2099
        %2101 = vdwg.mxu0
        %v2102 = vtanh.pop %v2100
        %s2103 = scalar_lea.vmem %s574, 1024 [#allocation16]
        %v2104 = vld [vmem:[%s2103] sm:$0xff]
        %v2105 = vld [vmem:[%s2103 + $0x8] sm:$0xff]
        %v2106 = vld [vmem:[%s2103 + $0x10] sm:$0xff]
        %v2107 = vld [vmem:[%s2103 + $0x18] sm:$0xff]
        %v2108 = vld [vmem:[%s2103 + $0x20] sm:$0xff]
        %v2109 = vld [vmem:[%s2103 + $0x28] sm:$0xff]
        %v2110 = vld [vmem:[%s2103 + $0x30] sm:$0xff]
        %v2111 = vld [vmem:[%s2103 + $0x38] sm:$0xff]
        %v2112 = vld [vmem:[%s2103 + $0x40] sm:$0xff]
        %v2113 = vld [vmem:[%s2103 + $0x48] sm:$0xff]
        %v2114 = vld [vmem:[%s2103 + $0x50] sm:$0xff]
        %v2115 = vld [vmem:[%s2103 + $0x58] sm:$0xff]
        %v2116 = vld [vmem:[%s2103 + $0x60] sm:$0xff]
        %v2117 = vld [vmem:[%s2103 + $0x68] sm:$0xff]
        %v2118 = vld [vmem:[%s2103 + $0x70] sm:$0xff]
        %v2119 = vld [vmem:[%s2103 + $0x78] sm:$0xff]
        %v2120 = vperm.slane %v1991, 1
        %2121 = vmatpush.msra.mxu0 %v2119
        %2122 = vmatpush.msra.mxu0 %v2118
        %2123 = vmatpush.msra.mxu0 %v2117
        %2124 = vmatpush.msra.mxu0 %v2116
        %2125 = vmatpush.msra.mxu0 %v2115
        %2126 = vmatpush.msra.mxu0 %v2114
        %2127 = vmatpush.msra.mxu0 %v2113
        %2128 = vmatpush.msra.mxu0 %v2112
        %2129 = vmatpush.msra.mxu0 %v2111
        %2130 = vmatpush.msra.mxu0 %v2110
        %2131 = vmatpush.msra.mxu0 %v2109
        %2132 = vmatpush.msra.mxu0 %v2108
        %2133 = vmatpush.msra.mxu0 %v2107
        %2134 = vmatpush.msra.mxu0 %v2106
        %2135 = vmatpush.msra.mxu0 %v2105
        %2136 = vmatpush.msra.mxu0 %v2104
        %2137 = vmatmul.f32.gmra.mxu0 %v2102
        %v2138 = vpop.f32.mrf.mxu0
        %v2139 = vadd.f32 %v2120, %v2138
        %2140 = vdwg.mxu0
        %v2141 = vtanh.pop %v2139
        %v2142 = vperm.slane %v1991, 2
        %v2143 = vmul.f32 %v2141, %v2142
        %v2144 = vadd.f32 %v1989, %v2143
        %v2145 = vperm.slane %v1991, 3
        %v2146 = vadd.f32 %v2144, %v2145
        %s2147 = scalar_lea.vmem %s554, 36 [#allocation14]
        %v2148 = vld [vmem:[%s2147] sm:$0xf]
        %s2149 = scalar_lea.vmem %s642, 504
        %v2150 = vld [vmem:[%s2149] sm:$0xff]
        %v2151 = vld [vmem:[%s2149 + $0x8] sm:$0xff]
        %v2152 = vld [vmem:[%s2149 + $0x10] sm:$0xff]
        %v2153 = vld [vmem:[%s2149 + $0x18] sm:$0xff]
        %v2154 = vld [vmem:[%s2149 + $0x20] sm:$0xff]
        %v2155 = vld [vmem:[%s2149 + $0x28] sm:$0xff]
        %v2156 = vld [vmem:[%s2149 + $0x30] sm:$0x7f]
        %s2157 = scalar_lea.vmem %s648, 72
        %v2158 = vld [vmem:[%s2157] sm:$0x7f]
        %v2160 = vsel %vm740, %v2158, 0
        %2162 = vmatpush.msra.mxu0 0.0
        %2163 = vmatpush.msra.mxu0 0.0
        %2164 = vmatpush.msra.mxu0 0.0
        %2165 = vmatpush.msra.mxu0 0.0
        %2166 = vmatpush.msra.mxu0 0.0
        %2167 = vmatpush.msra.mxu0 0.0
        %2168 = vmatpush.msra.mxu0 0.0
        %2169 = vmatpush.msra.mxu0 0.0
        %2170 = vmatpush.msra.mxu0 0.0
        %2171 = vmatpush.msra.mxu0 0.0
        %2172 = vmatpush.msra.mxu0 0.0
        %2173 = vmatpush.msra.mxu0 0.0
        %2174 = vmatpush.msra.mxu0 0.0
        %2175 = vmatpush.msra.mxu0 0.0
        %2176 = vmatpush.msra.mxu0 0.0
        %2177 = vmatpush.msra.mxu0 %v2160
        %2178 = vmatmul.f32.gmra.mxu0 %v738
        %v2179 = vpop.f32.mrf.mxu0
        %v2180 = vadd.f32 0.0, %v2179
        %2181 = vdwg.mxu0
        %v2183 = vsel %vm740, %v2156, 0
        %2185 = vmatpush.msra.mxu0 0.0
        %2186 = vmatpush.msra.mxu0 0.0
        %2187 = vmatpush.msra.mxu0 0.0
        %2188 = vmatpush.msra.mxu0 0.0
        %2189 = vmatpush.msra.mxu0 0.0
        %2190 = vmatpush.msra.mxu0 0.0
        %2191 = vmatpush.msra.mxu0 0.0
        %2192 = vmatpush.msra.mxu0 0.0
        %2193 = vmatpush.msra.mxu0 0.0
        %2194 = vmatpush.msra.mxu0 %v2183
        %2195 = vmatpush.msra.mxu0 %v2155
        %2196 = vmatpush.msra.mxu0 %v2154
        %2197 = vmatpush.msra.mxu0 %v2153
        %2198 = vmatpush.msra.mxu0 %v2152
        %2199 = vmatpush.msra.mxu0 %v2151
        %2200 = vmatpush.msra.mxu0 %v2150
        %2201 = vmatmul.f32.gmra.mxu0 %v766
        %v2202 = vpop.f32.mrf.mxu0
        %v2203 = vadd.f32 %v2180, %v2202
        %2204 = vdwg.mxu0
        %s2205 = scalar_lea.vmem %s654, 72
        %v2206 = vld [vmem:[%s2205] sm:$0x7f]
        %v2208 = vsel %vm740, %v2206, 0
        %2210 = vmatpush.msra.mxu0 0.0
        %2211 = vmatpush.msra.mxu0 0.0
        %2212 = vmatpush.msra.mxu0 0.0
        %2213 = vmatpush.msra.mxu0 0.0
        %2214 = vmatpush.msra.mxu0 0.0
        %2215 = vmatpush.msra.mxu0 0.0
        %2216 = vmatpush.msra.mxu0 0.0
        %2217 = vmatpush.msra.mxu0 0.0
        %2218 = vmatpush.msra.mxu0 0.0
        %2219 = vmatpush.msra.mxu0 0.0
        %2220 = vmatpush.msra.mxu0 0.0
        %2221 = vmatpush.msra.mxu0 0.0
        %2222 = vmatpush.msra.mxu0 0.0
        %2223 = vmatpush.msra.mxu0 0.0
        %2224 = vmatpush.msra.mxu0 0.0
        %2225 = vmatpush.msra.mxu0 %v2208
        %2226 = vmatmul.f32.gmra.mxu0 %v793
        %v2227 = vpop.f32.mrf.mxu0
        %v2228 = vadd.f32 0.0, %v2227
        %2229 = vdwg.mxu0
        %v2230 = vadd.f32 %v2203, %v2228
        %s2231 = scalar_lea.vmem %s564, 216 [#allocation15]
        %v2232 = vld [vmem:[%s2231] sm:$0xff]
        %v2233 = vld [vmem:[%s2231 + $0x8] sm:$0xff]
        %v2234 = vld [vmem:[%s2231 + $0x10] sm:$0xff]
        %v2235 = vperm.slane %v2148, 0
        %v2237 = vsel %vm823, %v2230, 0
        %2239 = vmatpush.msra.mxu0 0.0
        %2240 = vmatpush.msra.mxu0 0.0
        %2241 = vmatpush.msra.mxu0 0.0
        %2242 = vmatpush.msra.mxu0 0.0
        %2243 = vmatpush.msra.mxu0 0.0
        %2244 = vmatpush.msra.mxu0 0.0
        %2245 = vmatpush.msra.mxu0 0.0
        %2246 = vmatpush.msra.mxu0 0.0
        %2247 = vmatpush.msra.mxu0 0.0
        %2248 = vmatpush.msra.mxu0 0.0
        %2249 = vmatpush.msra.mxu0 0.0
        %2250 = vmatpush.msra.mxu0 0.0
        %2251 = vmatpush.msra.mxu0 0.0
        %2252 = vmatpush.msra.mxu0 %v2234
        %2253 = vmatpush.msra.mxu0 %v2233
        %2254 = vmatpush.msra.mxu0 %v2232
        %2255 = vmatmul.f32.gmra.mxu0 %v2237
        %v2256 = vpop.f32.mrf.mxu0
        %v2257 = vadd.f32 %v2235, %v2256
        %2258 = vdwg.mxu0
        %v2259 = vtanh.pop %v2257
        %s2260 = scalar_lea.vmem %s574, 1152 [#allocation16]
        %v2261 = vld [vmem:[%s2260] sm:$0xff]
        %v2262 = vld [vmem:[%s2260 + $0x8] sm:$0xff]
        %v2263 = vld [vmem:[%s2260 + $0x10] sm:$0xff]
        %v2264 = vld [vmem:[%s2260 + $0x18] sm:$0xff]
        %v2265 = vld [vmem:[%s2260 + $0x20] sm:$0xff]
        %v2266 = vld [vmem:[%s2260 + $0x28] sm:$0xff]
        %v2267 = vld [vmem:[%s2260 + $0x30] sm:$0xff]
        %v2268 = vld [vmem:[%s2260 + $0x38] sm:$0xff]
        %v2269 = vld [vmem:[%s2260 + $0x40] sm:$0xff]
        %v2270 = vld [vmem:[%s2260 + $0x48] sm:$0xff]
        %v2271 = vld [vmem:[%s2260 + $0x50] sm:$0xff]
        %v2272 = vld [vmem:[%s2260 + $0x58] sm:$0xff]
        %v2273 = vld [vmem:[%s2260 + $0x60] sm:$0xff]
        %v2274 = vld [vmem:[%s2260 + $0x68] sm:$0xff]
        %v2275 = vld [vmem:[%s2260 + $0x70] sm:$0xff]
        %v2276 = vld [vmem:[%s2260 + $0x78] sm:$0xff]
        %v2277 = vperm.slane %v2148, 1
        %2278 = vmatpush.msra.mxu0 %v2276
        %2279 = vmatpush.msra.mxu0 %v2275
        %2280 = vmatpush.msra.mxu0 %v2274
        %2281 = vmatpush.msra.mxu0 %v2273
        %2282 = vmatpush.msra.mxu0 %v2272
        %2283 = vmatpush.msra.mxu0 %v2271
        %2284 = vmatpush.msra.mxu0 %v2270
        %2285 = vmatpush.msra.mxu0 %v2269
        %2286 = vmatpush.msra.mxu0 %v2268
        %2287 = vmatpush.msra.mxu0 %v2267
        %2288 = vmatpush.msra.mxu0 %v2266
        %2289 = vmatpush.msra.mxu0 %v2265
        %2290 = vmatpush.msra.mxu0 %v2264
        %2291 = vmatpush.msra.mxu0 %v2263
        %2292 = vmatpush.msra.mxu0 %v2262
        %2293 = vmatpush.msra.mxu0 %v2261
        %2294 = vmatmul.f32.gmra.mxu0 %v2259
        %v2295 = vpop.f32.mrf.mxu0
        %v2296 = vadd.f32 %v2277, %v2295
        %2297 = vdwg.mxu0
        %v2298 = vtanh.pop %v2296
        %v2299 = vperm.slane %v2148, 2
        %v2300 = vmul.f32 %v2298, %v2299
        %v2301 = vadd.f32 %v2146, %v2300
        %v2302 = vperm.slane %v2148, 3
        %v2303 = vadd.f32 %v2301, %v2302
        %s2304 = scalar_lea.vmem %s554, 40 [#allocation14]
        %v2305 = vld [vmem:[%s2304] sm:$0xf]
        %s2306 = scalar_lea.vmem %s642, 560
        %v2307 = vld [vmem:[%s2306] sm:$0xff]
        %v2308 = vld [vmem:[%s2306 + $0x8] sm:$0xff]
        %v2309 = vld [vmem:[%s2306 + $0x10] sm:$0xff]
        %v2310 = vld [vmem:[%s2306 + $0x18] sm:$0xff]
        %v2311 = vld [vmem:[%s2306 + $0x20] sm:$0xff]
        %v2312 = vld [vmem:[%s2306 + $0x28] sm:$0xff]
        %v2313 = vld [vmem:[%s2306 + $0x30] sm:$0x7f]
        %s2314 = scalar_lea.vmem %s648, 80
        %v2315 = vld [vmem:[%s2314] sm:$0x7f]
        %v2317 = vsel %vm740, %v2315, 0
        %2319 = vmatpush.msra.mxu0 0.0
        %2320 = vmatpush.msra.mxu0 0.0
        %2321 = vmatpush.msra.mxu0 0.0
        %2322 = vmatpush.msra.mxu0 0.0
        %2323 = vmatpush.msra.mxu0 0.0
        %2324 = vmatpush.msra.mxu0 0.0
        %2325 = vmatpush.msra.mxu0 0.0
        %2326 = vmatpush.msra.mxu0 0.0
        %2327 = vmatpush.msra.mxu0 0.0
        %2328 = vmatpush.msra.mxu0 0.0
        %2329 = vmatpush.msra.mxu0 0.0
        %2330 = vmatpush.msra.mxu0 0.0
        %2331 = vmatpush.msra.mxu0 0.0
        %2332 = vmatpush.msra.mxu0 0.0
        %2333 = vmatpush.msra.mxu0 0.0
        %2334 = vmatpush.msra.mxu0 %v2317
        %2335 = vmatmul.f32.gmra.mxu0 %v738
        %v2336 = vpop.f32.mrf.mxu0
        %v2337 = vadd.f32 0.0, %v2336
        %2338 = vdwg.mxu0
        %v2340 = vsel %vm740, %v2313, 0
        %2342 = vmatpush.msra.mxu0 0.0
        %2343 = vmatpush.msra.mxu0 0.0
        %2344 = vmatpush.msra.mxu0 0.0
        %2345 = vmatpush.msra.mxu0 0.0
        %2346 = vmatpush.msra.mxu0 0.0
        %2347 = vmatpush.msra.mxu0 0.0
        %2348 = vmatpush.msra.mxu0 0.0
        %2349 = vmatpush.msra.mxu0 0.0
        %2350 = vmatpush.msra.mxu0 0.0
        %2351 = vmatpush.msra.mxu0 %v2340
        %2352 = vmatpush.msra.mxu0 %v2312
        %2353 = vmatpush.msra.mxu0 %v2311
        %2354 = vmatpush.msra.mxu0 %v2310
        %2355 = vmatpush.msra.mxu0 %v2309
        %2356 = vmatpush.msra.mxu0 %v2308
        %2357 = vmatpush.msra.mxu0 %v2307
        %2358 = vmatmul.f32.gmra.mxu0 %v766
        %v2359 = vpop.f32.mrf.mxu0
        %v2360 = vadd.f32 %v2337, %v2359
        %2361 = vdwg.mxu0
        %s2362 = scalar_lea.vmem %s654, 80
        %v2363 = vld [vmem:[%s2362] sm:$0x7f]
        %v2365 = vsel %vm740, %v2363, 0
        %2367 = vmatpush.msra.mxu0 0.0
        %2368 = vmatpush.msra.mxu0 0.0
        %2369 = vmatpush.msra.mxu0 0.0
        %2370 = vmatpush.msra.mxu0 0.0
        %2371 = vmatpush.msra.mxu0 0.0
        %2372 = vmatpush.msra.mxu0 0.0
        %2373 = vmatpush.msra.mxu0 0.0
        %2374 = vmatpush.msra.mxu0 0.0
        %2375 = vmatpush.msra.mxu0 0.0
        %2376 = vmatpush.msra.mxu0 0.0
        %2377 = vmatpush.msra.mxu0 0.0
        %2378 = vmatpush.msra.mxu0 0.0
        %2379 = vmatpush.msra.mxu0 0.0
        %2380 = vmatpush.msra.mxu0 0.0
        %2381 = vmatpush.msra.mxu0 0.0
        %2382 = vmatpush.msra.mxu0 %v2365
        %2383 = vmatmul.f32.gmra.mxu0 %v793
        %v2384 = vpop.f32.mrf.mxu0
        %v2385 = vadd.f32 0.0, %v2384
        %2386 = vdwg.mxu0
        %v2387 = vadd.f32 %v2360, %v2385
        %s2388 = scalar_lea.vmem %s564, 240 [#allocation15]
        %v2389 = vld [vmem:[%s2388] sm:$0xff]
        %v2390 = vld [vmem:[%s2388 + $0x8] sm:$0xff]
        %v2391 = vld [vmem:[%s2388 + $0x10] sm:$0xff]
        %v2392 = vperm.slane %v2305, 0
        %v2394 = vsel %vm823, %v2387, 0
        %2396 = vmatpush.msra.mxu0 0.0
        %2397 = vmatpush.msra.mxu0 0.0
        %2398 = vmatpush.msra.mxu0 0.0
        %2399 = vmatpush.msra.mxu0 0.0
        %2400 = vmatpush.msra.mxu0 0.0
        %2401 = vmatpush.msra.mxu0 0.0
        %2402 = vmatpush.msra.mxu0 0.0
        %2403 = vmatpush.msra.mxu0 0.0
        %2404 = vmatpush.msra.mxu0 0.0
        %2405 = vmatpush.msra.mxu0 0.0
        %2406 = vmatpush.msra.mxu0 0.0
        %2407 = vmatpush.msra.mxu0 0.0
        %2408 = vmatpush.msra.mxu0 0.0
        %2409 = vmatpush.msra.mxu0 %v2391
        %2410 = vmatpush.msra.mxu0 %v2390
        %2411 = vmatpush.msra.mxu0 %v2389
        %2412 = vmatmul.f32.gmra.mxu0 %v2394
        %v2413 = vpop.f32.mrf.mxu0
        %v2414 = vadd.f32 %v2392, %v2413
        %2415 = vdwg.mxu0
        %v2416 = vtanh.pop %v2414
        %s2417 = scalar_lea.vmem %s574, 1280 [#allocation16]
        %v2418 = vld [vmem:[%s2417] sm:$0xff]
        %v2419 = vld [vmem:[%s2417 + $0x8] sm:$0xff]
        %v2420 = vld [vmem:[%s2417 + $0x10] sm:$0xff]
        %v2421 = vld [vmem:[%s2417 + $0x18] sm:$0xff]
        %v2422 = vld [vmem:[%s2417 + $0x20] sm:$0xff]
        %v2423 = vld [vmem:[%s2417 + $0x28] sm:$0xff]
        %v2424 = vld [vmem:[%s2417 + $0x30] sm:$0xff]
        %v2425 = vld [vmem:[%s2417 + $0x38] sm:$0xff]
        %v2426 = vld [vmem:[%s2417 + $0x40] sm:$0xff]
        %v2427 = vld [vmem:[%s2417 + $0x48] sm:$0xff]
        %v2428 = vld [vmem:[%s2417 + $0x50] sm:$0xff]
        %v2429 = vld [vmem:[%s2417 + $0x58] sm:$0xff]
        %v2430 = vld [vmem:[%s2417 + $0x60] sm:$0xff]
        %v2431 = vld [vmem:[%s2417 + $0x68] sm:$0xff]
        %v2432 = vld [vmem:[%s2417 + $0x70] sm:$0xff]
        %v2433 = vld [vmem:[%s2417 + $0x78] sm:$0xff]
        %v2434 = vperm.slane %v2305, 1
        %2435 = vmatpush.msra.mxu0 %v2433
        %2436 = vmatpush.msra.mxu0 %v2432
        %2437 = vmatpush.msra.mxu0 %v2431
        %2438 = vmatpush.msra.mxu0 %v2430
        %2439 = vmatpush.msra.mxu0 %v2429
        %2440 = vmatpush.msra.mxu0 %v2428
        %2441 = vmatpush.msra.mxu0 %v2427
        %2442 = vmatpush.msra.mxu0 %v2426
        %2443 = vmatpush.msra.mxu0 %v2425
        %2444 = vmatpush.msra.mxu0 %v2424
        %2445 = vmatpush.msra.mxu0 %v2423
        %2446 = vmatpush.msra.mxu0 %v2422
        %2447 = vmatpush.msra.mxu0 %v2421
        %2448 = vmatpush.msra.mxu0 %v2420
        %2449 = vmatpush.msra.mxu0 %v2419
        %2450 = vmatpush.msra.mxu0 %v2418
        %2451 = vmatmul.f32.gmra.mxu0 %v2416
        %v2452 = vpop.f32.mrf.mxu0
        %v2453 = vadd.f32 %v2434, %v2452
        %2454 = vdwg.mxu0
        %v2455 = vtanh.pop %v2453
        %v2456 = vperm.slane %v2305, 2
        %v2457 = vmul.f32 %v2455, %v2456
        %v2458 = vadd.f32 %v2303, %v2457
        %v2459 = vperm.slane %v2305, 3
        %v2460 = vadd.f32 %v2458, %v2459
        %s2461 = scalar_lea.vmem %s554, 44 [#allocation14]
        %v2462 = vld [vmem:[%s2461] sm:$0xf]
        %s2463 = scalar_lea.vmem %s642, 616
        %v2464 = vld [vmem:[%s2463] sm:$0xff]
        %v2465 = vld [vmem:[%s2463 + $0x8] sm:$0xff]
        %v2466 = vld [vmem:[%s2463 + $0x10] sm:$0xff]
        %v2467 = vld [vmem:[%s2463 + $0x18] sm:$0xff]
        %v2468 = vld [vmem:[%s2463 + $0x20] sm:$0xff]
        %v2469 = vld [vmem:[%s2463 + $0x28] sm:$0xff]
        %v2470 = vld [vmem:[%s2463 + $0x30] sm:$0x7f]
        %s2471 = scalar_lea.vmem %s648, 88
        %v2472 = vld [vmem:[%s2471] sm:$0x7f]
        %v2474 = vsel %vm740, %v2472, 0
        %2476 = vmatpush.msra.mxu0 0.0
        %2477 = vmatpush.msra.mxu0 0.0
        %2478 = vmatpush.msra.mxu0 0.0
        %2479 = vmatpush.msra.mxu0 0.0
        %2480 = vmatpush.msra.mxu0 0.0
        %2481 = vmatpush.msra.mxu0 0.0
        %2482 = vmatpush.msra.mxu0 0.0
        %2483 = vmatpush.msra.mxu0 0.0
        %2484 = vmatpush.msra.mxu0 0.0
        %2485 = vmatpush.msra.mxu0 0.0
        %2486 = vmatpush.msra.mxu0 0.0
        %2487 = vmatpush.msra.mxu0 0.0
        %2488 = vmatpush.msra.mxu0 0.0
        %2489 = vmatpush.msra.mxu0 0.0
        %2490 = vmatpush.msra.mxu0 0.0
        %2491 = vmatpush.msra.mxu0 %v2474
        %2492 = vmatmul.f32.gmra.mxu0 %v738
        %v2493 = vpop.f32.mrf.mxu0
        %v2494 = vadd.f32 0.0, %v2493
        %2495 = vdwg.mxu0
        %v2497 = vsel %vm740, %v2470, 0
        %2499 = vmatpush.msra.mxu0 0.0
        %2500 = vmatpush.msra.mxu0 0.0
        %2501 = vmatpush.msra.mxu0 0.0
        %2502 = vmatpush.msra.mxu0 0.0
        %2503 = vmatpush.msra.mxu0 0.0
        %2504 = vmatpush.msra.mxu0 0.0
        %2505 = vmatpush.msra.mxu0 0.0
        %2506 = vmatpush.msra.mxu0 0.0
        %2507 = vmatpush.msra.mxu0 0.0
        %2508 = vmatpush.msra.mxu0 %v2497
        %2509 = vmatpush.msra.mxu0 %v2469
        %2510 = vmatpush.msra.mxu0 %v2468
        %2511 = vmatpush.msra.mxu0 %v2467
        %2512 = vmatpush.msra.mxu0 %v2466
        %2513 = vmatpush.msra.mxu0 %v2465
        %2514 = vmatpush.msra.mxu0 %v2464
        %2515 = vmatmul.f32.gmra.mxu0 %v766
        %v2516 = vpop.f32.mrf.mxu0
        %v2517 = vadd.f32 %v2494, %v2516
        %2518 = vdwg.mxu0
        %s2519 = scalar_lea.vmem %s654, 88
        %v2520 = vld [vmem:[%s2519] sm:$0x7f]
        %v2522 = vsel %vm740, %v2520, 0
        %2524 = vmatpush.msra.mxu0 0.0
        %2525 = vmatpush.msra.mxu0 0.0
        %2526 = vmatpush.msra.mxu0 0.0
        %2527 = vmatpush.msra.mxu0 0.0
        %2528 = vmatpush.msra.mxu0 0.0
        %2529 = vmatpush.msra.mxu0 0.0
        %2530 = vmatpush.msra.mxu0 0.0
        %2531 = vmatpush.msra.mxu0 0.0
        %2532 = vmatpush.msra.mxu0 0.0
        %2533 = vmatpush.msra.mxu0 0.0
        %2534 = vmatpush.msra.mxu0 0.0
        %2535 = vmatpush.msra.mxu0 0.0
        %2536 = vmatpush.msra.mxu0 0.0
        %2537 = vmatpush.msra.mxu0 0.0
        %2538 = vmatpush.msra.mxu0 0.0
        %2539 = vmatpush.msra.mxu0 %v2522
        %2540 = vmatmul.f32.gmra.mxu0 %v793
        %v2541 = vpop.f32.mrf.mxu0
        %v2542 = vadd.f32 0.0, %v2541
        %2543 = vdwg.mxu0
        %v2544 = vadd.f32 %v2517, %v2542
        %s2545 = scalar_lea.vmem %s564, 264 [#allocation15]
        %v2546 = vld [vmem:[%s2545] sm:$0xff]
        %v2547 = vld [vmem:[%s2545 + $0x8] sm:$0xff]
        %v2548 = vld [vmem:[%s2545 + $0x10] sm:$0xff]
        %v2549 = vperm.slane %v2462, 0
        %v2551 = vsel %vm823, %v2544, 0
        %2553 = vmatpush.msra.mxu0 0.0
        %2554 = vmatpush.msra.mxu0 0.0
        %2555 = vmatpush.msra.mxu0 0.0
        %2556 = vmatpush.msra.mxu0 0.0
        %2557 = vmatpush.msra.mxu0 0.0
        %2558 = vmatpush.msra.mxu0 0.0
        %2559 = vmatpush.msra.mxu0 0.0
        %2560 = vmatpush.msra.mxu0 0.0
        %2561 = vmatpush.msra.mxu0 0.0
        %2562 = vmatpush.msra.mxu0 0.0
        %2563 = vmatpush.msra.mxu0 0.0
        %2564 = vmatpush.msra.mxu0 0.0
        %2565 = vmatpush.msra.mxu0 0.0
        %2566 = vmatpush.msra.mxu0 %v2548
        %2567 = vmatpush.msra.mxu0 %v2547
        %2568 = vmatpush.msra.mxu0 %v2546
        %2569 = vmatmul.f32.gmra.mxu0 %v2551
        %v2570 = vpop.f32.mrf.mxu0
        %v2571 = vadd.f32 %v2549, %v2570
        %2572 = vdwg.mxu0
        %v2573 = vtanh.pop %v2571
        %s2574 = scalar_lea.vmem %s574, 1408 [#allocation16]
        %v2575 = vld [vmem:[%s2574] sm:$0xff]
        %v2576 = vld [vmem:[%s2574 + $0x8] sm:$0xff]
        %v2577 = vld [vmem:[%s2574 + $0x10] sm:$0xff]
        %v2578 = vld [vmem:[%s2574 + $0x18] sm:$0xff]
        %v2579 = vld [vmem:[%s2574 + $0x20] sm:$0xff]
        %v2580 = vld [vmem:[%s2574 + $0x28] sm:$0xff]
        %v2581 = vld [vmem:[%s2574 + $0x30] sm:$0xff]
        %v2582 = vld [vmem:[%s2574 + $0x38] sm:$0xff]
        %v2583 = vld [vmem:[%s2574 + $0x40] sm:$0xff]
        %v2584 = vld [vmem:[%s2574 + $0x48] sm:$0xff]
        %v2585 = vld [vmem:[%s2574 + $0x50] sm:$0xff]
        %v2586 = vld [vmem:[%s2574 + $0x58] sm:$0xff]
        %v2587 = vld [vmem:[%s2574 + $0x60] sm:$0xff]
        %v2588 = vld [vmem:[%s2574 + $0x68] sm:$0xff]
        %v2589 = vld [vmem:[%s2574 + $0x70] sm:$0xff]
        %v2590 = vld [vmem:[%s2574 + $0x78] sm:$0xff]
        %v2591 = vperm.slane %v2462, 1
        %2592 = vmatpush.msra.mxu0 %v2590
        %2593 = vmatpush.msra.mxu0 %v2589
        %2594 = vmatpush.msra.mxu0 %v2588
        %2595 = vmatpush.msra.mxu0 %v2587
        %2596 = vmatpush.msra.mxu0 %v2586
        %2597 = vmatpush.msra.mxu0 %v2585
        %2598 = vmatpush.msra.mxu0 %v2584
        %2599 = vmatpush.msra.mxu0 %v2583
        %2600 = vmatpush.msra.mxu0 %v2582
        %2601 = vmatpush.msra.mxu0 %v2581
        %2602 = vmatpush.msra.mxu0 %v2580
        %2603 = vmatpush.msra.mxu0 %v2579
        %2604 = vmatpush.msra.mxu0 %v2578
        %2605 = vmatpush.msra.mxu0 %v2577
        %2606 = vmatpush.msra.mxu0 %v2576
        %2607 = vmatpush.msra.mxu0 %v2575
        %2608 = vmatmul.f32.gmra.mxu0 %v2573
        %v2609 = vpop.f32.mrf.mxu0
        %v2610 = vadd.f32 %v2591, %v2609
        %2611 = vdwg.mxu0
        %v2612 = vtanh.pop %v2610
        %v2613 = vperm.slane %v2462, 2
        %v2614 = vmul.f32 %v2612, %v2613
        %v2615 = vadd.f32 %v2460, %v2614
        %v2616 = vperm.slane %v2462, 3
        %v2617 = vadd.f32 %v2615, %v2616
        %s2618 = scalar_lea.vmem %s554, 48 [#allocation14]
        %v2619 = vld [vmem:[%s2618] sm:$0xf]
        %s2620 = scalar_lea.vmem %s642, 672
        %v2621 = vld [vmem:[%s2620] sm:$0xff]
        %v2622 = vld [vmem:[%s2620 + $0x8] sm:$0xff]
        %v2623 = vld [vmem:[%s2620 + $0x10] sm:$0xff]
        %v2624 = vld [vmem:[%s2620 + $0x18] sm:$0xff]
        %v2625 = vld [vmem:[%s2620 + $0x20] sm:$0xff]
        %v2626 = vld [vmem:[%s2620 + $0x28] sm:$0xff]
        %v2627 = vld [vmem:[%s2620 + $0x30] sm:$0x7f]
        %s2628 = scalar_lea.vmem %s648, 96
        %v2629 = vld [vmem:[%s2628] sm:$0x7f]
        %v2631 = vsel %vm740, %v2629, 0
        %2633 = vmatpush.msra.mxu0 0.0
        %2634 = vmatpush.msra.mxu0 0.0
        %2635 = vmatpush.msra.mxu0 0.0
        %2636 = vmatpush.msra.mxu0 0.0
        %2637 = vmatpush.msra.mxu0 0.0
        %2638 = vmatpush.msra.mxu0 0.0
        %2639 = vmatpush.msra.mxu0 0.0
        %2640 = vmatpush.msra.mxu0 0.0
        %2641 = vmatpush.msra.mxu0 0.0
        %2642 = vmatpush.msra.mxu0 0.0
        %2643 = vmatpush.msra.mxu0 0.0
        %2644 = vmatpush.msra.mxu0 0.0
        %2645 = vmatpush.msra.mxu0 0.0
        %2646 = vmatpush.msra.mxu0 0.0
        %2647 = vmatpush.msra.mxu0 0.0
        %2648 = vmatpush.msra.mxu0 %v2631
        %2649 = vmatmul.f32.gmra.mxu0 %v738
        %v2650 = vpop.f32.mrf.mxu0
        %v2651 = vadd.f32 0.0, %v2650
        %2652 = vdwg.mxu0
        %v2654 = vsel %vm740, %v2627, 0
        %2656 = vmatpush.msra.mxu0 0.0
        %2657 = vmatpush.msra.mxu0 0.0
        %2658 = vmatpush.msra.mxu0 0.0
        %2659 = vmatpush.msra.mxu0 0.0
        %2660 = vmatpush.msra.mxu0 0.0
        %2661 = vmatpush.msra.mxu0 0.0
        %2662 = vmatpush.msra.mxu0 0.0
        %2663 = vmatpush.msra.mxu0 0.0
        %2664 = vmatpush.msra.mxu0 0.0
        %2665 = vmatpush.msra.mxu0 %v2654
        %2666 = vmatpush.msra.mxu0 %v2626
        %2667 = vmatpush.msra.mxu0 %v2625
        %2668 = vmatpush.msra.mxu0 %v2624
        %2669 = vmatpush.msra.mxu0 %v2623
        %2670 = vmatpush.msra.mxu0 %v2622
        %2671 = vmatpush.msra.mxu0 %v2621
        %2672 = vmatmul.f32.gmra.mxu0 %v766
        %v2673 = vpop.f32.mrf.mxu0
        %v2674 = vadd.f32 %v2651, %v2673
        %2675 = vdwg.mxu0
        %s2676 = scalar_lea.vmem %s654, 96
        %v2677 = vld [vmem:[%s2676] sm:$0x7f]
        %v2679 = vsel %vm740, %v2677, 0
        %2681 = vmatpush.msra.mxu0 0.0
        %2682 = vmatpush.msra.mxu0 0.0
        %2683 = vmatpush.msra.mxu0 0.0
        %2684 = vmatpush.msra.mxu0 0.0
        %2685 = vmatpush.msra.mxu0 0.0
        %2686 = vmatpush.msra.mxu0 0.0
        %2687 = vmatpush.msra.mxu0 0.0
        %2688 = vmatpush.msra.mxu0 0.0
        %2689 = vmatpush.msra.mxu0 0.0
        %2690 = vmatpush.msra.mxu0 0.0
        %2691 = vmatpush.msra.mxu0 0.0
        %2692 = vmatpush.msra.mxu0 0.0
        %2693 = vmatpush.msra.mxu0 0.0
        %2694 = vmatpush.msra.mxu0 0.0
        %2695 = vmatpush.msra.mxu0 0.0
        %2696 = vmatpush.msra.mxu0 %v2679
        %2697 = vmatmul.f32.gmra.mxu0 %v793
        %v2698 = vpop.f32.mrf.mxu0
        %v2699 = vadd.f32 0.0, %v2698
        %2700 = vdwg.mxu0
        %v2701 = vadd.f32 %v2674, %v2699
        %s2702 = scalar_lea.vmem %s564, 288 [#allocation15]
        %v2703 = vld [vmem:[%s2702] sm:$0xff]
        %v2704 = vld [vmem:[%s2702 + $0x8] sm:$0xff]
        %v2705 = vld [vmem:[%s2702 + $0x10] sm:$0xff]
        %v2706 = vperm.slane %v2619, 0
        %v2708 = vsel %vm823, %v2701, 0
        %2710 = vmatpush.msra.mxu0 0.0
        %2711 = vmatpush.msra.mxu0 0.0
        %2712 = vmatpush.msra.mxu0 0.0
        %2713 = vmatpush.msra.mxu0 0.0
        %2714 = vmatpush.msra.mxu0 0.0
        %2715 = vmatpush.msra.mxu0 0.0
        %2716 = vmatpush.msra.mxu0 0.0
        %2717 = vmatpush.msra.mxu0 0.0
        %2718 = vmatpush.msra.mxu0 0.0
        %2719 = vmatpush.msra.mxu0 0.0
        %2720 = vmatpush.msra.mxu0 0.0
        %2721 = vmatpush.msra.mxu0 0.0
        %2722 = vmatpush.msra.mxu0 0.0
        %2723 = vmatpush.msra.mxu0 %v2705
        %2724 = vmatpush.msra.mxu0 %v2704
        %2725 = vmatpush.msra.mxu0 %v2703
        %2726 = vmatmul.f32.gmra.mxu0 %v2708
        %v2727 = vpop.f32.mrf.mxu0
        %v2728 = vadd.f32 %v2706, %v2727
        %2729 = vdwg.mxu0
        %v2730 = vtanh.pop %v2728
        %s2731 = scalar_lea.vmem %s574, 1536 [#allocation16]
        %v2732 = vld [vmem:[%s2731] sm:$0xff]
        %v2733 = vld [vmem:[%s2731 + $0x8] sm:$0xff]
        %v2734 = vld [vmem:[%s2731 + $0x10] sm:$0xff]
        %v2735 = vld [vmem:[%s2731 + $0x18] sm:$0xff]
        %v2736 = vld [vmem:[%s2731 + $0x20] sm:$0xff]
        %v2737 = vld [vmem:[%s2731 + $0x28] sm:$0xff]
        %v2738 = vld [vmem:[%s2731 + $0x30] sm:$0xff]
        %v2739 = vld [vmem:[%s2731 + $0x38] sm:$0xff]
        %v2740 = vld [vmem:[%s2731 + $0x40] sm:$0xff]
        %v2741 = vld [vmem:[%s2731 + $0x48] sm:$0xff]
        %v2742 = vld [vmem:[%s2731 + $0x50] sm:$0xff]
        %v2743 = vld [vmem:[%s2731 + $0x58] sm:$0xff]
        %v2744 = vld [vmem:[%s2731 + $0x60] sm:$0xff]
        %v2745 = vld [vmem:[%s2731 + $0x68] sm:$0xff]
        %v2746 = vld [vmem:[%s2731 + $0x70] sm:$0xff]
        %v2747 = vld [vmem:[%s2731 + $0x78] sm:$0xff]
        %v2748 = vperm.slane %v2619, 1
        %2749 = vmatpush.msra.mxu0 %v2747
        %2750 = vmatpush.msra.mxu0 %v2746
        %2751 = vmatpush.msra.mxu0 %v2745
        %2752 = vmatpush.msra.mxu0 %v2744
        %2753 = vmatpush.msra.mxu0 %v2743
        %2754 = vmatpush.msra.mxu0 %v2742
        %2755 = vmatpush.msra.mxu0 %v2741
        %2756 = vmatpush.msra.mxu0 %v2740
        %2757 = vmatpush.msra.mxu0 %v2739
        %2758 = vmatpush.msra.mxu0 %v2738
        %2759 = vmatpush.msra.mxu0 %v2737
        %2760 = vmatpush.msra.mxu0 %v2736
        %2761 = vmatpush.msra.mxu0 %v2735
        %2762 = vmatpush.msra.mxu0 %v2734
        %2763 = vmatpush.msra.mxu0 %v2733
        %2764 = vmatpush.msra.mxu0 %v2732
        %2765 = vmatmul.f32.gmra.mxu0 %v2730
        %v2766 = vpop.f32.mrf.mxu0
        %v2767 = vadd.f32 %v2748, %v2766
        %2768 = vdwg.mxu0
        %v2769 = vtanh.pop %v2767
        %v2770 = vperm.slane %v2619, 2
        %v2771 = vmul.f32 %v2769, %v2770
        %v2772 = vadd.f32 %v2617, %v2771
        %v2773 = vperm.slane %v2619, 3
        %v2774 = vadd.f32 %v2772, %v2773
        %s2775 = scalar_lea.vmem %s554, 52 [#allocation14]
        %v2776 = vld [vmem:[%s2775] sm:$0xf]
        %s2777 = scalar_lea.vmem %s642, 728
        %v2778 = vld [vmem:[%s2777] sm:$0xff]
        %v2779 = vld [vmem:[%s2777 + $0x8] sm:$0xff]
        %v2780 = vld [vmem:[%s2777 + $0x10] sm:$0xff]
        %v2781 = vld [vmem:[%s2777 + $0x18] sm:$0xff]
        %v2782 = vld [vmem:[%s2777 + $0x20] sm:$0xff]
        %v2783 = vld [vmem:[%s2777 + $0x28] sm:$0xff]
        %v2784 = vld [vmem:[%s2777 + $0x30] sm:$0x7f]
        %s2785 = scalar_lea.vmem %s648, 104
        %v2786 = vld [vmem:[%s2785] sm:$0x7f]
        %v2788 = vsel %vm740, %v2786, 0
        %2790 = vmatpush.msra.mxu0 0.0
        %2791 = vmatpush.msra.mxu0 0.0
        %2792 = vmatpush.msra.mxu0 0.0
        %2793 = vmatpush.msra.mxu0 0.0
        %2794 = vmatpush.msra.mxu0 0.0
        %2795 = vmatpush.msra.mxu0 0.0
        %2796 = vmatpush.msra.mxu0 0.0
        %2797 = vmatpush.msra.mxu0 0.0
        %2798 = vmatpush.msra.mxu0 0.0
        %2799 = vmatpush.msra.mxu0 0.0
        %2800 = vmatpush.msra.mxu0 0.0
        %2801 = vmatpush.msra.mxu0 0.0
        %2802 = vmatpush.msra.mxu0 0.0
        %2803 = vmatpush.msra.mxu0 0.0
        %2804 = vmatpush.msra.mxu0 0.0
        %2805 = vmatpush.msra.mxu0 %v2788
        %2806 = vmatmul.f32.gmra.mxu0 %v738
        %v2807 = vpop.f32.mrf.mxu0
        %v2808 = vadd.f32 0.0, %v2807
        %2809 = vdwg.mxu0
        %v2811 = vsel %vm740, %v2784, 0
        %2813 = vmatpush.msra.mxu0 0.0
        %2814 = vmatpush.msra.mxu0 0.0
        %2815 = vmatpush.msra.mxu0 0.0
        %2816 = vmatpush.msra.mxu0 0.0
        %2817 = vmatpush.msra.mxu0 0.0
        %2818 = vmatpush.msra.mxu0 0.0
        %2819 = vmatpush.msra.mxu0 0.0
        %2820 = vmatpush.msra.mxu0 0.0
        %2821 = vmatpush.msra.mxu0 0.0
        %2822 = vmatpush.msra.mxu0 %v2811
        %2823 = vmatpush.msra.mxu0 %v2783
        %2824 = vmatpush.msra.mxu0 %v2782
        %2825 = vmatpush.msra.mxu0 %v2781
        %2826 = vmatpush.msra.mxu0 %v2780
        %2827 = vmatpush.msra.mxu0 %v2779
        %2828 = vmatpush.msra.mxu0 %v2778
        %2829 = vmatmul.f32.gmra.mxu0 %v766
        %v2830 = vpop.f32.mrf.mxu0
        %v2831 = vadd.f32 %v2808, %v2830
        %2832 = vdwg.mxu0
        %s2833 = scalar_lea.vmem %s654, 104
        %v2834 = vld [vmem:[%s2833] sm:$0x7f]
        %v2836 = vsel %vm740, %v2834, 0
        %2838 = vmatpush.msra.mxu0 0.0
        %2839 = vmatpush.msra.mxu0 0.0
        %2840 = vmatpush.msra.mxu0 0.0
        %2841 = vmatpush.msra.mxu0 0.0
        %2842 = vmatpush.msra.mxu0 0.0
        %2843 = vmatpush.msra.mxu0 0.0
        %2844 = vmatpush.msra.mxu0 0.0
        %2845 = vmatpush.msra.mxu0 0.0
        %2846 = vmatpush.msra.mxu0 0.0
        %2847 = vmatpush.msra.mxu0 0.0
        %2848 = vmatpush.msra.mxu0 0.0
        %2849 = vmatpush.msra.mxu0 0.0
        %2850 = vmatpush.msra.mxu0 0.0
        %2851 = vmatpush.msra.mxu0 0.0
        %2852 = vmatpush.msra.mxu0 0.0
        %2853 = vmatpush.msra.mxu0 %v2836
        %2854 = vmatmul.f32.gmra.mxu0 %v793
        %v2855 = vpop.f32.mrf.mxu0
        %v2856 = vadd.f32 0.0, %v2855
        %2857 = vdwg.mxu0
        %v2858 = vadd.f32 %v2831, %v2856
        %s2859 = scalar_lea.vmem %s564, 312 [#allocation15]
        %v2860 = vld [vmem:[%s2859] sm:$0xff]
        %v2861 = vld [vmem:[%s2859 + $0x8] sm:$0xff]
        %v2862 = vld [vmem:[%s2859 + $0x10] sm:$0xff]
        %v2863 = vperm.slane %v2776, 0
        %v2865 = vsel %vm823, %v2858, 0
        %2867 = vmatpush.msra.mxu0 0.0
        %2868 = vmatpush.msra.mxu0 0.0
        %2869 = vmatpush.msra.mxu0 0.0
        %2870 = vmatpush.msra.mxu0 0.0
        %2871 = vmatpush.msra.mxu0 0.0
        %2872 = vmatpush.msra.mxu0 0.0
        %2873 = vmatpush.msra.mxu0 0.0
        %2874 = vmatpush.msra.mxu0 0.0
        %2875 = vmatpush.msra.mxu0 0.0
        %2876 = vmatpush.msra.mxu0 0.0
        %2877 = vmatpush.msra.mxu0 0.0
        %2878 = vmatpush.msra.mxu0 0.0
        %2879 = vmatpush.msra.mxu0 0.0
        %2880 = vmatpush.msra.mxu0 %v2862
        %2881 = vmatpush.msra.mxu0 %v2861
        %2882 = vmatpush.msra.mxu0 %v2860
        %2883 = vmatmul.f32.gmra.mxu0 %v2865
        %v2884 = vpop.f32.mrf.mxu0
        %v2885 = vadd.f32 %v2863, %v2884
        %2886 = vdwg.mxu0
        %v2887 = vtanh.pop %v2885
        %s2888 = scalar_lea.vmem %s574, 1664 [#allocation16]
        %v2889 = vld [vmem:[%s2888] sm:$0xff]
        %v2890 = vld [vmem:[%s2888 + $0x8] sm:$0xff]
        %v2891 = vld [vmem:[%s2888 + $0x10] sm:$0xff]
        %v2892 = vld [vmem:[%s2888 + $0x18] sm:$0xff]
        %v2893 = vld [vmem:[%s2888 + $0x20] sm:$0xff]
        %v2894 = vld [vmem:[%s2888 + $0x28] sm:$0xff]
        %v2895 = vld [vmem:[%s2888 + $0x30] sm:$0xff]
        %v2896 = vld [vmem:[%s2888 + $0x38] sm:$0xff]
        %v2897 = vld [vmem:[%s2888 + $0x40] sm:$0xff]
        %v2898 = vld [vmem:[%s2888 + $0x48] sm:$0xff]
        %v2899 = vld [vmem:[%s2888 + $0x50] sm:$0xff]
        %v2900 = vld [vmem:[%s2888 + $0x58] sm:$0xff]
        %v2901 = vld [vmem:[%s2888 + $0x60] sm:$0xff]
        %v2902 = vld [vmem:[%s2888 + $0x68] sm:$0xff]
        %v2903 = vld [vmem:[%s2888 + $0x70] sm:$0xff]
        %v2904 = vld [vmem:[%s2888 + $0x78] sm:$0xff]
        %v2905 = vperm.slane %v2776, 1
        %2906 = vmatpush.msra.mxu0 %v2904
        %2907 = vmatpush.msra.mxu0 %v2903
        %2908 = vmatpush.msra.mxu0 %v2902
        %2909 = vmatpush.msra.mxu0 %v2901
        %2910 = vmatpush.msra.mxu0 %v2900
        %2911 = vmatpush.msra.mxu0 %v2899
        %2912 = vmatpush.msra.mxu0 %v2898
        %2913 = vmatpush.msra.mxu0 %v2897
        %2914 = vmatpush.msra.mxu0 %v2896
        %2915 = vmatpush.msra.mxu0 %v2895
        %2916 = vmatpush.msra.mxu0 %v2894
        %2917 = vmatpush.msra.mxu0 %v2893
        %2918 = vmatpush.msra.mxu0 %v2892
        %2919 = vmatpush.msra.mxu0 %v2891
        %2920 = vmatpush.msra.mxu0 %v2890
        %2921 = vmatpush.msra.mxu0 %v2889
        %2922 = vmatmul.f32.gmra.mxu0 %v2887
        %v2923 = vpop.f32.mrf.mxu0
        %v2924 = vadd.f32 %v2905, %v2923
        %2925 = vdwg.mxu0
        %v2926 = vtanh.pop %v2924
        %v2927 = vperm.slane %v2776, 2
        %v2928 = vmul.f32 %v2926, %v2927
        %v2929 = vadd.f32 %v2774, %v2928
        %v2930 = vperm.slane %v2776, 3
        %v2931 = vadd.f32 %v2929, %v2930
        %v2932 = vld [vmem:[#allocation2] sm:$0xff]
        %v2933 = vadd.f32 %v2932, %v2931
        %2934 = vst [vmem:[#allocation2] sm:$0xff] %v2933
        %p2935 = scmp.eq.s32.totalorder %s28, 3
        // Predicated region
        $region109: #{model4bd_forward.1} parent=67 // pred_check
          %p2936 = pneg %p2935
        $region110: #{model4bd_forward.1} parent=67 // pred_check_branch
          %2938 = sbr.rel (%p2936) target = $region112
        $region111: #{model4bd_forward.1} parent=67 // pred_region
          %v2939 = vld [vmem:[#allocation2] sm:$0xff]
          %2940 = vadd.xlane.f32.xlu0 %v2939
          %v2941 = vpop.xlane.xlu0 %2940
          %v2942 = vrot.slane %v2941, 4
          %v2943 = vadd.f32 %v2941, %v2942
          %v2944 = vrot.slane %v2943, 2
          %v2945 = vadd.f32 %v2943, %v2944
          %v2946 = vrot.slane %v2945, 1
          %v2947 = vadd.f32 %v2945, %v2946
          %s2948 = vtos %v2947
          %s2949 = scalar_lea.smem [#allocation17], 0
          %2950 = sst [smem:[%s2949]] %s2948
        $region112: #{model4bd_forward.1} parent=67 // pred_fallthru
          _
        // Predicated region
        $region113: #{model4bd_forward.1} parent=67 // pred_check
          %p2951 = pneg %p323
        $region114: #{model4bd_forward.1} parent=67 // pred_check_branch
          %2953 = sbr.rel (%p2951) target = $region116
        $region115: #{model4bd_forward.1} parent=67 // pred_region
          %2955 = vsyncadd [#allocation5], 0
          %s2957 = sshll.u32 %s12, 4
          %s2958 = int_to_ptr.hbm [resolvable:$true] %s2957
          %2960 = dma.smem_to_hbm [#allocation17], 16, %s2958, [#allocation5]
        $region116: #{model4bd_forward.1} parent=67 // pred_fallthru
          _
        // Predicated region
        $region117: #{model4bd_forward.1} parent=67 // pred_check
          %p2961 = pneg %p323
        $region118: #{model4bd_forward.1} parent=67 // pred_check_branch
          %2963 = sbr.rel (%p2961) target = $region120
        $region119: #{model4bd_forward.1} parent=67 // pred_region
          %2965 = dma.done [#allocation5], 16
        $region120: #{model4bd_forward.1} parent=67 // pred_fallthru
          _
        %2966 = sfence
      $region68: #{model4bd_forward.1} parent=5 // pred_fallthru
        _
      %p2967 = scmp.le.s32.totalorder 2, %s23
      // Predicated region
      $region121: #{model4bd_forward.1} parent=5 // pred_check
        %p2968 = pneg %p2967
      $region122: #{model4bd_forward.1} parent=5 // pred_check_branch
        %2970 = sbr.rel (%p2968) target = $region124
      $region123: #{model4bd_forward.1} parent=5 // pred_region
        %s2971 = ssub.s32 %s23, 2
      $region124: #{model4bd_forward.1} parent=5 // pred_fallthru
        _
    $region6: #{model4bd_forward.1} parent=1 // loop_footer
      %s27 = sadd.s32 1, %s23
    $region7: #{model4bd_forward.1} parent=1 // loop_footer_branch
      %22 = sbr.rel target = $region3
    $region8: #{model4bd_forward.1} parent=1 // loop_exit
      _
    %2972 = vsyncpa [#allocation4], 1
    %s2973 = scalar_lea.sflag [#allocation4], 1
    %2974 = vsyncpa %s2973, 1
    %2975 = vsyncpa [#allocation7], 1
    %2976 = vsyncpa [#allocation10], 1
    %2977 = vsyncpa [#allocation13], 1
    %2978 = vsyncpa [#allocation5], 1
    %s2979 = scalar_lea.sflag [#allocation5], 1
    %2980 = vsyncpa %s2979, 1

</llo_original>
